<compile_context>
chip_gen: v6e
topology: v6e:2x2x1
jax: 0.10.0
libtpu: 0.0.40
codegen_flags: <defaults>
</compile_context>

<pallas_src>
import jax
import jax.numpy as jnp
from jax import lax
from jax.experimental import pallas as pl
from jax.experimental.pallas import tpu as pltpu


def _padded_halo(y_hwc, dtype):
    """(H, W, C) -> (H+2, W+2, C) with a zero halo, built in registers so the
    scratch write is one dense aligned full-buffer store."""
    H, W, C = y_hwc.shape
    y = y_hwc.astype(dtype)
    zrow = jnp.zeros((1, W, C), dtype)
    body = jnp.concatenate([zrow, y, zrow], axis=0)        # (H+2, W, C)
    zcol = jnp.zeros((H + 2, 1, C), dtype)
    return jnp.concatenate([zcol, body, zcol], axis=1)     # (H+2, W+2, C)


def _fused_kernel(p1_ref, w1_ref, sh1_ref, w2_ref, sh2_ref, w3t_ref, b3_ref,
                  out_ref, pad1_ref, pad2_ref):
    """One batch element per grid step.

    p1_ref  : (1, H*W, 27)   bf16 wrapper-side im2col patches for layer 1
    w1_ref  : (27, 64)       bf16 im2col weights, BN1 scale folded in
    sh1_ref : (1, 64)        f32 folded BN1 shift
    w2_ref  : (9, 64, 64)    bf16 per-tap weights, BN2 scale folded in
    sh2_ref : (1, 64)        f32 folded BN2 shift
    w3t_ref : (9, 3, 64)     bf16 per-tap weights for conv3, (cout, cin)
    b3_ref  : (3, 1)         f32 conv3 bias
    out_ref : (1, 3, H*W)    f32 output, NCHW-flat (lane-dense store)
    pad*_ref: (H+2, W+2, C)  f32 VMEM scratch, zero-padded activations
    """
    H = pad1_ref.shape[0] - 2
    W = pad1_ref.shape[1] - 2
    C1 = pad1_ref.shape[2]
    C2 = pad2_ref.shape[2]
    C3 = out_ref.shape[1]

    # ---- layer 1: conv(3->64) [BN scale pre-folded] + shift + ReLU ----
    y1 = jnp.dot(p1_ref[0], w1_ref[...], preferred_element_type=jnp.float32)
    y1 = jnp.maximum(y1 + sh1_ref[...], 0.0)
    pad1_ref[...] = _padded_halo(y1.reshape(H, W, C1), pad1_ref.dtype)

    # ---- layer 2: conv(64->64), 9 per-tap accumulating matmuls (K=64) ----
    acc2 = jnp.zeros((H * W, C2), jnp.float32)
    for dh in range(3):
        for dw in range(3):
            tap = pad1_ref[dh:dh + H, dw:dw + W, :].reshape(H * W, C1)
            acc2 = acc2 + jnp.dot(tap.astype(jnp.bfloat16),
                                  w2_ref[dh * 3 + dw],
                                  preferred_element_type=jnp.float32)
    y2 = jnp.maximum(acc2 + sh2_ref[...], 0.0)
    pad2_ref[...] = _padded_halo(y2.reshape(H, W, C2), pad2_ref.dtype)

    # ---- layer 3: conv(64->3) + bias, emitted transposed as (3, H*W) ----
    acc3 = jnp.zeros((C3, H * W), jnp.float32)
    for dh in range(3):
        for dw in range(3):
            tap = pad2_ref[dh:dh + H, dw:dw + W, :].reshape(H * W, C2)
            # (C3, C2) x (H*W, C2) contracting both last dims -> (C3, H*W)
            acc3 = acc3 + lax.dot_general(w3t_ref[dh * 3 + dw],
                                          tap.astype(jnp.bfloat16),
                                          (((1,), (1,)), ((), ())),
                                          preferred_element_type=jnp.float32)
    out_ref[0] = acc3 + b3_ref[...]


def video_enhancement_forward(x_nchw, params):
    """Runs the fused 3-conv model. x_nchw: (N, 3, H, W) -> (N, 3, H, W)."""
    eps = 1e-5
    x = jnp.transpose(x_nchw, (0, 2, 3, 1)).astype(jnp.float32)   # -> NHWC
    N, H, W, Cin = x.shape

    def hwio(w):  # torch OIHW -> HWIO
        return jnp.transpose(w, (2, 3, 1, 0)).astype(jnp.float32)

    def bn_fold(gamma, beta, mean, var, bias):
        scale = gamma / jnp.sqrt(var + eps)
        shift = beta + scale * (bias - mean)
        return scale.astype(jnp.float32), shift.astype(jnp.float32)

    s1, sh1 = bn_fold(params["gamma1"], params["beta1"], params["mean1"],
                      params["var1"], params["b1"])
    s2, sh2 = bn_fold(params["gamma2"], params["beta2"], params["mean2"],
                      params["var2"], params["b2"])

    # Fold BN scale into the conv weights (per output channel).
    w1 = hwio(params["w1"]) * s1                  # (3, 3, 3, 64)
    w2 = hwio(params["w2"]) * s2                  # (3, 3, 64, 64)
    w3 = hwio(params["w3"])                       # (3, 3, 64, 3)
    C1, C2, C3 = w1.shape[3], w2.shape[3], w3.shape[3]

    # Layer-1 im2col in the wrapper: (N, H*W, 9*Cin), tap order (dh, dw, cin).
    # ~27 KB/frame of extra HBM traffic; removes all 3-lane packing in-kernel.
    x_pad = jnp.pad(x, ((0, 0), (1, 1), (1, 1), (0, 0)))
    taps = [x_pad[:, dh:dh + H, dw:dw + W, :]
            for dh in range(3) for dw in range(3)]
    p1 = jnp.concatenate(taps, axis=-1).reshape(N, H * W, 9 * Cin)
    p1 = p1.astype(jnp.bfloat16)

    # bf16 MXU operands (accumulation stays f32 in the kernel).
    w1_r = w1.reshape(9 * Cin, C1).astype(jnp.bfloat16)            # (27, 64)
    w2_r = w2.reshape(9, C1, C2).astype(jnp.bfloat16)              # (9, 64, 64)
    w3_t = jnp.transpose(w3.reshape(9, C2, C3),
                         (0, 2, 1)).astype(jnp.bfloat16)           # (9, 3, 64)

    sh1 = sh1.reshape(1, C1)
    sh2 = sh2.reshape(1, C2)
    b3 = params["b3"].reshape(C3, 1).astype(jnp.float32)

    out_flat = pl.pallas_call(
        _fused_kernel,
        out_shape=jax.ShapeDtypeStruct((N, C3, H * W), jnp.float32),
        grid_spec=pltpu.PrefetchScalarGridSpec(
            num_scalar_prefetch=0,
            grid=(N,),
            in_specs=[
                pl.BlockSpec((1, H * W, 9 * Cin), lambda n: (n, 0, 0)),
                pl.BlockSpec(w1_r.shape, lambda n: (0, 0)),
                pl.BlockSpec(sh1.shape, lambda n: (0, 0)),
                pl.BlockSpec(w2_r.shape, lambda n: (0, 0, 0)),
                pl.BlockSpec(sh2.shape, lambda n: (0, 0)),
                pl.BlockSpec(w3_t.shape, lambda n: (0, 0, 0)),
                pl.BlockSpec(b3.shape, lambda n: (0, 0)),
            ],
            out_specs=pl.BlockSpec((1, C3, H * W), lambda n: (n, 0, 0)),
            scratch_shapes=[
                pltpu.VMEM((H + 2, W + 2, C1), jnp.float32),
                pltpu.VMEM((H + 2, W + 2, C2), jnp.float32),
            ],
        ),
        compiler_params=pltpu.CompilerParams(
            dimension_semantics=("parallel",)),
    )(p1, w1_r, sh1, w2_r, sh2, w3_t, b3)

    return out_flat.reshape(N, C3, H, W)          # already NCHW


def reference_forward(x, params):
    """Plain-JAX f32 reference (inference-mode BN), NCHW."""
    eps = 1e-5

    def conv(h, w, b):
        y = lax.conv_general_dilated(
            h, w, window_strides=(1, 1), padding="SAME",
            dimension_numbers=("NCHW", "OIHW", "NCHW"))
        return y + b.reshape(1, -1, 1, 1)

    def bn(h, gamma, beta, mean, var):
        g = gamma.reshape(1, -1, 1, 1)
        b = beta.reshape(1, -1, 1, 1)
        m = mean.reshape(1, -1, 1, 1)
        v = var.reshape(1, -1, 1, 1)
        return (h - m) / jnp.sqrt(v + eps) * g + b

    h = jax.nn.relu(bn(conv(x, params["w1"], params["b1"]),
                       params["gamma1"], params["beta1"],
                       params["mean1"], params["var1"]))
    h = jax.nn.relu(bn(conv(h, params["w2"], params["b2"]),
                       params["gamma2"], params["beta2"],
                       params["mean2"], params["var2"]))
    return conv(h, params["w3"], params["b3"])


def init_params(key):
    ks = jax.random.split(key, 12)
    p = {
        # conv weights in torch OIHW layout, biases (Cout,)
        "w1": 0.1 * jax.random.normal(ks[0], (64, 3, 3, 3), jnp.float32),
        "b1": 0.05 * jax.random.normal(ks[1], (64,), jnp.float32),
        "w2": 0.05 * jax.random.normal(ks[2], (64, 64, 3, 3), jnp.float32),
        "b2": 0.05 * jax.random.normal(ks[3], (64,), jnp.float32),
        "w3": 0.05 * jax.random.normal(ks[4], (3, 64, 3, 3), jnp.float32),
        "b3": 0.05 * jax.random.normal(ks[5], (3,), jnp.float32),
        # BN params / running stats (non-trivial, deterministic)
        "gamma1": 1.0 + 0.1 * jax.random.normal(ks[6], (64,), jnp.float32),
        "beta1": 0.1 * jax.random.normal(ks[7], (64,), jnp.float32),
        "mean1": 0.05 * jax.random.normal(ks[8], (64,), jnp.float32),
        "var1": 0.5 + jnp.abs(jax.random.normal(ks[9], (64,), jnp.float32)),
        "gamma2": 1.0 + 0.1 * jax.random.normal(ks[10], (64,), jnp.float32),
        "beta2": 0.1 * jax.random.normal(ks[11], (64,), jnp.float32),
        "mean2": jnp.zeros((64,), jnp.float32),
        "var2": jnp.ones((64,), jnp.float32),
    }
    return p


if __name__ == "__main__":
    key = jax.random.PRNGKey(0)
    pkey, xkey = jax.random.split(key)
    params = init_params(pkey)

    # Small deterministic input consistent with the module: N=2, C=3, H=W=16.
    x = jax.random.normal(xkey, (2, 3, 16, 16), jnp.float32)

    out = jax.jit(video_enhancement_forward)(x, params)
    out = jax.block_until_ready(out)

    ref = reference_forward(x, params)
    assert out.shape == ref.shape == (2, 3, 16, 16)
    # bf16 MXU operands (f32 accumulation) against the f32 reference.
    assert jnp.allclose(out, ref, atol=5e-2, rtol=5e-2), (
        float(jnp.max(jnp.abs(out - ref))))

    print("KERNEL_OK")
</pallas_src>

<mosaic_0001>
module attributes {stable_mosaic.version = 11 : i64} {
  func.func @_fused_kernel(%arg0: i32, %arg1: memref<1x256x27xbf16, #tpu.memory_space<vmem>>, %arg2: memref<27x64xbf16, #tpu.memory_space<vmem>>, %arg3: memref<1x64xf32, #tpu.memory_space<vmem>>, %arg4: memref<9x64x64xbf16, #tpu.memory_space<vmem>>, %arg5: memref<1x64xf32, #tpu.memory_space<vmem>>, %arg6: memref<9x3x64xbf16, #tpu.memory_space<vmem>>, %arg7: memref<3x1xf32, #tpu.memory_space<vmem>>, %arg8: memref<1x3x256xf32, #tpu.memory_space<vmem>>, %arg9: memref<18x18x64xf32, #tpu.memory_space<vmem>>, %arg10: memref<18x18x64xf32, #tpu.memory_space<vmem>>) attributes {dimension_semantics = [#tpu.dimension_semantics<parallel>], iteration_bounds = array<i64: 2>, scalar_prefetch = 0 : i64, scratch_operands = 2 : i64, tpu.core_type = #tpu.core_type<tc>, window_params = [{transform_indices = @transform_0, window_bounds = array<i64: 1, 256, 27>}, {pipeline_mode = #tpu.pipeline_mode<synchronous>, transform_indices = @transform_1, window_bounds = array<i64: 27, 64>}, {pipeline_mode = #tpu.pipeline_mode<synchronous>, transform_indices = @transform_2, window_bounds = array<i64: 1, 64>}, {pipeline_mode = #tpu.pipeline_mode<synchronous>, transform_indices = @transform_3, window_bounds = array<i64: 9, 64, 64>}, {pipeline_mode = #tpu.pipeline_mode<synchronous>, transform_indices = @transform_4, window_bounds = array<i64: 1, 64>}, {pipeline_mode = #tpu.pipeline_mode<synchronous>, transform_indices = @transform_5, window_bounds = array<i64: 9, 3, 64>}, {pipeline_mode = #tpu.pipeline_mode<synchronous>, transform_indices = @transform_6, window_bounds = array<i64: 3, 1>}, {transform_indices = @transform_7, window_bounds = array<i64: 1, 3, 256>}]} {
    %c0 = arith.constant 0 : index
    %c0_0 = arith.constant 0 : index
    %c0_1 = arith.constant 0 : index
    %0 = vector.load %arg1[%c0, %c0_0, %c0_1] : memref<1x256x27xbf16, #tpu.memory_space<vmem>>, vector<1x256x27xbf16>
    %1 = vector.shape_cast %0 : vector<1x256x27xbf16> to vector<256x27xbf16>
    %c0_2 = arith.constant 0 : index
    %c0_3 = arith.constant 0 : index
    %2 = vector.load %arg2[%c0_2, %c0_3] : memref<27x64xbf16, #tpu.memory_space<vmem>>, vector<27x64xbf16>
    %cst = arith.constant dense<0.000000e+00> : vector<256x64xf32>
    %3 = tpu.matmul %1, %2, %cst {dimension_numbers = #tpu.dot_dimension_numbers<[1], [0], [0], [1], [0, 0, 1, 1], [], []>} : vector<256x27xbf16>, vector<27x64xbf16>, vector<256x64xf32> -> vector<256x64xf32>
    %c0_4 = arith.constant 0 : index
    %c0_5 = arith.constant 0 : index
    %4 = vector.load %arg3[%c0_4, %c0_5] : memref<1x64xf32, #tpu.memory_space<vmem>>, vector<1x64xf32>
    %5 = vector.broadcast %4 : vector<1x64xf32> to vector<256x64xf32>
    %6 = arith.addf %3, %5 : vector<256x64xf32>
    %cst_6 = arith.constant 0.000000e+00 : f32
    %7 = vector.broadcast %cst_6 : f32 to vector<256x64xf32>
    %8 = arith.maximumf %6, %7 : vector<256x64xf32>
    %9 = vector.shape_cast %8 : vector<256x64xf32> to vector<16x16x64xf32>
    %cst_7 = arith.constant 0.000000e+00 : f32
    %10 = vector.broadcast %cst_7 : f32 to vector<1x16x64xf32>
    %11 = tpu.concatenate %10, %9, %10 in 0 : vector<1x16x64xf32>, vector<16x16x64xf32>, vector<1x16x64xf32> -> vector<18x16x64xf32>
    %cst_8 = arith.constant 0.000000e+00 : f32
    %12 = vector.broadcast %cst_8 : f32 to vector<18x1x64xf32>
    %13 = tpu.concatenate %12, %11, %12 in 1 : vector<18x1x64xf32>, vector<18x16x64xf32>, vector<18x1x64xf32> -> vector<18x18x64xf32>
    %c0_9 = arith.constant 0 : index
    %c0_10 = arith.constant 0 : index
    %c0_11 = arith.constant 0 : index
    %14 = vector.load %arg9[%c0_9, %c0_10, %c0_11] : memref<18x18x64xf32, #tpu.memory_space<vmem>>, vector<18x18x64xf32>
    tpu.vector_store %arg9[%c0_9, %c0_10, %c0_11], %13 {strides = array<i32>} : memref<18x18x64xf32, #tpu.memory_space<vmem>>, vector<18x18x64xf32>,
    %cst_12 = arith.constant 0.000000e+00 : f32
    %15 = vector.broadcast %cst_12 : f32 to vector<256x64xf32>
    %c0_13 = arith.constant 0 : index
    %c0_14 = arith.constant 0 : index
    %c0_15 = arith.constant 0 : index
    %16 = vector.load %arg9[%c0_13, %c0_14, %c0_15] : memref<18x18x64xf32, #tpu.memory_space<vmem>>, vector<16x16x64xf32>
    %17 = vector.shape_cast %16 : vector<16x16x64xf32> to vector<256x64xf32>
    %18 = arith.truncf %17 : vector<256x64xf32> to vector<256x64xbf16>
    %c0_16 = arith.constant 0 : index
    %c0_17 = arith.constant 0 : index
    %c0_18 = arith.constant 0 : index
    %19 = vector.load %arg4[%c0_16, %c0_17, %c0_18] : memref<9x64x64xbf16, #tpu.memory_space<vmem>>, vector<1x64x64xbf16>
    %20 = vector.shape_cast %19 : vector<1x64x64xbf16> to vector<64x64xbf16>
    %cst_19 = arith.constant dense<0.000000e+00> : vector<256x64xf32>
    %21 = tpu.matmul %18, %20, %cst_19 {dimension_numbers = #tpu.dot_dimension_numbers<[1], [0], [0], [1], [0, 0, 1, 1], [], []>} : vector<256x64xbf16>, vector<64x64xbf16>, vector<256x64xf32> -> vector<256x64xf32>
    %22 = arith.addf %15, %21 : vector<256x64xf32>
    %c0_20 = arith.constant 0 : index
    %c1 = arith.constant 1 : index
    %c0_21 = arith.constant 0 : index
    %23 = vector.load %arg9[%c0_20, %c1, %c0_21] : memref<18x18x64xf32, #tpu.memory_space<vmem>>, vector<16x16x64xf32>
    %24 = vector.shape_cast %23 : vector<16x16x64xf32> to vector<256x64xf32>
    %25 = arith.truncf %24 : vector<256x64xf32> to vector<256x64xbf16>
    %c1_22 = arith.constant 1 : index
    %c0_23 = arith.constant 0 : index
    %c0_24 = arith.constant 0 : index
    %26 = vector.load %arg4[%c1_22, %c0_23, %c0_24] : memref<9x64x64xbf16, #tpu.memory_space<vmem>>, vector<1x64x64xbf16>
    %27 = vector.shape_cast %26 : vector<1x64x64xbf16> to vector<64x64xbf16>
    %cst_25 = arith.constant dense<0.000000e+00> : vector<256x64xf32>
    %28 = tpu.matmul %25, %27, %cst_25 {dimension_numbers = #tpu.dot_dimension_numbers<[1], [0], [0], [1], [0, 0, 1, 1], [], []>} : vector<256x64xbf16>, vector<64x64xbf16>, vector<256x64xf32> -> vector<256x64xf32>
    %29 = arith.addf %22, %28 : vector<256x64xf32>
    %c0_26 = arith.constant 0 : index
    %c2 = arith.constant 2 : index
    %c0_27 = arith.constant 0 : index
    %30 = vector.load %arg9[%c0_26, %c2, %c0_27] : memref<18x18x64xf32, #tpu.memory_space<vmem>>, vector<16x16x64xf32>
    %31 = vector.shape_cast %30 : vector<16x16x64xf32> to vector<256x64xf32>
    %32 = arith.truncf %31 : vector<256x64xf32> to vector<256x64xbf16>
    %c2_28 = arith.constant 2 : index
    %c0_29 = arith.constant 0 : index
    %c0_30 = arith.constant 0 : index
    %33 = vector.load %arg4[%c2_28, %c0_29, %c0_30] : memref<9x64x64xbf16, #tpu.memory_space<vmem>>, vector<1x64x64xbf16>
    %34 = vector.shape_cast %33 : vector<1x64x64xbf16> to vector<64x64xbf16>
    %cst_31 = arith.constant dense<0.000000e+00> : vector<256x64xf32>
    %35 = tpu.matmul %32, %34, %cst_31 {dimension_numbers = #tpu.dot_dimension_numbers<[1], [0], [0], [1], [0, 0, 1, 1], [], []>} : vector<256x64xbf16>, vector<64x64xbf16>, vector<256x64xf32> -> vector<256x64xf32>
    %36 = arith.addf %29, %35 : vector<256x64xf32>
    %c1_32 = arith.constant 1 : index
    %c0_33 = arith.constant 0 : index
    %c0_34 = arith.constant 0 : index
    %37 = vector.load %arg9[%c1_32, %c0_33, %c0_34] : memref<18x18x64xf32, #tpu.memory_space<vmem>>, vector<16x16x64xf32>
    %38 = vector.shape_cast %37 : vector<16x16x64xf32> to vector<256x64xf32>
    %39 = arith.truncf %38 : vector<256x64xf32> to vector<256x64xbf16>
    %c3 = arith.constant 3 : index
    %c0_35 = arith.constant 0 : index
    %c0_36 = arith.constant 0 : index
    %40 = vector.load %arg4[%c3, %c0_35, %c0_36] : memref<9x64x64xbf16, #tpu.memory_space<vmem>>, vector<1x64x64xbf16>
    %41 = vector.shape_cast %40 : vector<1x64x64xbf16> to vector<64x64xbf16>
    %cst_37 = arith.constant dense<0.000000e+00> : vector<256x64xf32>
    %42 = tpu.matmul %39, %41, %cst_37 {dimension_numbers = #tpu.dot_dimension_numbers<[1], [0], [0], [1], [0, 0, 1, 1], [], []>} : vector<256x64xbf16>, vector<64x64xbf16>, vector<256x64xf32> -> vector<256x64xf32>
    %43 = arith.addf %36, %42 : vector<256x64xf32>
    %c1_38 = arith.constant 1 : index
    %c1_39 = arith.constant 1 : index
    %c0_40 = arith.constant 0 : index
    %44 = vector.load %arg9[%c1_38, %c1_39, %c0_40] : memref<18x18x64xf32, #tpu.memory_space<vmem>>, vector<16x16x64xf32>
    %45 = vector.shape_cast %44 : vector<16x16x64xf32> to vector<256x64xf32>
    %46 = arith.truncf %45 : vector<256x64xf32> to vector<256x64xbf16>
    %c4 = arith.constant 4 : index
    %c0_41 = arith.constant 0 : index
    %c0_42 = arith.constant 0 : index
    %47 = vector.load %arg4[%c4, %c0_41, %c0_42] : memref<9x64x64xbf16, #tpu.memory_space<vmem>>, vector<1x64x64xbf16>
    %48 = vector.shape_cast %47 : vector<1x64x64xbf16> to vector<64x64xbf16>
    %cst_43 = arith.constant dense<0.000000e+00> : vector<256x64xf32>
    %49 = tpu.matmul %46, %48, %cst_43 {dimension_numbers = #tpu.dot_dimension_numbers<[1], [0], [0], [1], [0, 0, 1, 1], [], []>} : vector<256x64xbf16>, vector<64x64xbf16>, vector<256x64xf32> -> vector<256x64xf32>
    %50 = arith.addf %43, %49 : vector<256x64xf32>
    %c1_44 = arith.constant 1 : index
    %c2_45 = arith.constant 2 : index
    %c0_46 = arith.constant 0 : index
    %51 = vector.load %arg9[%c1_44, %c2_45, %c0_46] : memref<18x18x64xf32, #tpu.memory_space<vmem>>, vector<16x16x64xf32>
    %52 = vector.shape_cast %51 : vector<16x16x64xf32> to vector<256x64xf32>
    %53 = arith.truncf %52 : vector<256x64xf32> to vector<256x64xbf16>
    %c5 = arith.constant 5 : index
    %c0_47 = arith.constant 0 : index
    %c0_48 = arith.constant 0 : index
    %54 = vector.load %arg4[%c5, %c0_47, %c0_48] : memref<9x64x64xbf16, #tpu.memory_space<vmem>>, vector<1x64x64xbf16>
    %55 = vector.shape_cast %54 : vector<1x64x64xbf16> to vector<64x64xbf16>
    %cst_49 = arith.constant dense<0.000000e+00> : vector<256x64xf32>
    %56 = tpu.matmul %53, %55, %cst_49 {dimension_numbers = #tpu.dot_dimension_numbers<[1], [0], [0], [1], [0, 0, 1, 1], [], []>} : vector<256x64xbf16>, vector<64x64xbf16>, vector<256x64xf32> -> vector<256x64xf32>
    %57 = arith.addf %50, %56 : vector<256x64xf32>
    %c2_50 = arith.constant 2 : index
    %c0_51 = arith.constant 0 : index
    %c0_52 = arith.constant 0 : index
    %58 = vector.load %arg9[%c2_50, %c0_51, %c0_52] : memref<18x18x64xf32, #tpu.memory_space<vmem>>, vector<16x16x64xf32>
    %59 = vector.shape_cast %58 : vector<16x16x64xf32> to vector<256x64xf32>
    %60 = arith.truncf %59 : vector<256x64xf32> to vector<256x64xbf16>
    %c6 = arith.constant 6 : index
    %c0_53 = arith.constant 0 : index
    %c0_54 = arith.constant 0 : index
    %61 = vector.load %arg4[%c6, %c0_53, %c0_54] : memref<9x64x64xbf16, #tpu.memory_space<vmem>>, vector<1x64x64xbf16>
    %62 = vector.shape_cast %61 : vector<1x64x64xbf16> to vector<64x64xbf16>
    %cst_55 = arith.constant dense<0.000000e+00> : vector<256x64xf32>
    %63 = tpu.matmul %60, %62, %cst_55 {dimension_numbers = #tpu.dot_dimension_numbers<[1], [0], [0], [1], [0, 0, 1, 1], [], []>} : vector<256x64xbf16>, vector<64x64xbf16>, vector<256x64xf32> -> vector<256x64xf32>
    %64 = arith.addf %57, %63 : vector<256x64xf32>
    %c2_56 = arith.constant 2 : index
    %c1_57 = arith.constant 1 : index
    %c0_58 = arith.constant 0 : index
    %65 = vector.load %arg9[%c2_56, %c1_57, %c0_58] : memref<18x18x64xf32, #tpu.memory_space<vmem>>, vector<16x16x64xf32>
    %66 = vector.shape_cast %65 : vector<16x16x64xf32> to vector<256x64xf32>
    %67 = arith.truncf %66 : vector<256x64xf32> to vector<256x64xbf16>
    %c7 = arith.constant 7 : index
    %c0_59 = arith.constant 0 : index
    %c0_60 = arith.constant 0 : index
    %68 = vector.load %arg4[%c7, %c0_59, %c0_60] : memref<9x64x64xbf16, #tpu.memory_space<vmem>>, vector<1x64x64xbf16>
    %69 = vector.shape_cast %68 : vector<1x64x64xbf16> to vector<64x64xbf16>
    %cst_61 = arith.constant dense<0.000000e+00> : vector<256x64xf32>
    %70 = tpu.matmul %67, %69, %cst_61 {dimension_numbers = #tpu.dot_dimension_numbers<[1], [0], [0], [1], [0, 0, 1, 1], [], []>} : vector<256x64xbf16>, vector<64x64xbf16>, vector<256x64xf32> -> vector<256x64xf32>
    %71 = arith.addf %64, %70 : vector<256x64xf32>
    %c2_62 = arith.constant 2 : index
    %c2_63 = arith.constant 2 : index
    %c0_64 = arith.constant 0 : index
    %72 = vector.load %arg9[%c2_62, %c2_63, %c0_64] : memref<18x18x64xf32, #tpu.memory_space<vmem>>, vector<16x16x64xf32>
    %73 = vector.shape_cast %72 : vector<16x16x64xf32> to vector<256x64xf32>
    %74 = arith.truncf %73 : vector<256x64xf32> to vector<256x64xbf16>
    %c8 = arith.constant 8 : index
    %c0_65 = arith.constant 0 : index
    %c0_66 = arith.constant 0 : index
    %75 = vector.load %arg4[%c8, %c0_65, %c0_66] : memref<9x64x64xbf16, #tpu.memory_space<vmem>>, vector<1x64x64xbf16>
    %76 = vector.shape_cast %75 : vector<1x64x64xbf16> to vector<64x64xbf16>
    %cst_67 = arith.constant dense<0.000000e+00> : vector<256x64xf32>
    %77 = tpu.matmul %74, %76, %cst_67 {dimension_numbers = #tpu.dot_dimension_numbers<[1], [0], [0], [1], [0, 0, 1, 1], [], []>} : vector<256x64xbf16>, vector<64x64xbf16>, vector<256x64xf32> -> vector<256x64xf32>
    %78 = arith.addf %71, %77 : vector<256x64xf32>
    %c0_68 = arith.constant 0 : index
    %c0_69 = arith.constant 0 : index
    %79 = vector.load %arg5[%c0_68, %c0_69] : memref<1x64xf32, #tpu.memory_space<vmem>>, vector<1x64xf32>
    %80 = vector.broadcast %79 : vector<1x64xf32> to vector<256x64xf32>
    %81 = arith.addf %78, %80 : vector<256x64xf32>
    %cst_70 = arith.constant 0.000000e+00 : f32
    %82 = vector.broadcast %cst_70 : f32 to vector<256x64xf32>
    %83 = arith.maximumf %81, %82 : vector<256x64xf32>
    %84 = vector.shape_cast %83 : vector<256x64xf32> to vector<16x16x64xf32>
    %cst_71 = arith.constant 0.000000e+00 : f32
    %85 = vector.broadcast %cst_71 : f32 to vector<1x16x64xf32>
    %86 = tpu.concatenate %85, %84, %85 in 0 : vector<1x16x64xf32>, vector<16x16x64xf32>, vector<1x16x64xf32> -> vector<18x16x64xf32>
    %cst_72 = arith.constant 0.000000e+00 : f32
    %87 = vector.broadcast %cst_72 : f32 to vector<18x1x64xf32>
    %88 = tpu.concatenate %87, %86, %87 in 1 : vector<18x1x64xf32>, vector<18x16x64xf32>, vector<18x1x64xf32> -> vector<18x18x64xf32>
    %c0_73 = arith.constant 0 : index
    %c0_74 = arith.constant 0 : index
    %c0_75 = arith.constant 0 : index
    %89 = vector.load %arg10[%c0_73, %c0_74, %c0_75] : memref<18x18x64xf32, #tpu.memory_space<vmem>>, vector<18x18x64xf32>
    tpu.vector_store %arg10[%c0_73, %c0_74, %c0_75], %88 {strides = array<i32>} : memref<18x18x64xf32, #tpu.memory_space<vmem>>, vector<18x18x64xf32>,
    %cst_76 = arith.constant 0.000000e+00 : f32
    %90 = vector.broadcast %cst_76 : f32 to vector<3x256xf32>
    %c0_77 = arith.constant 0 : index
    %c0_78 = arith.constant 0 : index
    %c0_79 = arith.constant 0 : index
    %91 = vector.load %arg10[%c0_77, %c0_78, %c0_79] : memref<18x18x64xf32, #tpu.memory_space<vmem>>, vector<16x16x64xf32>
    %92 = vector.shape_cast %91 : vector<16x16x64xf32> to vector<256x64xf32>
    %c0_80 = arith.constant 0 : index
    %c0_81 = arith.constant 0 : index
    %c0_82 = arith.constant 0 : index
    %93 = vector.load %arg6[%c0_80, %c0_81, %c0_82] : memref<9x3x64xbf16, #tpu.memory_space<vmem>>, vector<1x3x64xbf16>
    %94 = vector.shape_cast %93 : vector<1x3x64xbf16> to vector<3x64xbf16>
    %95 = arith.truncf %92 : vector<256x64xf32> to vector<256x64xbf16>
    %cst_83 = arith.constant dense<0.000000e+00> : vector<3x256xf32>
    %96 = tpu.matmul %94, %95, %cst_83 {dimension_numbers = #tpu.dot_dimension_numbers<[1], [1], [0], [0], [0, 0, 1, 0], [], []>} : vector<3x64xbf16>, vector<256x64xbf16>, vector<3x256xf32> -> vector<3x256xf32>
    %97 = arith.addf %90, %96 : vector<3x256xf32>
    %c0_84 = arith.constant 0 : index
    %c1_85 = arith.constant 1 : index
    %c0_86 = arith.constant 0 : index
    %98 = vector.load %arg10[%c0_84, %c1_85, %c0_86] : memref<18x18x64xf32, #tpu.memory_space<vmem>>, vector<16x16x64xf32>
    %99 = vector.shape_cast %98 : vector<16x16x64xf32> to vector<256x64xf32>
    %c1_87 = arith.constant 1 : index
    %c0_88 = arith.constant 0 : index
    %c0_89 = arith.constant 0 : index
    %100 = vector.load %arg6[%c1_87, %c0_88, %c0_89] : memref<9x3x64xbf16, #tpu.memory_space<vmem>>, vector<1x3x64xbf16>
    %101 = vector.shape_cast %100 : vector<1x3x64xbf16> to vector<3x64xbf16>
    %102 = arith.truncf %99 : vector<256x64xf32> to vector<256x64xbf16>
    %cst_90 = arith.constant dense<0.000000e+00> : vector<3x256xf32>
    %103 = tpu.matmul %101, %102, %cst_90 {dimension_numbers = #tpu.dot_dimension_numbers<[1], [1], [0], [0], [0, 0, 1, 0], [], []>} : vector<3x64xbf16>, vector<256x64xbf16>, vector<3x256xf32> -> vector<3x256xf32>
    %104 = arith.addf %97, %103 : vector<3x256xf32>
    %c0_91 = arith.constant 0 : index
    %c2_92 = arith.constant 2 : index
    %c0_93 = arith.constant 0 : index
    %105 = vector.load %arg10[%c0_91, %c2_92, %c0_93] : memref<18x18x64xf32, #tpu.memory_space<vmem>>, vector<16x16x64xf32>
    %106 = vector.shape_cast %105 : vector<16x16x64xf32> to vector<256x64xf32>
    %c2_94 = arith.constant 2 : index
    %c0_95 = arith.constant 0 : index
    %c0_96 = arith.constant 0 : index
    %107 = vector.load %arg6[%c2_94, %c0_95, %c0_96] : memref<9x3x64xbf16, #tpu.memory_space<vmem>>, vector<1x3x64xbf16>
    %108 = vector.shape_cast %107 : vector<1x3x64xbf16> to vector<3x64xbf16>
    %109 = arith.truncf %106 : vector<256x64xf32> to vector<256x64xbf16>
    %cst_97 = arith.constant dense<0.000000e+00> : vector<3x256xf32>
    %110 = tpu.matmul %108, %109, %cst_97 {dimension_numbers = #tpu.dot_dimension_numbers<[1], [1], [0], [0], [0, 0, 1, 0], [], []>} : vector<3x64xbf16>, vector<256x64xbf16>, vector<3x256xf32> -> vector<3x256xf32>
    %111 = arith.addf %104, %110 : vector<3x256xf32>
    %c1_98 = arith.constant 1 : index
    %c0_99 = arith.constant 0 : index
    %c0_100 = arith.constant 0 : index
    %112 = vector.load %arg10[%c1_98, %c0_99, %c0_100] : memref<18x18x64xf32, #tpu.memory_space<vmem>>, vector<16x16x64xf32>
    %113 = vector.shape_cast %112 : vector<16x16x64xf32> to vector<256x64xf32>
    %c3_101 = arith.constant 3 : index
    %c0_102 = arith.constant 0 : index
    %c0_103 = arith.constant 0 : index
    %114 = vector.load %arg6[%c3_101, %c0_102, %c0_103] : memref<9x3x64xbf16, #tpu.memory_space<vmem>>, vector<1x3x64xbf16>
    %115 = vector.shape_cast %114 : vector<1x3x64xbf16> to vector<3x64xbf16>
    %116 = arith.truncf %113 : vector<256x64xf32> to vector<256x64xbf16>
    %cst_104 = arith.constant dense<0.000000e+00> : vector<3x256xf32>
    %117 = tpu.matmul %115, %116, %cst_104 {dimension_numbers = #tpu.dot_dimension_numbers<[1], [1], [0], [0], [0, 0, 1, 0], [], []>} : vector<3x64xbf16>, vector<256x64xbf16>, vector<3x256xf32> -> vector<3x256xf32>
    %118 = arith.addf %111, %117 : vector<3x256xf32>
    %c1_105 = arith.constant 1 : index
    %c1_106 = arith.constant 1 : index
    %c0_107 = arith.constant 0 : index
    %119 = vector.load %arg10[%c1_105, %c1_106, %c0_107] : memref<18x18x64xf32, #tpu.memory_space<vmem>>, vector<16x16x64xf32>
    %120 = vector.shape_cast %119 : vector<16x16x64xf32> to vector<256x64xf32>
    %c4_108 = arith.constant 4 : index
    %c0_109 = arith.constant 0 : index
    %c0_110 = arith.constant 0 : index
    %121 = vector.load %arg6[%c4_108, %c0_109, %c0_110] : memref<9x3x64xbf16, #tpu.memory_space<vmem>>, vector<1x3x64xbf16>
    %122 = vector.shape_cast %121 : vector<1x3x64xbf16> to vector<3x64xbf16>
    %123 = arith.truncf %120 : vector<256x64xf32> to vector<256x64xbf16>
    %cst_111 = arith.constant dense<0.000000e+00> : vector<3x256xf32>
    %124 = tpu.matmul %122, %123, %cst_111 {dimension_numbers = #tpu.dot_dimension_numbers<[1], [1], [0], [0], [0, 0, 1, 0], [], []>} : vector<3x64xbf16>, vector<256x64xbf16>, vector<3x256xf32> -> vector<3x256xf32>
    %125 = arith.addf %118, %124 : vector<3x256xf32>
    %c1_112 = arith.constant 1 : index
    %c2_113 = arith.constant 2 : index
    %c0_114 = arith.constant 0 : index
    %126 = vector.load %arg10[%c1_112, %c2_113, %c0_114] : memref<18x18x64xf32, #tpu.memory_space<vmem>>, vector<16x16x64xf32>
    %127 = vector.shape_cast %126 : vector<16x16x64xf32> to vector<256x64xf32>
    %c5_115 = arith.constant 5 : index
    %c0_116 = arith.constant 0 : index
    %c0_117 = arith.constant 0 : index
    %128 = vector.load %arg6[%c5_115, %c0_116, %c0_117] : memref<9x3x64xbf16, #tpu.memory_space<vmem>>, vector<1x3x64xbf16>
    %129 = vector.shape_cast %128 : vector<1x3x64xbf16> to vector<3x64xbf16>
    %130 = arith.truncf %127 : vector<256x64xf32> to vector<256x64xbf16>
    %cst_118 = arith.constant dense<0.000000e+00> : vector<3x256xf32>
    %131 = tpu.matmul %129, %130, %cst_118 {dimension_numbers = #tpu.dot_dimension_numbers<[1], [1], [0], [0], [0, 0, 1, 0], [], []>} : vector<3x64xbf16>, vector<256x64xbf16>, vector<3x256xf32> -> vector<3x256xf32>
    %132 = arith.addf %125, %131 : vector<3x256xf32>
    %c2_119 = arith.constant 2 : index
    %c0_120 = arith.constant 0 : index
    %c0_121 = arith.constant 0 : index
    %133 = vector.load %arg10[%c2_119, %c0_120, %c0_121] : memref<18x18x64xf32, #tpu.memory_space<vmem>>, vector<16x16x64xf32>
    %134 = vector.shape_cast %133 : vector<16x16x64xf32> to vector<256x64xf32>
    %c6_122 = arith.constant 6 : index
    %c0_123 = arith.constant 0 : index
    %c0_124 = arith.constant 0 : index
    %135 = vector.load %arg6[%c6_122, %c0_123, %c0_124] : memref<9x3x64xbf16, #tpu.memory_space<vmem>>, vector<1x3x64xbf16>
    %136 = vector.shape_cast %135 : vector<1x3x64xbf16> to vector<3x64xbf16>
    %137 = arith.truncf %134 : vector<256x64xf32> to vector<256x64xbf16>
    %cst_125 = arith.constant dense<0.000000e+00> : vector<3x256xf32>
    %138 = tpu.matmul %136, %137, %cst_125 {dimension_numbers = #tpu.dot_dimension_numbers<[1], [1], [0], [0], [0, 0, 1, 0], [], []>} : vector<3x64xbf16>, vector<256x64xbf16>, vector<3x256xf32> -> vector<3x256xf32>
    %139 = arith.addf %132, %138 : vector<3x256xf32>
    %c2_126 = arith.constant 2 : index
    %c1_127 = arith.constant 1 : index
    %c0_128 = arith.constant 0 : index
    %140 = vector.load %arg10[%c2_126, %c1_127, %c0_128] : memref<18x18x64xf32, #tpu.memory_space<vmem>>, vector<16x16x64xf32>
    %141 = vector.shape_cast %140 : vector<16x16x64xf32> to vector<256x64xf32>
    %c7_129 = arith.constant 7 : index
    %c0_130 = arith.constant 0 : index
    %c0_131 = arith.constant 0 : index
    %142 = vector.load %arg6[%c7_129, %c0_130, %c0_131] : memref<9x3x64xbf16, #tpu.memory_space<vmem>>, vector<1x3x64xbf16>
    %143 = vector.shape_cast %142 : vector<1x3x64xbf16> to vector<3x64xbf16>
    %144 = arith.truncf %141 : vector<256x64xf32> to vector<256x64xbf16>
    %cst_132 = arith.constant dense<0.000000e+00> : vector<3x256xf32>
    %145 = tpu.matmul %143, %144, %cst_132 {dimension_numbers = #tpu.dot_dimension_numbers<[1], [1], [0], [0], [0, 0, 1, 0], [], []>} : vector<3x64xbf16>, vector<256x64xbf16>, vector<3x256xf32> -> vector<3x256xf32>
    %146 = arith.addf %139, %145 : vector<3x256xf32>
    %c2_133 = arith.constant 2 : index
    %c2_134 = arith.constant 2 : index
    %c0_135 = arith.constant 0 : index
    %147 = vector.load %arg10[%c2_133, %c2_134, %c0_135] : memref<18x18x64xf32, #tpu.memory_space<vmem>>, vector<16x16x64xf32>
    %148 = vector.shape_cast %147 : vector<16x16x64xf32> to vector<256x64xf32>
    %c8_136 = arith.constant 8 : index
    %c0_137 = arith.constant 0 : index
    %c0_138 = arith.constant 0 : index
    %149 = vector.load %arg6[%c8_136, %c0_137, %c0_138] : memref<9x3x64xbf16, #tpu.memory_space<vmem>>, vector<1x3x64xbf16>
    %150 = vector.shape_cast %149 : vector<1x3x64xbf16> to vector<3x64xbf16>
    %151 = arith.truncf %148 : vector<256x64xf32> to vector<256x64xbf16>
    %cst_139 = arith.constant dense<0.000000e+00> : vector<3x256xf32>
    %152 = tpu.matmul %150, %151, %cst_139 {dimension_numbers = #tpu.dot_dimension_numbers<[1], [1], [0], [0], [0, 0, 1, 0], [], []>} : vector<3x64xbf16>, vector<256x64xbf16>, vector<3x256xf32> -> vector<3x256xf32>
    %153 = arith.addf %146, %152 : vector<3x256xf32>
    %c0_140 = arith.constant 0 : index
    %c0_141 = arith.constant 0 : index
    %154 = vector.load %arg7[%c0_140, %c0_141] : memref<3x1xf32, #tpu.memory_space<vmem>>, vector<3x1xf32>
    %155 = vector.broadcast %154 : vector<3x1xf32> to vector<3x256xf32>
    %156 = arith.addf %153, %155 : vector<3x256xf32>
    %c0_142 = arith.constant 0 : index
    %c0_143 = arith.constant 0 : index
    %c0_144 = arith.constant 0 : index
    %157 = vector.load %arg8[%c0_142, %c0_143, %c0_144] : memref<1x3x256xf32, #tpu.memory_space<vmem>>, vector<1x3x256xf32>
    %158 = vector.shape_cast %157 : vector<1x3x256xf32> to vector<3x256xf32>
    %159 = vector.shape_cast %156 : vector<3x256xf32> to vector<1x3x256xf32>
    tpu.vector_store %arg8[%c0_142, %c0_143, %c0_144], %159 {strides = array<i32>} : memref<1x3x256xf32, #tpu.memory_space<vmem>>, vector<1x3x256xf32>,
    return
  }
  func.func @transform_0(%arg0: i32) -> (i32, i32, i32) {
    %c0_i32 = arith.constant 0 : i32
    %c0_i32_0 = arith.constant 0 : i32
    %c0_i32_1 = arith.constant 0 : i32
    return %arg0, %c0_i32, %c0_i32_0 : i32, i32, i32
  }
  func.func @transform_1(%arg0: i32) -> (i32, i32) {
    %c0_i32 = arith.constant 0 : i32
    %c0_i32_0 = arith.constant 0 : i32
    %c0_i32_1 = arith.constant 0 : i32
    return %c0_i32, %c0_i32_0 : i32, i32
  }
  func.func @transform_2(%arg0: i32) -> (i32, i32) {
    %c0_i32 = arith.constant 0 : i32
    %c0_i32_0 = arith.constant 0 : i32
    %c0_i32_1 = arith.constant 0 : i32
    return %c0_i32, %c0_i32_0 : i32, i32
  }
  func.func @transform_3(%arg0: i32) -> (i32, i32, i32) {
    %c0_i32 = arith.constant 0 : i32
    %c0_i32_0 = arith.constant 0 : i32
    %c0_i32_1 = arith.constant 0 : i32
    %c0_i32_2 = arith.constant 0 : i32
    return %c0_i32, %c0_i32_0, %c0_i32_1 : i32, i32, i32
  }
  func.func @transform_4(%arg0: i32) -> (i32, i32) {
    %c0_i32 = arith.constant 0 : i32
    %c0_i32_0 = arith.constant 0 : i32
    %c0_i32_1 = arith.constant 0 : i32
    return %c0_i32, %c0_i32_0 : i32, i32
  }
  func.func @transform_5(%arg0: i32) -> (i32, i32, i32) {
    %c0_i32 = arith.constant 0 : i32
    %c0_i32_0 = arith.constant 0 : i32
    %c0_i32_1 = arith.constant 0 : i32
    %c0_i32_2 = arith.constant 0 : i32
    return %c0_i32, %c0_i32_0, %c0_i32_1 : i32, i32, i32
  }
  func.func @transform_6(%arg0: i32) -> (i32, i32) {
    %c0_i32 = arith.constant 0 : i32
    %c0_i32_0 = arith.constant 0 : i32
    %c0_i32_1 = arith.constant 0 : i32
    return %c0_i32, %c0_i32_0 : i32, i32
  }
  func.func @transform_7(%arg0: i32) -> (i32, i32, i32) {
    %c0_i32 = arith.constant 0 : i32
    %c0_i32_0 = arith.constant 0 : i32
    %c0_i32_1 = arith.constant 0 : i32
    return %arg0, %c0_i32, %c0_i32_0 : i32, i32, i32
  }
}

</mosaic_0001>

<llo_original>
// kernel: video_enhancement_forward.1
$region0: #{video_enhancement_forward.1}
  #allocation0 [shape = 'u32[]', space=smem, size = 0x4, offset = 0x4, fixed_abs, tag = 'smem constant byte address 0x4 - core index']
  #allocation1 [shape = 'u32[144,128]{1,0:T(1,128)}', space=vmem, size = 0x12000, scoped, tag = 'internal scratch']
  #allocation2 [shape = 'f32[18,18,64]{2,1,0:T(8,128)}', space=vmem, size = 0x36000, scoped, tag = 'scratch operand']
  #allocation3 [shape = 'f32[18,18,64]{2,1,0:T(8,128)}', space=vmem, size = 0x36000, scoped, tag = 'scratch operand']
  %s0 = inlined_call_operand.vmem [shape: bf16[2,256,27], index: 0, kind: input, shape index: {}]
  %s1 = inlined_call_operand.vmem [shape: bf16[27,64], index: 1, kind: input, shape index: {}]
  %s2 = inlined_call_operand.vmem [shape: f32[1,64], index: 2, kind: input, shape index: {}]
  %s3 = inlined_call_operand.vmem [shape: bf16[9,64,64], index: 3, kind: input, shape index: {}]
  %s4 = inlined_call_operand.vmem [shape: f32[1,64], index: 4, kind: input, shape index: {}]
  %s5 = inlined_call_operand.vmem [shape: bf16[9,3,64], index: 5, kind: input, shape index: {}]
  %s6 = inlined_call_operand.vmem [shape: f32[3,1], index: 6, kind: input, shape index: {}]
  %s7 = inlined_call_operand.vmem [shape: f32[2,3,256], index: 7, kind: output, shape index: {}]
  %s8 = sld [smem:[#allocation0]]
  $region61: #{video_enhancement_forward.1} parent=0
    _
  %s10 = ssub.s32 1, %s8
  %s11 = scalar_select 0, %s10, %s8
  loop: start=0, step=1, limit=4
  $region2: #{video_enhancement_forward.1} parent=0 // loop_pre_header
    _
  $region3: #{video_enhancement_forward.1} parent=0 // loop_header
    %s13 = sphi 0, %s17
    %p14 = scmp.ge.s32.totalorder %s13, 4
    %s23 = sphi 0, %s25
    %s26 = sphi 0, %s23
    %s27 = sphi 0, %s26
    %s43 = sphi 0, %s27
    %s47 = sphi 0, %s47
    %s49 = sphi 0, %s47
    %s50 = sphi 0, %s49
    %s64 = sphi 0, %s50
    %s68 = sphi 0, %s68
    %s70 = sphi 0, %s68
    %s71 = sphi 0, %s70
    %s85 = sphi 0, %s71
    %s89 = sphi 0, %s89
    %s91 = sphi 0, %s89
    %s92 = sphi 0, %s91
    %s106 = sphi 0, %s92
    %s110 = sphi 0, %s110
    %s112 = sphi 0, %s110
    %s113 = sphi 0, %s112
    %s127 = sphi 0, %s113
    %s131 = sphi 0, %s131
    %s133 = sphi 0, %s131
    %s134 = sphi 0, %s133
    %s148 = sphi 0, %s134
    %s152 = sphi 0, %s152
    %s154 = sphi 0, %s152
    %s155 = sphi 0, %s154
    %s169 = sphi 0, %s155
    %s175 = sphi 0, %s177
    %s178 = sphi 0, %s175
    %s179 = sphi 0, %s178
    %s195 = sphi 0, %s179
  $region4: #{video_enhancement_forward.1} parent=0 // loop_header_branch
    %16 = sbr.rel (%p14) target = $region8
  $region5: #{video_enhancement_forward.1} parent=0 // loop_body
    %s18 = ssub.s32 %s13, 1
    %s19 = ssub.s32 %s13, 2
    %s20 = sadd.s32 %s13, 1
    %s21 = ssub.s32 %s13, %s20
    %p22 = scmp.eq.s32.totalorder %s21, 0
    %s24 = sadd.s32 %s23, 1
    %s25 = scalar_select %p22, %s23, %s24
    %p28 = pneg %p22
    %p29 = scmp.eq.s32.totalorder %s13, 1
    %p30 = por %p28, %p29
    %p31 = scmp.ne.s32.totalorder %s23, %s26
    %p32 = scmp.eq.s32.totalorder %s13, 0
    %p33 = por %p31, %p32
    %p34 = scmp.ne.s32.totalorder %s23, %s26
    %p35 = scmp.eq.s32.totalorder %s18, 1
    %p36 = por %p34, %p35
    %p37 = scmp.ne.s32.totalorder %s26, %s27
    %p38 = scmp.eq.s32.totalorder %s18, 0
    %p39 = por %p37, %p38
    %p40 = scmp.ne.s32.totalorder %s26, %s27
    %p41 = scmp.eq.s32.totalorder %s19, 1
    %p42 = por %p40, %p41
    %p44 = scmp.ne.s32.totalorder %s27, %s43
    %p45 = scmp.eq.s32.totalorder %s19, 0
    %p46 = por %p44, %p45
    %s48 = sadd.s32 %s47, 1
    %p51 = scmp.eq.s32.totalorder %s13, 1
    %p52 = scmp.ne.s32.totalorder %s47, %s49
    %p53 = scmp.eq.s32.totalorder %s13, 0
    %p54 = por %p52, %p53
    %p55 = scmp.ne.s32.totalorder %s47, %s49
    %p56 = scmp.eq.s32.totalorder %s18, 1
    %p57 = por %p55, %p56
    %p58 = scmp.ne.s32.totalorder %s49, %s50
    %p59 = scmp.eq.s32.totalorder %s18, 0
    %p60 = por %p58, %p59
    %p61 = scmp.ne.s32.totalorder %s49, %s50
    %p62 = scmp.eq.s32.totalorder %s19, 1
    %p63 = por %p61, %p62
    %p65 = scmp.ne.s32.totalorder %s50, %s64
    %p66 = scmp.eq.s32.totalorder %s19, 0
    %p67 = por %p65, %p66
    %s69 = sadd.s32 %s68, 1
    %p72 = scmp.eq.s32.totalorder %s13, 1
    %p73 = scmp.ne.s32.totalorder %s68, %s70
    %p74 = scmp.eq.s32.totalorder %s13, 0
    %p75 = por %p73, %p74
    %p76 = scmp.ne.s32.totalorder %s68, %s70
    %p77 = scmp.eq.s32.totalorder %s18, 1
    %p78 = por %p76, %p77
    %p79 = scmp.ne.s32.totalorder %s70, %s71
    %p80 = scmp.eq.s32.totalorder %s18, 0
    %p81 = por %p79, %p80
    %p82 = scmp.ne.s32.totalorder %s70, %s71
    %p83 = scmp.eq.s32.totalorder %s19, 1
    %p84 = por %p82, %p83
    %p86 = scmp.ne.s32.totalorder %s71, %s85
    %p87 = scmp.eq.s32.totalorder %s19, 0
    %p88 = por %p86, %p87
    %s90 = sadd.s32 %s89, 1
    %p93 = scmp.eq.s32.totalorder %s13, 1
    %p94 = scmp.ne.s32.totalorder %s89, %s91
    %p95 = scmp.eq.s32.totalorder %s13, 0
    %p96 = por %p94, %p95
    %p97 = scmp.ne.s32.totalorder %s89, %s91
    %p98 = scmp.eq.s32.totalorder %s18, 1
    %p99 = por %p97, %p98
    %p100 = scmp.ne.s32.totalorder %s91, %s92
    %p101 = scmp.eq.s32.totalorder %s18, 0
    %p102 = por %p100, %p101
    %p103 = scmp.ne.s32.totalorder %s91, %s92
    %p104 = scmp.eq.s32.totalorder %s19, 1
    %p105 = por %p103, %p104
    %p107 = scmp.ne.s32.totalorder %s92, %s106
    %p108 = scmp.eq.s32.totalorder %s19, 0
    %p109 = por %p107, %p108
    %s111 = sadd.s32 %s110, 1
    %p114 = scmp.eq.s32.totalorder %s13, 1
    %p115 = scmp.ne.s32.totalorder %s110, %s112
    %p116 = scmp.eq.s32.totalorder %s13, 0
    %p117 = por %p115, %p116
    %p118 = scmp.ne.s32.totalorder %s110, %s112
    %p119 = scmp.eq.s32.totalorder %s18, 1
    %p120 = por %p118, %p119
    %p121 = scmp.ne.s32.totalorder %s112, %s113
    %p122 = scmp.eq.s32.totalorder %s18, 0
    %p123 = por %p121, %p122
    %p124 = scmp.ne.s32.totalorder %s112, %s113
    %p125 = scmp.eq.s32.totalorder %s19, 1
    %p126 = por %p124, %p125
    %p128 = scmp.ne.s32.totalorder %s113, %s127
    %p129 = scmp.eq.s32.totalorder %s19, 0
    %p130 = por %p128, %p129
    %s132 = sadd.s32 %s131, 1
    %p135 = scmp.eq.s32.totalorder %s13, 1
    %p136 = scmp.ne.s32.totalorder %s131, %s133
    %p137 = scmp.eq.s32.totalorder %s13, 0
    %p138 = por %p136, %p137
    %p139 = scmp.ne.s32.totalorder %s131, %s133
    %p140 = scmp.eq.s32.totalorder %s18, 1
    %p141 = por %p139, %p140
    %p142 = scmp.ne.s32.totalorder %s133, %s134
    %p143 = scmp.eq.s32.totalorder %s18, 0
    %p144 = por %p142, %p143
    %p145 = scmp.ne.s32.totalorder %s133, %s134
    %p146 = scmp.eq.s32.totalorder %s19, 1
    %p147 = por %p145, %p146
    %p149 = scmp.ne.s32.totalorder %s134, %s148
    %p150 = scmp.eq.s32.totalorder %s19, 0
    %p151 = por %p149, %p150
    %s153 = sadd.s32 %s152, 1
    %p156 = scmp.eq.s32.totalorder %s13, 1
    %p157 = scmp.ne.s32.totalorder %s152, %s154
    %p158 = scmp.eq.s32.totalorder %s13, 0
    %p159 = por %p157, %p158
    %p160 = scmp.ne.s32.totalorder %s152, %s154
    %p161 = scmp.eq.s32.totalorder %s18, 1
    %p162 = por %p160, %p161
    %p163 = scmp.ne.s32.totalorder %s154, %s155
    %p164 = scmp.eq.s32.totalorder %s18, 0
    %p165 = por %p163, %p164
    %p166 = scmp.ne.s32.totalorder %s154, %s155
    %p167 = scmp.eq.s32.totalorder %s19, 1
    %p168 = por %p166, %p167
    %p170 = scmp.ne.s32.totalorder %s155, %s169
    %p171 = scmp.eq.s32.totalorder %s19, 0
    %p172 = por %p170, %p171
    %s173 = ssub.s32 %s13, %s20
    %p174 = scmp.eq.s32.totalorder %s173, 0
    %s176 = sadd.s32 %s175, 1
    %s177 = scalar_select %p174, %s175, %s176
    %p180 = pneg %p174
    %p181 = scmp.eq.s32.totalorder %s13, 1
    %p182 = por %p180, %p181
    %p183 = scmp.ne.s32.totalorder %s175, %s178
    %p184 = scmp.eq.s32.totalorder %s13, 0
    %p185 = por %p183, %p184
    %p186 = scmp.ne.s32.totalorder %s175, %s178
    %p187 = scmp.eq.s32.totalorder %s18, 1
    %p188 = por %p186, %p187
    %p189 = scmp.ne.s32.totalorder %s178, %s179
    %p190 = scmp.eq.s32.totalorder %s18, 0
    %p191 = por %p189, %p190
    %p192 = scmp.ne.s32.totalorder %s178, %s179
    %p193 = scmp.eq.s32.totalorder %s19, 1
    %p194 = por %p192, %p193
    %p196 = scmp.ne.s32.totalorder %s179, %s195
    %p197 = scmp.eq.s32.totalorder %s19, 0
    %p198 = por %p196, %p197
    %p199 = scmp.le.s32.totalorder 1, %s13
    %p200 = scmp.lt.s32.totalorder %s13, 3
    %p201 = pnand %p199, %p200
    %p202 = pneg %p201
    // Predicated region
    $region9: #{video_enhancement_forward.1} parent=5 // pred_check
      _
    $region10: #{video_enhancement_forward.1} parent=5 // pred_check_branch
      %204 = sbr.rel (%p201) target = $region12
    $region11: #{video_enhancement_forward.1} parent=5 // pred_region
      %s205 = ssub.s32 %s13, 1
      // Predicated region
      $region13: #{video_enhancement_forward.1} parent=11 // pred_check
        %p206 = pneg %p60
      $region14: #{video_enhancement_forward.1} parent=11 // pred_check_branch
        %208 = sbr.rel (%p206) target = $region16
      $region15: #{video_enhancement_forward.1} parent=11 // pred_region
        _
      $region16: #{video_enhancement_forward.1} parent=11 // pred_fallthru
        _
      // Predicated region
      $region17: #{video_enhancement_forward.1} parent=11 // pred_check
        %p209 = pneg %p81
      $region18: #{video_enhancement_forward.1} parent=11 // pred_check_branch
        %211 = sbr.rel (%p209) target = $region20
      $region19: #{video_enhancement_forward.1} parent=11 // pred_region
        _
      $region20: #{video_enhancement_forward.1} parent=11 // pred_fallthru
        _
      // Predicated region
      $region21: #{video_enhancement_forward.1} parent=11 // pred_check
        %p212 = pneg %p102
      $region22: #{video_enhancement_forward.1} parent=11 // pred_check_branch
        %214 = sbr.rel (%p212) target = $region24
      $region23: #{video_enhancement_forward.1} parent=11 // pred_region
        _
      $region24: #{video_enhancement_forward.1} parent=11 // pred_fallthru
        _
      // Predicated region
      $region25: #{video_enhancement_forward.1} parent=11 // pred_check
        %p215 = pneg %p123
      $region26: #{video_enhancement_forward.1} parent=11 // pred_check_branch
        %217 = sbr.rel (%p215) target = $region28
      $region27: #{video_enhancement_forward.1} parent=11 // pred_region
        _
      $region28: #{video_enhancement_forward.1} parent=11 // pred_fallthru
        _
      // Predicated region
      $region29: #{video_enhancement_forward.1} parent=11 // pred_check
        %p218 = pneg %p144
      $region30: #{video_enhancement_forward.1} parent=11 // pred_check_branch
        %220 = sbr.rel (%p218) target = $region32
      $region31: #{video_enhancement_forward.1} parent=11 // pred_region
        _
      $region32: #{video_enhancement_forward.1} parent=11 // pred_fallthru
        _
      // Predicated region
      $region33: #{video_enhancement_forward.1} parent=11 // pred_check
        %p221 = pneg %p165
      $region34: #{video_enhancement_forward.1} parent=11 // pred_check_branch
        %223 = sbr.rel (%p221) target = $region36
      $region35: #{video_enhancement_forward.1} parent=11 // pred_region
        _
      $region36: #{video_enhancement_forward.1} parent=11 // pred_fallthru
        _
    $region12: #{video_enhancement_forward.1} parent=5 // pred_fallthru
      _
    %p224 = scmp.lt.s32.totalorder %s13, 2
    // Predicated region
    $region37: #{video_enhancement_forward.1} parent=5 // pred_check
      %p225 = pneg %p224
    $region38: #{video_enhancement_forward.1} parent=5 // pred_check_branch
      %227 = sbr.rel (%p225) target = $region40
    $region39: #{video_enhancement_forward.1} parent=5 // pred_region
      // Predicated region
      $region41: #{video_enhancement_forward.1} parent=39 // pred_check
        %p228 = pneg %p33
      $region42: #{video_enhancement_forward.1} parent=39 // pred_check_branch
        %230 = sbr.rel (%p228) target = $region44
      $region43: #{video_enhancement_forward.1} parent=39 // pred_region
        %p231 = scmp.lt.s32.totalorder %s13, 1
        %s232 = scalar_select %p231, %s13, 1
        %s233 = smul.addr %s232, 32
        %s234 = smul.addr %s233, 4
        %s235 = scalar_lea.vmem %s0, %s234
      $region44: #{video_enhancement_forward.1} parent=39 // pred_fallthru
        _
    $region40: #{video_enhancement_forward.1} parent=5 // pred_fallthru
      _
    %p236 = scmp.le.s32.totalorder 1, %s13
    %p237 = scmp.lt.s32.totalorder %s13, 3
    %p238 = pnand %p236, %p237
    %p239 = pneg %p238
    // Predicated region
    $region45: #{video_enhancement_forward.1} parent=5 // pred_check
      _
    $region46: #{video_enhancement_forward.1} parent=5 // pred_check_branch
      %241 = sbr.rel (%p238) target = $region48
    $region47: #{video_enhancement_forward.1} parent=5 // pred_region
      %s242 = ssub.s32 %s13, 1
      %p243 = scmp.lt.s32.totalorder %s18, 1
      %s244 = scalar_select %p243, %s18, 1
      %s245 = smul.addr %s244, 32
      %s246 = smul.addr %s245, 4
      %s247 = scalar_lea.vmem %s0, %s246
      %p248 = pneg %p39
      %p249 = pneg %p36
      %p250 = pneg %p60
      %p251 = pneg %p57
      %p252 = pneg %p81
      %p253 = pneg %p78
      %p254 = pneg %p102
      %p255 = pneg %p99
      %p256 = pneg %p123
      %p257 = pneg %p120
      %p258 = pneg %p144
      %p259 = pneg %p141
      %p260 = pneg %p165
      %p261 = pneg %p162
      %p262 = pneg %p191
      %p263 = pneg %p188
      %p264 = scmp.lt.s32.totalorder %s18, 1
      %s265 = scalar_select %p264, %s18, 1
      %s266 = smul.addr %s265, 2
      %s267 = smul.addr %s266, 4
      %s268 = scalar_lea.vmem %s7, %s267
      %p269 = scmp.lt.s32.totalorder %s18, 1
      %s270 = scalar_select %p269, %s18, 1
      %s271 = smul.addr %s270, 32
      %s272 = smul.addr %s271, 4
      %s273 = scalar_lea.vmem %s0, %s272
      %p274 = scmp.lt.s32.totalorder %s18, 1
      %s275 = scalar_select %p274, %s18, 1
      %s276 = smul.addr %s275, 2
      %s277 = smul.addr %s276, 4
      %s278 = scalar_lea.vmem %s7, %s277
      %v280 = vld [vmem:[%s273] sm:$0xf]
      %v281 = vld [vmem:[%s273 + $0x4] sm:$0xf]
      %v282 = vld [vmem:[%s273 + $0x8] sm:$0xf]
      %v283 = vld [vmem:[%s273 + $0xc] sm:$0xf]
      %v284 = vld [vmem:[%s273 + $0x10] sm:$0xf]
      %v285 = vld [vmem:[%s273 + $0x14] sm:$0xf]
      %v286 = vld [vmem:[%s273 + $0x18] sm:$0xf]
      %v287 = vld [vmem:[%s273 + $0x1c] sm:$0xf]
      %v288 = vld [vmem:[%s273 + $0x20] sm:$0xf]
      %v289 = vld [vmem:[%s273 + $0x24] sm:$0xf]
      %v290 = vld [vmem:[%s273 + $0x28] sm:$0xf]
      %v291 = vld [vmem:[%s273 + $0x2c] sm:$0xf]
      %v292 = vld [vmem:[%s273 + $0x30] sm:$0xf]
      %v293 = vld [vmem:[%s273 + $0x34] sm:$0xf]
      %v294 = vld [vmem:[%s273 + $0x38] sm:$0xf]
      %v295 = vld [vmem:[%s273 + $0x3c] sm:$0xf]
      %v296 = vld [vmem:[%s273 + $0x40] sm:$0xf]
      %v297 = vld [vmem:[%s273 + $0x44] sm:$0xf]
      %v298 = vld [vmem:[%s273 + $0x48] sm:$0xf]
      %v299 = vld [vmem:[%s273 + $0x4c] sm:$0xf]
      %v300 = vld [vmem:[%s273 + $0x50] sm:$0xf]
      %v301 = vld [vmem:[%s273 + $0x54] sm:$0xf]
      %v302 = vld [vmem:[%s273 + $0x58] sm:$0xf]
      %v303 = vld [vmem:[%s273 + $0x5c] sm:$0xf]
      %v304 = vld [vmem:[%s273 + $0x60] sm:$0xf]
      %v305 = vld [vmem:[%s273 + $0x64] sm:$0xf]
      %v306 = vld [vmem:[%s273 + $0x68] sm:$0xf]
      %v307 = vld [vmem:[%s273 + $0x6c] sm:$0xf]
      %v308 = vld [vmem:[%s273 + $0x70] sm:$0xf]
      %v309 = vld [vmem:[%s273 + $0x74] sm:$0xf]
      %v310 = vld [vmem:[%s273 + $0x78] sm:$0xf]
      %v311 = vld [vmem:[%s273 + $0x7c] sm:$0xf]
      %v312 = vld [vmem:[%s1] sm:$0xf]
      %v313 = vld [vmem:[%s1 + $0x4] sm:$0xf]
      %v314 = vld [vmem:[%s1 + $0x8] sm:$0xf]
      %v315 = vld [vmem:[%s1 + $0xc] sm:$0x3]
      %v316 = vld [vmem:[%s2] sm:$0x1]
      %v318 = vlaneseq
      %v319 = vshrl.u32 %v318, 7
      %v320 = vsub.s32 0, %v319
      %v321 = vrot.slane %v316, %v320
      %v355 = vunpack.c.l.b16 %v280
      %v356 = vunpack.c.l.b16 %v281
      %v357 = vunpack.c.l.b16 %v282
      %v358 = vunpack.c.l.b16 %v283
      %v359 = vunpack.c.l.b16 %v284
      %v360 = vunpack.c.l.b16 %v285
      %v361 = vunpack.c.l.b16 %v286
      %v362 = vunpack.c.l.b16 %v287
      %v363 = vunpack.c.l.b16 %v288
      %v364 = vunpack.c.l.b16 %v289
      %v365 = vunpack.c.l.b16 %v290
      %v366 = vunpack.c.l.b16 %v291
      %v367 = vunpack.c.l.b16 %v292
      %v368 = vunpack.c.l.b16 %v293
      %v369 = vunpack.c.l.b16 %v294
      %v370 = vunpack.c.l.b16 %v295
      %v371 = vunpack.c.l.b16 %v296
      %v372 = vunpack.c.l.b16 %v297
      %v373 = vunpack.c.l.b16 %v298
      %v374 = vunpack.c.l.b16 %v299
      %v375 = vunpack.c.l.b16 %v300
      %v376 = vunpack.c.l.b16 %v301
      %v377 = vunpack.c.l.b16 %v302
      %v378 = vunpack.c.l.b16 %v303
      %v379 = vunpack.c.l.b16 %v304
      %v380 = vunpack.c.l.b16 %v305
      %v381 = vunpack.c.l.b16 %v306
      %v382 = vunpack.c.l.b16 %v307
      %v383 = vunpack.c.l.b16 %v308
      %v384 = vunpack.c.l.b16 %v309
      %v385 = vunpack.c.l.b16 %v310
      %v386 = vunpack.c.l.b16 %v311
      %v387 = vpack.c.b16 %v356, %v355
      %v388 = vpack.c.b16 %v358, %v357
      %v389 = vpack.c.b16 %v360, %v359
      %v390 = vpack.c.b16 %v362, %v361
      %v391 = vpack.c.b16 %v364, %v363
      %v392 = vpack.c.b16 %v366, %v365
      %v393 = vpack.c.b16 %v368, %v367
      %v394 = vpack.c.b16 %v370, %v369
      %v395 = vpack.c.b16 %v372, %v371
      %v396 = vpack.c.b16 %v374, %v373
      %v397 = vpack.c.b16 %v376, %v375
      %v398 = vpack.c.b16 %v378, %v377
      %v399 = vpack.c.b16 %v380, %v379
      %v400 = vpack.c.b16 %v382, %v381
      %v401 = vpack.c.b16 %v384, %v383
      %v402 = vpack.c.b16 %v386, %v385
      %v407 = vunpack.c.l.b16 %v312
      %v408 = vunpack.c.l.b16 %v313
      %v409 = vunpack.c.l.b16 %v314
      %v410 = vunpack.c.l.b16 %v315
      %v411 = vpack.c.b16 %v408, %v407
      %v412 = vpack.c.b16 %v410, %v409
      %vm414 = vcmask 220160
      %v416 = vsel %vm414, %v387, 0
      %v419 = vsel %vm414, %v388, 0
      %v422 = vsel %vm414, %v389, 0
      %v425 = vsel %vm414, %v390, 0
      %v428 = vsel %vm414, %v391, 0
      %v431 = vsel %vm414, %v392, 0
      %v434 = vsel %vm414, %v393, 0
      %v437 = vsel %vm414, %v394, 0
      %v440 = vsel %vm414, %v395, 0
      %v443 = vsel %vm414, %v396, 0
      %v446 = vsel %vm414, %v397, 0
      %v449 = vsel %vm414, %v398, 0
      %v452 = vsel %vm414, %v399, 0
      %v455 = vsel %vm414, %v400, 0
      %v458 = vsel %vm414, %v401, 0
      %v461 = vsel %vm414, %v402, 0
      %vm463 = vcmask 1044480
      %vm464 = vcmask 1045504
      %v465 = vsel %vm463, 4294967295, 65535
      %v466 = vsel %vm464, %v465, 0
      %v468 = vand.u32 %v412, %v466
      %470 = vmatprep.subr.bf16.mxu0 0
      %471 = vmatpush1.bf16.msra.mxu0 0
      %472 = vmatprep.subr.bf16.mxu0 0
      %473 = vmatpush1.bf16.msra.mxu0 0
      %474 = vmatprep.subr.bf16.mxu0 0
      %475 = vmatpush1.bf16.msra.mxu0 0
      %476 = vmatprep.subr.bf16.mxu0 0
      %477 = vmatpush1.bf16.msra.mxu0 0
      %478 = vmatprep.subr.bf16.mxu0 0
      %479 = vmatpush1.bf16.msra.mxu0 0
      %480 = vmatprep.subr.bf16.mxu0 0
      %481 = vmatpush1.bf16.msra.mxu0 0
      %482 = vmatprep.subr.bf16.mxu0 0
      %483 = vmatpush1.bf16.msra.mxu0 %v468
      %484 = vmatprep.subr.bf16.mxu0 0
      %485 = vmatpush1.bf16.msra.mxu0 %v411
      %486 = vmatprep.subr.bf16.mxu0 0
      %487 = vmatpush2.bf16.msra.mxu0 0
      %488 = vmatprep.subr.bf16.mxu0 0
      %489 = vmatpush2.bf16.msra.mxu0 0
      %490 = vmatprep.subr.bf16.mxu0 0
      %491 = vmatpush2.bf16.msra.mxu0 0
      %492 = vmatprep.subr.bf16.mxu0 0
      %493 = vmatpush2.bf16.msra.mxu0 0
      %494 = vmatprep.subr.bf16.mxu0 0
      %495 = vmatpush2.bf16.msra.mxu0 0
      %496 = vmatprep.subr.bf16.mxu0 0
      %497 = vmatpush2.bf16.msra.mxu0 0
      %498 = vmatprep.subr.bf16.mxu0 0
      %499 = vmatpush2.bf16.msra.mxu0 0
      %500 = vmatprep.subr.bf16.mxu0 0
      %501 = vmatpush2.bf16.msra.mxu0 0
      %502 = vmatprep.mubr.bf16.mxu0 0
      %503 = vmatmul.mubr.bf16.gmra.mxu0 %v416
      %v504 = vpop.f32.mrf.mxu0
      %v505 = vadd.f32 %v321, %v504
      %v506 = vpop.f32.mrf.mxu0
      %v507 = vpop.f32.mrf.mxu0
      %v508 = vadd.f32 %v321, %v507
      %v509 = vpop.f32.mrf.mxu0
      %510 = vmatprep.mubr.bf16.mxu0 0
      %511 = vmatmul.mubr.bf16.gmra.mxu0 %v419
      %v512 = vpop.f32.mrf.mxu0
      %v513 = vadd.f32 %v321, %v512
      %v514 = vpop.f32.mrf.mxu0
      %v515 = vpop.f32.mrf.mxu0
      %v516 = vadd.f32 %v321, %v515
      %v517 = vpop.f32.mrf.mxu0
      %518 = vmatprep.mubr.bf16.mxu0 0
      %519 = vmatmul.mubr.bf16.gmra.mxu0 %v422
      %v520 = vpop.f32.mrf.mxu0
      %v521 = vadd.f32 %v321, %v520
      %v522 = vpop.f32.mrf.mxu0
      %v523 = vpop.f32.mrf.mxu0
      %v524 = vadd.f32 %v321, %v523
      %v525 = vpop.f32.mrf.mxu0
      %526 = vmatprep.mubr.bf16.mxu0 0
      %527 = vmatmul.mubr.bf16.gmra.mxu0 %v425
      %v528 = vpop.f32.mrf.mxu0
      %v529 = vadd.f32 %v321, %v528
      %v530 = vpop.f32.mrf.mxu0
      %v531 = vpop.f32.mrf.mxu0
      %v532 = vadd.f32 %v321, %v531
      %v533 = vpop.f32.mrf.mxu0
      %534 = vmatprep.mubr.bf16.mxu0 0
      %535 = vmatmul.mubr.bf16.gmra.mxu0 %v428
      %v536 = vpop.f32.mrf.mxu0
      %v537 = vadd.f32 %v321, %v536
      %v538 = vpop.f32.mrf.mxu0
      %v539 = vpop.f32.mrf.mxu0
      %v540 = vadd.f32 %v321, %v539
      %v541 = vpop.f32.mrf.mxu0
      %542 = vmatprep.mubr.bf16.mxu0 0
      %543 = vmatmul.mubr.bf16.gmra.mxu0 %v431
      %v544 = vpop.f32.mrf.mxu0
      %v545 = vadd.f32 %v321, %v544
      %v546 = vpop.f32.mrf.mxu0
      %v547 = vpop.f32.mrf.mxu0
      %v548 = vadd.f32 %v321, %v547
      %v549 = vpop.f32.mrf.mxu0
      %550 = vmatprep.mubr.bf16.mxu0 0
      %551 = vmatmul.mubr.bf16.gmra.mxu0 %v434
      %v552 = vpop.f32.mrf.mxu0
      %v553 = vadd.f32 %v321, %v552
      %v554 = vpop.f32.mrf.mxu0
      %v555 = vpop.f32.mrf.mxu0
      %v556 = vadd.f32 %v321, %v555
      %v557 = vpop.f32.mrf.mxu0
      %558 = vmatprep.mubr.bf16.mxu0 0
      %559 = vmatmul.mubr.bf16.gmra.mxu0 %v437
      %v560 = vpop.f32.mrf.mxu0
      %v561 = vadd.f32 %v321, %v560
      %v562 = vpop.f32.mrf.mxu0
      %v563 = vpop.f32.mrf.mxu0
      %v564 = vadd.f32 %v321, %v563
      %v565 = vpop.f32.mrf.mxu0
      %566 = vmatprep.mubr.bf16.mxu0 0
      %567 = vmatmul.mubr.bf16.gmra.mxu0 %v440
      %v568 = vpop.f32.mrf.mxu0
      %v569 = vadd.f32 %v321, %v568
      %v570 = vpop.f32.mrf.mxu0
      %v571 = vpop.f32.mrf.mxu0
      %v572 = vadd.f32 %v321, %v571
      %v573 = vpop.f32.mrf.mxu0
      %574 = vmatprep.mubr.bf16.mxu0 0
      %575 = vmatmul.mubr.bf16.gmra.mxu0 %v443
      %v576 = vpop.f32.mrf.mxu0
      %v577 = vadd.f32 %v321, %v576
      %v578 = vpop.f32.mrf.mxu0
      %v579 = vpop.f32.mrf.mxu0
      %v580 = vadd.f32 %v321, %v579
      %v581 = vpop.f32.mrf.mxu0
      %582 = vmatprep.mubr.bf16.mxu0 0
      %583 = vmatmul.mubr.bf16.gmra.mxu0 %v446
      %v584 = vpop.f32.mrf.mxu0
      %v585 = vadd.f32 %v321, %v584
      %v586 = vpop.f32.mrf.mxu0
      %v587 = vpop.f32.mrf.mxu0
      %v588 = vadd.f32 %v321, %v587
      %v589 = vpop.f32.mrf.mxu0
      %590 = vmatprep.mubr.bf16.mxu0 0
      %591 = vmatmul.mubr.bf16.gmra.mxu0 %v449
      %v592 = vpop.f32.mrf.mxu0
      %v593 = vadd.f32 %v321, %v592
      %v594 = vpop.f32.mrf.mxu0
      %v595 = vpop.f32.mrf.mxu0
      %v596 = vadd.f32 %v321, %v595
      %v597 = vpop.f32.mrf.mxu0
      %598 = vmatprep.mubr.bf16.mxu0 0
      %599 = vmatmul.mubr.bf16.gmra.mxu0 %v452
      %v600 = vpop.f32.mrf.mxu0
      %v601 = vadd.f32 %v321, %v600
      %v602 = vpop.f32.mrf.mxu0
      %v603 = vpop.f32.mrf.mxu0
      %v604 = vadd.f32 %v321, %v603
      %v605 = vpop.f32.mrf.mxu0
      %606 = vmatprep.mubr.bf16.mxu0 0
      %607 = vmatmul.mubr.bf16.gmra.mxu0 %v455
      %v608 = vpop.f32.mrf.mxu0
      %v609 = vadd.f32 %v321, %v608
      %v610 = vpop.f32.mrf.mxu0
      %v611 = vpop.f32.mrf.mxu0
      %v612 = vadd.f32 %v321, %v611
      %v613 = vpop.f32.mrf.mxu0
      %614 = vmatprep.mubr.bf16.mxu0 0
      %615 = vmatmul.mubr.bf16.gmra.mxu0 %v458
      %v616 = vpop.f32.mrf.mxu0
      %v617 = vadd.f32 %v321, %v616
      %v618 = vpop.f32.mrf.mxu0
      %v619 = vpop.f32.mrf.mxu0
      %v620 = vadd.f32 %v321, %v619
      %v621 = vpop.f32.mrf.mxu0
      %622 = vmatprep.mubr.bf16.mxu0 0
      %623 = vmatmul.mubr.bf16.gmra.mxu0 %v461
      %v624 = vpop.f32.mrf.mxu0
      %v625 = vadd.f32 %v321, %v624
      %v626 = vpop.f32.mrf.mxu0
      %v627 = vpop.f32.mrf.mxu0
      %v628 = vadd.f32 %v321, %v627
      %v629 = vpop.f32.mrf.mxu0
      %630 = vdwg.mxu0
      %v631 = vmax.f32 %v505, 0.0
      %v632 = vmax.f32 %v508, 0.0
      %v633 = vmax.f32 %v513, 0.0
      %v634 = vmax.f32 %v516, 0.0
      %v635 = vmax.f32 %v521, 0.0
      %v636 = vmax.f32 %v524, 0.0
      %v637 = vmax.f32 %v529, 0.0
      %v638 = vmax.f32 %v532, 0.0
      %v639 = vmax.f32 %v537, 0.0
      %v640 = vmax.f32 %v540, 0.0
      %v641 = vmax.f32 %v545, 0.0
      %v642 = vmax.f32 %v548, 0.0
      %v643 = vmax.f32 %v553, 0.0
      %v644 = vmax.f32 %v556, 0.0
      %v645 = vmax.f32 %v561, 0.0
      %v646 = vmax.f32 %v564, 0.0
      %v647 = vmax.f32 %v569, 0.0
      %v648 = vmax.f32 %v572, 0.0
      %v649 = vmax.f32 %v577, 0.0
      %v650 = vmax.f32 %v580, 0.0
      %v651 = vmax.f32 %v585, 0.0
      %v652 = vmax.f32 %v588, 0.0
      %v653 = vmax.f32 %v593, 0.0
      %v654 = vmax.f32 %v596, 0.0
      %v655 = vmax.f32 %v601, 0.0
      %v656 = vmax.f32 %v604, 0.0
      %v657 = vmax.f32 %v609, 0.0
      %v658 = vmax.f32 %v612, 0.0
      %v659 = vmax.f32 %v617, 0.0
      %v660 = vmax.f32 %v620, 0.0
      %v661 = vmax.f32 %v625, 0.0
      %v662 = vmax.f32 %v628, 0.0
      %vm696 = vcmask 1040384
      %v697 = vrot.slane 0.0, 7
      %v698 = vsel %vm696, %v697, %v697
      %v699 = vrot.slane %v631, 7
      %v700 = vrot.slane %v632, 7
      %v701 = vsel %vm696, %v699, %v700
      %v702 = vrot.slane %v633, 7
      %v703 = vrot.slane %v634, 7
      %v704 = vsel %vm696, %v702, %v703
      %v705 = vrot.slane %v635, 7
      %v706 = vrot.slane %v636, 7
      %v707 = vsel %vm696, %v705, %v706
      %v708 = vrot.slane %v637, 7
      %v709 = vrot.slane %v638, 7
      %v710 = vsel %vm696, %v708, %v709
      %v711 = vrot.slane %v639, 7
      %v712 = vrot.slane %v640, 7
      %v713 = vsel %vm696, %v711, %v712
      %v714 = vrot.slane %v641, 7
      %v715 = vrot.slane %v642, 7
      %v716 = vsel %vm696, %v714, %v715
      %v717 = vrot.slane %v643, 7
      %v718 = vrot.slane %v644, 7
      %v719 = vsel %vm696, %v717, %v718
      %v720 = vrot.slane %v645, 7
      %v721 = vrot.slane %v646, 7
      %v722 = vsel %vm696, %v720, %v721
      %v723 = vrot.slane %v647, 7
      %v724 = vrot.slane %v648, 7
      %v725 = vsel %vm696, %v723, %v724
      %v726 = vrot.slane %v649, 7
      %v727 = vrot.slane %v650, 7
      %v728 = vsel %vm696, %v726, %v727
      %v729 = vrot.slane %v651, 7
      %v730 = vrot.slane %v652, 7
      %v731 = vsel %vm696, %v729, %v730
      %v732 = vrot.slane %v653, 7
      %v733 = vrot.slane %v654, 7
      %v734 = vsel %vm696, %v732, %v733
      %v735 = vrot.slane %v655, 7
      %v736 = vrot.slane %v656, 7
      %v737 = vsel %vm696, %v735, %v736
      %v738 = vrot.slane %v657, 7
      %v739 = vrot.slane %v658, 7
      %v740 = vsel %vm696, %v738, %v739
      %v741 = vrot.slane %v659, 7
      %v742 = vrot.slane %v660, 7
      %v743 = vsel %vm696, %v741, %v742
      %v744 = vrot.slane %v661, 7
      %v745 = vrot.slane %v662, 7
      %v746 = vsel %vm696, %v744, %v745
      %v797 = vsel %vm696, 0.0, %v697
      %v798 = vsel %vm696, 0.0, %v699
      %v799 = vsel %vm696, 0.0, %v702
      %v800 = vsel %vm696, 0.0, %v705
      %v801 = vsel %vm696, 0.0, %v708
      %v802 = vsel %vm696, 0.0, %v711
      %v803 = vsel %vm696, 0.0, %v714
      %v804 = vsel %vm696, 0.0, %v717
      %v805 = vsel %vm696, 0.0, %v720
      %v806 = vsel %vm696, 0.0, %v723
      %v807 = vsel %vm696, 0.0, %v726
      %v808 = vsel %vm696, 0.0, %v729
      %v809 = vsel %vm696, 0.0, %v732
      %v810 = vsel %vm696, 0.0, %v735
      %v811 = vsel %vm696, 0.0, %v738
      %v812 = vsel %vm696, 0.0, %v741
      %v813 = vsel %vm696, 0.0, %v744
      %v814 = vsel %vm696, %v697, 0.0
      %v815 = vsel %vm696, %v700, 0.0
      %v816 = vsel %vm696, %v703, 0.0
      %v817 = vsel %vm696, %v706, 0.0
      %v818 = vsel %vm696, %v709, 0.0
      %v819 = vsel %vm696, %v712, 0.0
      %v820 = vsel %vm696, %v715, 0.0
      %v821 = vsel %vm696, %v718, 0.0
      %v822 = vsel %vm696, %v721, 0.0
      %v823 = vsel %vm696, %v724, 0.0
      %v824 = vsel %vm696, %v727, 0.0
      %v825 = vsel %vm696, %v730, 0.0
      %v826 = vsel %vm696, %v733, 0.0
      %v827 = vsel %vm696, %v736, 0.0
      %v828 = vsel %vm696, %v739, 0.0
      %v829 = vsel %vm696, %v742, 0.0
      %v830 = vsel %vm696, %v745, 0.0
      %vm831 = vcmask 523264
      %832 = vst.msk [vmem:[#allocation2] sm:$0xff] %vm831, %v797
      %833 = vst.msk [vmem:[#allocation2 + $0x8] sm:$0xff] %vm831, %v698
      %vm834 = vcmask 517120
      %835 = vst.msk [vmem:[#allocation2 + $0x10] sm:$0x3] %vm834, %v814
      %836 = vst.msk [vmem:[#allocation2 + $0x18] sm:$0xff] %vm831, %v798
      %837 = vst.msk [vmem:[#allocation2 + $0x20] sm:$0xff] %vm831, %v701
      %838 = vst.msk [vmem:[#allocation2 + $0x28] sm:$0x3] %vm834, %v815
      %839 = vst.msk [vmem:[#allocation2 + $0x30] sm:$0xff] %vm831, %v799
      %840 = vst.msk [vmem:[#allocation2 + $0x38] sm:$0xff] %vm831, %v704
      %841 = vst.msk [vmem:[#allocation2 + $0x40] sm:$0x3] %vm834, %v816
      %842 = vst.msk [vmem:[#allocation2 + $0x48] sm:$0xff] %vm831, %v800
      %843 = vst.msk [vmem:[#allocation2 + $0x50] sm:$0xff] %vm831, %v707
      %844 = vst.msk [vmem:[#allocation2 + $0x58] sm:$0x3] %vm834, %v817
      %845 = vst.msk [vmem:[#allocation2 + $0x60] sm:$0xff] %vm831, %v801
      %846 = vst.msk [vmem:[#allocation2 + $0x68] sm:$0xff] %vm831, %v710
      %847 = vst.msk [vmem:[#allocation2 + $0x70] sm:$0x3] %vm834, %v818
      %848 = vst.msk [vmem:[#allocation2 + $0x78] sm:$0xff] %vm831, %v802
      %849 = vst.msk [vmem:[#allocation2 + $0x80] sm:$0xff] %vm831, %v713
      %850 = vst.msk [vmem:[#allocation2 + $0x88] sm:$0x3] %vm834, %v819
      %851 = vst.msk [vmem:[#allocation2 + $0x90] sm:$0xff] %vm831, %v803
      %852 = vst.msk [vmem:[#allocation2 + $0x98] sm:$0xff] %vm831, %v716
      %853 = vst.msk [vmem:[#allocation2 + $0xa0] sm:$0x3] %vm834, %v820
      %854 = vst.msk [vmem:[#allocation2 + $0xa8] sm:$0xff] %vm831, %v804
      %855 = vst.msk [vmem:[#allocation2 + $0xb0] sm:$0xff] %vm831, %v719
      %856 = vst.msk [vmem:[#allocation2 + $0xb8] sm:$0x3] %vm834, %v821
      %857 = vst.msk [vmem:[#allocation2 + $0xc0] sm:$0xff] %vm831, %v805
      %858 = vst.msk [vmem:[#allocation2 + $0xc8] sm:$0xff] %vm831, %v722
      %859 = vst.msk [vmem:[#allocation2 + $0xd0] sm:$0x3] %vm834, %v822
      %860 = vst.msk [vmem:[#allocation2 + $0xd8] sm:$0xff] %vm831, %v806
      %861 = vst.msk [vmem:[#allocation2 + $0xe0] sm:$0xff] %vm831, %v725
      %862 = vst.msk [vmem:[#allocation2 + $0xe8] sm:$0x3] %vm834, %v823
      %863 = vst.msk [vmem:[#allocation2 + $0xf0] sm:$0xff] %vm831, %v807
      %864 = vst.msk [vmem:[#allocation2 + $0xf8] sm:$0xff] %vm831, %v728
      %865 = vst.msk [vmem:[#allocation2 + $0x100] sm:$0x3] %vm834, %v824
      %866 = vst.msk [vmem:[#allocation2 + $0x108] sm:$0xff] %vm831, %v808
      %867 = vst.msk [vmem:[#allocation2 + $0x110] sm:$0xff] %vm831, %v731
      %868 = vst.msk [vmem:[#allocation2 + $0x118] sm:$0x3] %vm834, %v825
      %869 = vst.msk [vmem:[#allocation2 + $0x120] sm:$0xff] %vm831, %v809
      %870 = vst.msk [vmem:[#allocation2 + $0x128] sm:$0xff] %vm831, %v734
      %871 = vst.msk [vmem:[#allocation2 + $0x130] sm:$0x3] %vm834, %v826
      %872 = vst.msk [vmem:[#allocation2 + $0x138] sm:$0xff] %vm831, %v810
      %873 = vst.msk [vmem:[#allocation2 + $0x140] sm:$0xff] %vm831, %v737
      %874 = vst.msk [vmem:[#allocation2 + $0x148] sm:$0x3] %vm834, %v827
      %875 = vst.msk [vmem:[#allocation2 + $0x150] sm:$0xff] %vm831, %v811
      %876 = vst.msk [vmem:[#allocation2 + $0x158] sm:$0xff] %vm831, %v740
      %877 = vst.msk [vmem:[#allocation2 + $0x160] sm:$0x3] %vm834, %v828
      %878 = vst.msk [vmem:[#allocation2 + $0x168] sm:$0xff] %vm831, %v812
      %879 = vst.msk [vmem:[#allocation2 + $0x170] sm:$0xff] %vm831, %v743
      %880 = vst.msk [vmem:[#allocation2 + $0x178] sm:$0x3] %vm834, %v829
      %881 = vst.msk [vmem:[#allocation2 + $0x180] sm:$0xff] %vm831, %v813
      %882 = vst.msk [vmem:[#allocation2 + $0x188] sm:$0xff] %vm831, %v746
      %883 = vst.msk [vmem:[#allocation2 + $0x190] sm:$0x3] %vm834, %v830
      %884 = vst.msk [vmem:[#allocation2 + $0x198] sm:$0xff] %vm831, %v797
      %885 = vst.msk [vmem:[#allocation2 + $0x1a0] sm:$0xff] %vm831, %v698
      %886 = vst.msk [vmem:[#allocation2 + $0x1a8] sm:$0x3] %vm834, %v814
      %v887 = vld [vmem:[#allocation2] sm:$0xff]
      %v888 = vld [vmem:[#allocation2 + $0x8] sm:$0xff]
      %v889 = vld [vmem:[#allocation2 + $0x18] sm:$0xff]
      %v890 = vld [vmem:[#allocation2 + $0x20] sm:$0xff]
      %v891 = vld [vmem:[#allocation2 + $0x30] sm:$0xff]
      %v892 = vld [vmem:[#allocation2 + $0x38] sm:$0xff]
      %v893 = vld [vmem:[#allocation2 + $0x48] sm:$0xff]
      %v894 = vld [vmem:[#allocation2 + $0x50] sm:$0xff]
      %v895 = vld [vmem:[#allocation2 + $0x60] sm:$0xff]
      %v896 = vld [vmem:[#allocation2 + $0x68] sm:$0xff]
      %v897 = vld [vmem:[#allocation2 + $0x78] sm:$0xff]
      %v898 = vld [vmem:[#allocation2 + $0x80] sm:$0xff]
      %v899 = vld [vmem:[#allocation2 + $0x90] sm:$0xff]
      %v900 = vld [vmem:[#allocation2 + $0x98] sm:$0xff]
      %v901 = vld [vmem:[#allocation2 + $0xa8] sm:$0xff]
      %v902 = vld [vmem:[#allocation2 + $0xb0] sm:$0xff]
      %v903 = vld [vmem:[#allocation2 + $0xc0] sm:$0xff]
      %v904 = vld [vmem:[#allocation2 + $0xc8] sm:$0xff]
      %v905 = vld [vmem:[#allocation2 + $0xd8] sm:$0xff]
      %v906 = vld [vmem:[#allocation2 + $0xe0] sm:$0xff]
      %v907 = vld [vmem:[#allocation2 + $0xf0] sm:$0xff]
      %v908 = vld [vmem:[#allocation2 + $0xf8] sm:$0xff]
      %v909 = vld [vmem:[#allocation2 + $0x108] sm:$0xff]
      %v910 = vld [vmem:[#allocation2 + $0x110] sm:$0xff]
      %v911 = vld [vmem:[#allocation2 + $0x120] sm:$0xff]
      %v912 = vld [vmem:[#allocation2 + $0x128] sm:$0xff]
      %v913 = vld [vmem:[#allocation2 + $0x138] sm:$0xff]
      %v914 = vld [vmem:[#allocation2 + $0x140] sm:$0xff]
      %v915 = vld [vmem:[#allocation2 + $0x150] sm:$0xff]
      %v916 = vld [vmem:[#allocation2 + $0x158] sm:$0xff]
      %v917 = vld [vmem:[#allocation2 + $0x168] sm:$0xff]
      %v918 = vld [vmem:[#allocation2 + $0x170] sm:$0xff]
      %v919 = vpack.c.bf16 %v888, %v887
      %v920 = vpack.c.bf16 %v890, %v889
      %v921 = vpack.c.bf16 %v892, %v891
      %v922 = vpack.c.bf16 %v894, %v893
      %v923 = vpack.c.bf16 %v896, %v895
      %v924 = vpack.c.bf16 %v898, %v897
      %v925 = vpack.c.bf16 %v900, %v899
      %v926 = vpack.c.bf16 %v902, %v901
      %v927 = vpack.c.bf16 %v904, %v903
      %v928 = vpack.c.bf16 %v906, %v905
      %v929 = vpack.c.bf16 %v908, %v907
      %v930 = vpack.c.bf16 %v910, %v909
      %v931 = vpack.c.bf16 %v912, %v911
      %v932 = vpack.c.bf16 %v914, %v913
      %v933 = vpack.c.bf16 %v916, %v915
      %v934 = vpack.c.bf16 %v918, %v917
      %v935 = vld [vmem:[%s3] sm:$0xf]
      %v936 = vld [vmem:[%s3 + $0x4] sm:$0xf]
      %v937 = vld [vmem:[%s3 + $0x8] sm:$0xf]
      %v938 = vld [vmem:[%s3 + $0xc] sm:$0xf]
      %v939 = vld [vmem:[%s3 + $0x10] sm:$0xf]
      %v940 = vld [vmem:[%s3 + $0x14] sm:$0xf]
      %v941 = vld [vmem:[%s3 + $0x18] sm:$0xf]
      %v942 = vld [vmem:[%s3 + $0x1c] sm:$0xf]
      %v943 = vld [vmem:[#allocation2 + $0x1] sm:$0xff]
      %v944 = vld [vmem:[#allocation2 + $0x9] sm:$0xff]
      %v945 = vld [vmem:[#allocation2 + $0x19] sm:$0xff]
      %v946 = vld [vmem:[#allocation2 + $0x21] sm:$0xff]
      %v947 = vld [vmem:[#allocation2 + $0x31] sm:$0xff]
      %v948 = vld [vmem:[#allocation2 + $0x39] sm:$0xff]
      %v949 = vld [vmem:[#allocation2 + $0x49] sm:$0xff]
      %v950 = vld [vmem:[#allocation2 + $0x51] sm:$0xff]
      %v951 = vld [vmem:[#allocation2 + $0x61] sm:$0xff]
      %v952 = vld [vmem:[#allocation2 + $0x69] sm:$0xff]
      %v953 = vld [vmem:[#allocation2 + $0x79] sm:$0xff]
      %v954 = vld [vmem:[#allocation2 + $0x81] sm:$0xff]
      %v955 = vld [vmem:[#allocation2 + $0x91] sm:$0xff]
      %v956 = vld [vmem:[#allocation2 + $0x99] sm:$0xff]
      %v957 = vld [vmem:[#allocation2 + $0xa9] sm:$0xff]
      %v958 = vld [vmem:[#allocation2 + $0xb1] sm:$0xff]
      %v959 = vld [vmem:[#allocation2 + $0xc1] sm:$0xff]
      %v960 = vld [vmem:[#allocation2 + $0xc9] sm:$0xff]
      %v961 = vld [vmem:[#allocation2 + $0xd9] sm:$0xff]
      %v962 = vld [vmem:[#allocation2 + $0xe1] sm:$0xff]
      %v963 = vld [vmem:[#allocation2 + $0xf1] sm:$0xff]
      %v964 = vld [vmem:[#allocation2 + $0xf9] sm:$0xff]
      %v965 = vld [vmem:[#allocation2 + $0x109] sm:$0xff]
      %v966 = vld [vmem:[#allocation2 + $0x111] sm:$0xff]
      %v967 = vld [vmem:[#allocation2 + $0x121] sm:$0xff]
      %v968 = vld [vmem:[#allocation2 + $0x129] sm:$0xff]
      %v969 = vld [vmem:[#allocation2 + $0x139] sm:$0xff]
      %v970 = vld [vmem:[#allocation2 + $0x141] sm:$0xff]
      %v971 = vld [vmem:[#allocation2 + $0x151] sm:$0xff]
      %v972 = vld [vmem:[#allocation2 + $0x159] sm:$0xff]
      %v973 = vld [vmem:[#allocation2 + $0x169] sm:$0xff]
      %v974 = vld [vmem:[#allocation2 + $0x171] sm:$0xff]
      %v975 = vpack.c.bf16 %v944, %v943
      %v976 = vpack.c.bf16 %v946, %v945
      %v977 = vpack.c.bf16 %v948, %v947
      %v978 = vpack.c.bf16 %v950, %v949
      %v979 = vpack.c.bf16 %v952, %v951
      %v980 = vpack.c.bf16 %v954, %v953
      %v981 = vpack.c.bf16 %v956, %v955
      %v982 = vpack.c.bf16 %v958, %v957
      %v983 = vpack.c.bf16 %v960, %v959
      %v984 = vpack.c.bf16 %v962, %v961
      %v985 = vpack.c.bf16 %v964, %v963
      %v986 = vpack.c.bf16 %v966, %v965
      %v987 = vpack.c.bf16 %v968, %v967
      %v988 = vpack.c.bf16 %v970, %v969
      %v989 = vpack.c.bf16 %v972, %v971
      %v990 = vpack.c.bf16 %v974, %v973
      %s991 = scalar_lea.vmem %s3, 32
      %v992 = vld [vmem:[%s991] sm:$0xf]
      %v993 = vld [vmem:[%s991 + $0x4] sm:$0xf]
      %v994 = vld [vmem:[%s991 + $0x8] sm:$0xf]
      %v995 = vld [vmem:[%s991 + $0xc] sm:$0xf]
      %v996 = vld [vmem:[%s991 + $0x10] sm:$0xf]
      %v997 = vld [vmem:[%s991 + $0x14] sm:$0xf]
      %v998 = vld [vmem:[%s991 + $0x18] sm:$0xf]
      %v999 = vld [vmem:[%s991 + $0x1c] sm:$0xf]
      %v1008 = vunpack.c.l.b16 %v992
      %v1009 = vunpack.c.l.b16 %v993
      %v1010 = vunpack.c.l.b16 %v994
      %v1011 = vunpack.c.l.b16 %v995
      %v1012 = vunpack.c.l.b16 %v996
      %v1013 = vunpack.c.l.b16 %v997
      %v1014 = vunpack.c.l.b16 %v998
      %v1015 = vunpack.c.l.b16 %v999
      %v1016 = vpack.c.b16 %v1009, %v1008
      %v1017 = vpack.c.b16 %v1011, %v1010
      %v1018 = vpack.c.b16 %v1013, %v1012
      %v1019 = vpack.c.b16 %v1015, %v1014
      %v1025 = vsel %vm831, %v975, 0
      %v1028 = vsel %vm831, %v976, 0
      %v1031 = vsel %vm831, %v977, 0
      %v1034 = vsel %vm831, %v978, 0
      %v1037 = vsel %vm831, %v979, 0
      %v1040 = vsel %vm831, %v980, 0
      %v1043 = vsel %vm831, %v981, 0
      %v1046 = vsel %vm831, %v982, 0
      %v1049 = vsel %vm831, %v983, 0
      %v1052 = vsel %vm831, %v984, 0
      %v1055 = vsel %vm831, %v985, 0
      %v1058 = vsel %vm831, %v986, 0
      %v1061 = vsel %vm831, %v987, 0
      %v1064 = vsel %vm831, %v988, 0
      %v1067 = vsel %vm831, %v989, 0
      %v1070 = vsel %vm831, %v990, 0
      %1072 = vmatprep.subr.bf16.mxu0 0
      %1073 = vmatpush1.bf16.msra.mxu0 0
      %1074 = vmatprep.subr.bf16.mxu0 0
      %1075 = vmatpush1.bf16.msra.mxu0 0
      %1076 = vmatprep.subr.bf16.mxu0 0
      %1077 = vmatpush1.bf16.msra.mxu0 0
      %1078 = vmatprep.subr.bf16.mxu0 0
      %1079 = vmatpush1.bf16.msra.mxu0 0
      %1080 = vmatprep.subr.bf16.mxu0 0
      %1081 = vmatpush1.bf16.msra.mxu0 %v1019
      %1082 = vmatprep.subr.bf16.mxu0 0
      %1083 = vmatpush1.bf16.msra.mxu0 %v1018
      %1084 = vmatprep.subr.bf16.mxu0 0
      %1085 = vmatpush1.bf16.msra.mxu0 %v1017
      %1086 = vmatprep.subr.bf16.mxu0 0
      %1087 = vmatpush1.bf16.msra.mxu0 %v1016
      %1088 = vmatprep.subr.bf16.mxu0 0
      %1089 = vmatpush2.bf16.msra.mxu0 0
      %1090 = vmatprep.subr.bf16.mxu0 0
      %1091 = vmatpush2.bf16.msra.mxu0 0
      %1092 = vmatprep.subr.bf16.mxu0 0
      %1093 = vmatpush2.bf16.msra.mxu0 0
      %1094 = vmatprep.subr.bf16.mxu0 0
      %1095 = vmatpush2.bf16.msra.mxu0 0
      %1096 = vmatprep.subr.bf16.mxu0 0
      %1097 = vmatpush2.bf16.msra.mxu0 0
      %1098 = vmatprep.subr.bf16.mxu0 0
      %1099 = vmatpush2.bf16.msra.mxu0 0
      %1100 = vmatprep.subr.bf16.mxu0 0
      %1101 = vmatpush2.bf16.msra.mxu0 0
      %1102 = vmatprep.subr.bf16.mxu0 0
      %1103 = vmatpush2.bf16.msra.mxu0 0
      %1104 = vmatprep.mubr.bf16.mxu0 0
      %1105 = vmatmul.mubr.bf16.gmra.mxu0 %v1025
      %v1106 = vpop.f32.mrf.mxu0
      %v1107 = vadd.f32 0.0, %v1106
      %v1108 = vpop.f32.mrf.mxu0
      %v1109 = vpop.f32.mrf.mxu0
      %v1110 = vadd.f32 0.0, %v1109
      %v1111 = vpop.f32.mrf.mxu0
      %1112 = vmatprep.mubr.bf16.mxu0 0
      %1113 = vmatmul.mubr.bf16.gmra.mxu0 %v1028
      %v1114 = vpop.f32.mrf.mxu0
      %v1115 = vadd.f32 0.0, %v1114
      %v1116 = vpop.f32.mrf.mxu0
      %v1117 = vpop.f32.mrf.mxu0
      %v1118 = vadd.f32 0.0, %v1117
      %v1119 = vpop.f32.mrf.mxu0
      %1120 = vmatprep.mubr.bf16.mxu0 0
      %1121 = vmatmul.mubr.bf16.gmra.mxu0 %v1031
      %v1122 = vpop.f32.mrf.mxu0
      %v1123 = vadd.f32 0.0, %v1122
      %v1124 = vpop.f32.mrf.mxu0
      %v1125 = vpop.f32.mrf.mxu0
      %v1126 = vadd.f32 0.0, %v1125
      %v1127 = vpop.f32.mrf.mxu0
      %1128 = vmatprep.mubr.bf16.mxu0 0
      %1129 = vmatmul.mubr.bf16.gmra.mxu0 %v1034
      %v1130 = vpop.f32.mrf.mxu0
      %v1131 = vadd.f32 0.0, %v1130
      %v1132 = vpop.f32.mrf.mxu0
      %v1133 = vpop.f32.mrf.mxu0
      %v1134 = vadd.f32 0.0, %v1133
      %v1135 = vpop.f32.mrf.mxu0
      %1136 = vmatprep.mubr.bf16.mxu0 0
      %1137 = vmatmul.mubr.bf16.gmra.mxu0 %v1037
      %v1138 = vpop.f32.mrf.mxu0
      %v1139 = vadd.f32 0.0, %v1138
      %v1140 = vpop.f32.mrf.mxu0
      %v1141 = vpop.f32.mrf.mxu0
      %v1142 = vadd.f32 0.0, %v1141
      %v1143 = vpop.f32.mrf.mxu0
      %1144 = vmatprep.mubr.bf16.mxu0 0
      %1145 = vmatmul.mubr.bf16.gmra.mxu0 %v1040
      %v1146 = vpop.f32.mrf.mxu0
      %v1147 = vadd.f32 0.0, %v1146
      %v1148 = vpop.f32.mrf.mxu0
      %v1149 = vpop.f32.mrf.mxu0
      %v1150 = vadd.f32 0.0, %v1149
      %v1151 = vpop.f32.mrf.mxu0
      %1152 = vmatprep.mubr.bf16.mxu0 0
      %1153 = vmatmul.mubr.bf16.gmra.mxu0 %v1043
      %v1154 = vpop.f32.mrf.mxu0
      %v1155 = vadd.f32 0.0, %v1154
      %v1156 = vpop.f32.mrf.mxu0
      %v1157 = vpop.f32.mrf.mxu0
      %v1158 = vadd.f32 0.0, %v1157
      %v1159 = vpop.f32.mrf.mxu0
      %1160 = vmatprep.mubr.bf16.mxu0 0
      %1161 = vmatmul.mubr.bf16.gmra.mxu0 %v1046
      %v1162 = vpop.f32.mrf.mxu0
      %v1163 = vadd.f32 0.0, %v1162
      %v1164 = vpop.f32.mrf.mxu0
      %v1165 = vpop.f32.mrf.mxu0
      %v1166 = vadd.f32 0.0, %v1165
      %v1167 = vpop.f32.mrf.mxu0
      %1168 = vmatprep.mubr.bf16.mxu0 0
      %1169 = vmatmul.mubr.bf16.gmra.mxu0 %v1049
      %v1170 = vpop.f32.mrf.mxu0
      %v1171 = vadd.f32 0.0, %v1170
      %v1172 = vpop.f32.mrf.mxu0
      %v1173 = vpop.f32.mrf.mxu0
      %v1174 = vadd.f32 0.0, %v1173
      %v1175 = vpop.f32.mrf.mxu0
      %1176 = vmatprep.mubr.bf16.mxu0 0
      %1177 = vmatmul.mubr.bf16.gmra.mxu0 %v1052
      %v1178 = vpop.f32.mrf.mxu0
      %v1179 = vadd.f32 0.0, %v1178
      %v1180 = vpop.f32.mrf.mxu0
      %v1181 = vpop.f32.mrf.mxu0
      %v1182 = vadd.f32 0.0, %v1181
      %v1183 = vpop.f32.mrf.mxu0
      %1184 = vmatprep.mubr.bf16.mxu0 0
      %1185 = vmatmul.mubr.bf16.gmra.mxu0 %v1055
      %v1186 = vpop.f32.mrf.mxu0
      %v1187 = vadd.f32 0.0, %v1186
      %v1188 = vpop.f32.mrf.mxu0
      %v1189 = vpop.f32.mrf.mxu0
      %v1190 = vadd.f32 0.0, %v1189
      %v1191 = vpop.f32.mrf.mxu0
      %1192 = vmatprep.mubr.bf16.mxu0 0
      %1193 = vmatmul.mubr.bf16.gmra.mxu0 %v1058
      %v1194 = vpop.f32.mrf.mxu0
      %v1195 = vadd.f32 0.0, %v1194
      %v1196 = vpop.f32.mrf.mxu0
      %v1197 = vpop.f32.mrf.mxu0
      %v1198 = vadd.f32 0.0, %v1197
      %v1199 = vpop.f32.mrf.mxu0
      %1200 = vmatprep.mubr.bf16.mxu0 0
      %1201 = vmatmul.mubr.bf16.gmra.mxu0 %v1061
      %v1202 = vpop.f32.mrf.mxu0
      %v1203 = vadd.f32 0.0, %v1202
      %v1204 = vpop.f32.mrf.mxu0
      %v1205 = vpop.f32.mrf.mxu0
      %v1206 = vadd.f32 0.0, %v1205
      %v1207 = vpop.f32.mrf.mxu0
      %1208 = vmatprep.mubr.bf16.mxu0 0
      %1209 = vmatmul.mubr.bf16.gmra.mxu0 %v1064
      %v1210 = vpop.f32.mrf.mxu0
      %v1211 = vadd.f32 0.0, %v1210
      %v1212 = vpop.f32.mrf.mxu0
      %v1213 = vpop.f32.mrf.mxu0
      %v1214 = vadd.f32 0.0, %v1213
      %v1215 = vpop.f32.mrf.mxu0
      %1216 = vmatprep.mubr.bf16.mxu0 0
      %1217 = vmatmul.mubr.bf16.gmra.mxu0 %v1067
      %v1218 = vpop.f32.mrf.mxu0
      %v1219 = vadd.f32 0.0, %v1218
      %v1220 = vpop.f32.mrf.mxu0
      %v1221 = vpop.f32.mrf.mxu0
      %v1222 = vadd.f32 0.0, %v1221
      %v1223 = vpop.f32.mrf.mxu0
      %1224 = vmatprep.mubr.bf16.mxu0 0
      %1225 = vmatmul.mubr.bf16.gmra.mxu0 %v1070
      %v1226 = vpop.f32.mrf.mxu0
      %v1227 = vadd.f32 0.0, %v1226
      %v1228 = vpop.f32.mrf.mxu0
      %v1229 = vpop.f32.mrf.mxu0
      %v1230 = vadd.f32 0.0, %v1229
      %v1231 = vpop.f32.mrf.mxu0
      %1232 = vdwg.mxu0
      %v1241 = vunpack.c.l.b16 %v935
      %v1242 = vunpack.c.l.b16 %v936
      %v1243 = vunpack.c.l.b16 %v937
      %v1244 = vunpack.c.l.b16 %v938
      %v1245 = vunpack.c.l.b16 %v939
      %v1246 = vunpack.c.l.b16 %v940
      %v1247 = vunpack.c.l.b16 %v941
      %v1248 = vunpack.c.l.b16 %v942
      %v1249 = vpack.c.b16 %v1242, %v1241
      %v1250 = vpack.c.b16 %v1244, %v1243
      %v1251 = vpack.c.b16 %v1246, %v1245
      %v1252 = vpack.c.b16 %v1248, %v1247
      %v1258 = vsel %vm831, %v919, 0
      %v1261 = vsel %vm831, %v920, 0
      %v1264 = vsel %vm831, %v921, 0
      %v1267 = vsel %vm831, %v922, 0
      %v1270 = vsel %vm831, %v923, 0
      %v1273 = vsel %vm831, %v924, 0
      %v1276 = vsel %vm831, %v925, 0
      %v1279 = vsel %vm831, %v926, 0
      %v1282 = vsel %vm831, %v927, 0
      %v1285 = vsel %vm831, %v928, 0
      %v1288 = vsel %vm831, %v929, 0
      %v1291 = vsel %vm831, %v930, 0
      %v1294 = vsel %vm831, %v931, 0
      %v1297 = vsel %vm831, %v932, 0
      %v1300 = vsel %vm831, %v933, 0
      %v1303 = vsel %vm831, %v934, 0
      %1305 = vmatprep.subr.bf16.mxu0 0
      %1306 = vmatpush1.bf16.msra.mxu0 0
      %1307 = vmatprep.subr.bf16.mxu0 0
      %1308 = vmatpush1.bf16.msra.mxu0 0
      %1309 = vmatprep.subr.bf16.mxu0 0
      %1310 = vmatpush1.bf16.msra.mxu0 0
      %1311 = vmatprep.subr.bf16.mxu0 0
      %1312 = vmatpush1.bf16.msra.mxu0 0
      %1313 = vmatprep.subr.bf16.mxu0 0
      %1314 = vmatpush1.bf16.msra.mxu0 %v1252
      %1315 = vmatprep.subr.bf16.mxu0 0
      %1316 = vmatpush1.bf16.msra.mxu0 %v1251
      %1317 = vmatprep.subr.bf16.mxu0 0
      %1318 = vmatpush1.bf16.msra.mxu0 %v1250
      %1319 = vmatprep.subr.bf16.mxu0 0
      %1320 = vmatpush1.bf16.msra.mxu0 %v1249
      %1321 = vmatprep.subr.bf16.mxu0 0
      %1322 = vmatpush2.bf16.msra.mxu0 0
      %1323 = vmatprep.subr.bf16.mxu0 0
      %1324 = vmatpush2.bf16.msra.mxu0 0
      %1325 = vmatprep.subr.bf16.mxu0 0
      %1326 = vmatpush2.bf16.msra.mxu0 0
      %1327 = vmatprep.subr.bf16.mxu0 0
      %1328 = vmatpush2.bf16.msra.mxu0 0
      %1329 = vmatprep.subr.bf16.mxu0 0
      %1330 = vmatpush2.bf16.msra.mxu0 0
      %1331 = vmatprep.subr.bf16.mxu0 0
      %1332 = vmatpush2.bf16.msra.mxu0 0
      %1333 = vmatprep.subr.bf16.mxu0 0
      %1334 = vmatpush2.bf16.msra.mxu0 0
      %1335 = vmatprep.subr.bf16.mxu0 0
      %1336 = vmatpush2.bf16.msra.mxu0 0
      %1337 = vmatprep.mubr.bf16.mxu0 0
      %1338 = vmatmul.mubr.bf16.gmra.mxu0 %v1258
      %v1339 = vpop.f32.mrf.mxu0
      %v1340 = vadd.f32 %v1107, %v1339
      %v1341 = vpop.f32.mrf.mxu0
      %v1342 = vpop.f32.mrf.mxu0
      %v1343 = vadd.f32 %v1110, %v1342
      %v1344 = vpop.f32.mrf.mxu0
      %1345 = vmatprep.mubr.bf16.mxu0 0
      %1346 = vmatmul.mubr.bf16.gmra.mxu0 %v1261
      %v1347 = vpop.f32.mrf.mxu0
      %v1348 = vadd.f32 %v1115, %v1347
      %v1349 = vpop.f32.mrf.mxu0
      %v1350 = vpop.f32.mrf.mxu0
      %v1351 = vadd.f32 %v1118, %v1350
      %v1352 = vpop.f32.mrf.mxu0
      %1353 = vmatprep.mubr.bf16.mxu0 0
      %1354 = vmatmul.mubr.bf16.gmra.mxu0 %v1264
      %v1355 = vpop.f32.mrf.mxu0
      %v1356 = vadd.f32 %v1123, %v1355
      %v1357 = vpop.f32.mrf.mxu0
      %v1358 = vpop.f32.mrf.mxu0
      %v1359 = vadd.f32 %v1126, %v1358
      %v1360 = vpop.f32.mrf.mxu0
      %1361 = vmatprep.mubr.bf16.mxu0 0
      %1362 = vmatmul.mubr.bf16.gmra.mxu0 %v1267
      %v1363 = vpop.f32.mrf.mxu0
      %v1364 = vadd.f32 %v1131, %v1363
      %v1365 = vpop.f32.mrf.mxu0
      %v1366 = vpop.f32.mrf.mxu0
      %v1367 = vadd.f32 %v1134, %v1366
      %v1368 = vpop.f32.mrf.mxu0
      %1369 = vmatprep.mubr.bf16.mxu0 0
      %1370 = vmatmul.mubr.bf16.gmra.mxu0 %v1270
      %v1371 = vpop.f32.mrf.mxu0
      %v1372 = vadd.f32 %v1139, %v1371
      %v1373 = vpop.f32.mrf.mxu0
      %v1374 = vpop.f32.mrf.mxu0
      %v1375 = vadd.f32 %v1142, %v1374
      %v1376 = vpop.f32.mrf.mxu0
      %1377 = vmatprep.mubr.bf16.mxu0 0
      %1378 = vmatmul.mubr.bf16.gmra.mxu0 %v1273
      %v1379 = vpop.f32.mrf.mxu0
      %v1380 = vadd.f32 %v1147, %v1379
      %v1381 = vpop.f32.mrf.mxu0
      %v1382 = vpop.f32.mrf.mxu0
      %v1383 = vadd.f32 %v1150, %v1382
      %v1384 = vpop.f32.mrf.mxu0
      %1385 = vmatprep.mubr.bf16.mxu0 0
      %1386 = vmatmul.mubr.bf16.gmra.mxu0 %v1276
      %v1387 = vpop.f32.mrf.mxu0
      %v1388 = vadd.f32 %v1155, %v1387
      %v1389 = vpop.f32.mrf.mxu0
      %v1390 = vpop.f32.mrf.mxu0
      %v1391 = vadd.f32 %v1158, %v1390
      %v1392 = vpop.f32.mrf.mxu0
      %1393 = vmatprep.mubr.bf16.mxu0 0
      %1394 = vmatmul.mubr.bf16.gmra.mxu0 %v1279
      %v1395 = vpop.f32.mrf.mxu0
      %v1396 = vadd.f32 %v1163, %v1395
      %v1397 = vpop.f32.mrf.mxu0
      %v1398 = vpop.f32.mrf.mxu0
      %v1399 = vadd.f32 %v1166, %v1398
      %v1400 = vpop.f32.mrf.mxu0
      %1401 = vmatprep.mubr.bf16.mxu0 0
      %1402 = vmatmul.mubr.bf16.gmra.mxu0 %v1282
      %v1403 = vpop.f32.mrf.mxu0
      %v1404 = vadd.f32 %v1171, %v1403
      %v1405 = vpop.f32.mrf.mxu0
      %v1406 = vpop.f32.mrf.mxu0
      %v1407 = vadd.f32 %v1174, %v1406
      %v1408 = vpop.f32.mrf.mxu0
      %1409 = vmatprep.mubr.bf16.mxu0 0
      %1410 = vmatmul.mubr.bf16.gmra.mxu0 %v1285
      %v1411 = vpop.f32.mrf.mxu0
      %v1412 = vadd.f32 %v1179, %v1411
      %v1413 = vpop.f32.mrf.mxu0
      %v1414 = vpop.f32.mrf.mxu0
      %v1415 = vadd.f32 %v1182, %v1414
      %v1416 = vpop.f32.mrf.mxu0
      %1417 = vmatprep.mubr.bf16.mxu0 0
      %1418 = vmatmul.mubr.bf16.gmra.mxu0 %v1288
      %v1419 = vpop.f32.mrf.mxu0
      %v1420 = vadd.f32 %v1187, %v1419
      %v1421 = vpop.f32.mrf.mxu0
      %v1422 = vpop.f32.mrf.mxu0
      %v1423 = vadd.f32 %v1190, %v1422
      %v1424 = vpop.f32.mrf.mxu0
      %1425 = vmatprep.mubr.bf16.mxu0 0
      %1426 = vmatmul.mubr.bf16.gmra.mxu0 %v1291
      %v1427 = vpop.f32.mrf.mxu0
      %v1428 = vadd.f32 %v1195, %v1427
      %v1429 = vpop.f32.mrf.mxu0
      %v1430 = vpop.f32.mrf.mxu0
      %v1431 = vadd.f32 %v1198, %v1430
      %v1432 = vpop.f32.mrf.mxu0
      %1433 = vmatprep.mubr.bf16.mxu0 0
      %1434 = vmatmul.mubr.bf16.gmra.mxu0 %v1294
      %v1435 = vpop.f32.mrf.mxu0
      %v1436 = vadd.f32 %v1203, %v1435
      %v1437 = vpop.f32.mrf.mxu0
      %v1438 = vpop.f32.mrf.mxu0
      %v1439 = vadd.f32 %v1206, %v1438
      %v1440 = vpop.f32.mrf.mxu0
      %1441 = vmatprep.mubr.bf16.mxu0 0
      %1442 = vmatmul.mubr.bf16.gmra.mxu0 %v1297
      %v1443 = vpop.f32.mrf.mxu0
      %v1444 = vadd.f32 %v1211, %v1443
      %v1445 = vpop.f32.mrf.mxu0
      %v1446 = vpop.f32.mrf.mxu0
      %v1447 = vadd.f32 %v1214, %v1446
      %v1448 = vpop.f32.mrf.mxu0
      %1449 = vmatprep.mubr.bf16.mxu0 0
      %1450 = vmatmul.mubr.bf16.gmra.mxu0 %v1300
      %v1451 = vpop.f32.mrf.mxu0
      %v1452 = vadd.f32 %v1219, %v1451
      %v1453 = vpop.f32.mrf.mxu0
      %v1454 = vpop.f32.mrf.mxu0
      %v1455 = vadd.f32 %v1222, %v1454
      %v1456 = vpop.f32.mrf.mxu0
      %1457 = vmatprep.mubr.bf16.mxu0 0
      %1458 = vmatmul.mubr.bf16.gmra.mxu0 %v1303
      %v1459 = vpop.f32.mrf.mxu0
      %v1460 = vadd.f32 %v1227, %v1459
      %v1461 = vpop.f32.mrf.mxu0
      %v1462 = vpop.f32.mrf.mxu0
      %v1463 = vadd.f32 %v1230, %v1462
      %v1464 = vpop.f32.mrf.mxu0
      %1465 = vdwg.mxu0
      %v1466 = vld [vmem:[#allocation2 + $0x2] sm:$0xff]
      %v1467 = vld [vmem:[#allocation2 + $0xa] sm:$0xff]
      %v1468 = vld [vmem:[#allocation2 + $0x1a] sm:$0xff]
      %v1469 = vld [vmem:[#allocation2 + $0x22] sm:$0xff]
      %v1470 = vld [vmem:[#allocation2 + $0x32] sm:$0xff]
      %v1471 = vld [vmem:[#allocation2 + $0x3a] sm:$0xff]
      %v1472 = vld [vmem:[#allocation2 + $0x4a] sm:$0xff]
      %v1473 = vld [vmem:[#allocation2 + $0x52] sm:$0xff]
      %v1474 = vld [vmem:[#allocation2 + $0x62] sm:$0xff]
      %v1475 = vld [vmem:[#allocation2 + $0x6a] sm:$0xff]
      %v1476 = vld [vmem:[#allocation2 + $0x7a] sm:$0xff]
      %v1477 = vld [vmem:[#allocation2 + $0x82] sm:$0xff]
      %v1478 = vld [vmem:[#allocation2 + $0x92] sm:$0xff]
      %v1479 = vld [vmem:[#allocation2 + $0x9a] sm:$0xff]
      %v1480 = vld [vmem:[#allocation2 + $0xaa] sm:$0xff]
      %v1481 = vld [vmem:[#allocation2 + $0xb2] sm:$0xff]
      %v1482 = vld [vmem:[#allocation2 + $0xc2] sm:$0xff]
      %v1483 = vld [vmem:[#allocation2 + $0xca] sm:$0xff]
      %v1484 = vld [vmem:[#allocation2 + $0xda] sm:$0xff]
      %v1485 = vld [vmem:[#allocation2 + $0xe2] sm:$0xff]
      %v1486 = vld [vmem:[#allocation2 + $0xf2] sm:$0xff]
      %v1487 = vld [vmem:[#allocation2 + $0xfa] sm:$0xff]
      %v1488 = vld [vmem:[#allocation2 + $0x10a] sm:$0xff]
      %v1489 = vld [vmem:[#allocation2 + $0x112] sm:$0xff]
      %v1490 = vld [vmem:[#allocation2 + $0x122] sm:$0xff]
      %v1491 = vld [vmem:[#allocation2 + $0x12a] sm:$0xff]
      %v1492 = vld [vmem:[#allocation2 + $0x13a] sm:$0xff]
      %v1493 = vld [vmem:[#allocation2 + $0x142] sm:$0xff]
      %v1494 = vld [vmem:[#allocation2 + $0x152] sm:$0xff]
      %v1495 = vld [vmem:[#allocation2 + $0x15a] sm:$0xff]
      %v1496 = vld [vmem:[#allocation2 + $0x16a] sm:$0xff]
      %v1497 = vld [vmem:[#allocation2 + $0x172] sm:$0xff]
      %v1498 = vpack.c.bf16 %v1467, %v1466
      %v1499 = vpack.c.bf16 %v1469, %v1468
      %v1500 = vpack.c.bf16 %v1471, %v1470
      %v1501 = vpack.c.bf16 %v1473, %v1472
      %v1502 = vpack.c.bf16 %v1475, %v1474
      %v1503 = vpack.c.bf16 %v1477, %v1476
      %v1504 = vpack.c.bf16 %v1479, %v1478
      %v1505 = vpack.c.bf16 %v1481, %v1480
      %v1506 = vpack.c.bf16 %v1483, %v1482
      %v1507 = vpack.c.bf16 %v1485, %v1484
      %v1508 = vpack.c.bf16 %v1487, %v1486
      %v1509 = vpack.c.bf16 %v1489, %v1488
      %v1510 = vpack.c.bf16 %v1491, %v1490
      %v1511 = vpack.c.bf16 %v1493, %v1492
      %v1512 = vpack.c.bf16 %v1495, %v1494
      %v1513 = vpack.c.bf16 %v1497, %v1496
      %s1514 = scalar_lea.vmem %s3, 64
      %v1515 = vld [vmem:[%s1514] sm:$0xf]
      %v1516 = vld [vmem:[%s1514 + $0x4] sm:$0xf]
      %v1517 = vld [vmem:[%s1514 + $0x8] sm:$0xf]
      %v1518 = vld [vmem:[%s1514 + $0xc] sm:$0xf]
      %v1519 = vld [vmem:[%s1514 + $0x10] sm:$0xf]
      %v1520 = vld [vmem:[%s1514 + $0x14] sm:$0xf]
      %v1521 = vld [vmem:[%s1514 + $0x18] sm:$0xf]
      %v1522 = vld [vmem:[%s1514 + $0x1c] sm:$0xf]
      %v1531 = vunpack.c.l.b16 %v1515
      %v1532 = vunpack.c.l.b16 %v1516
      %v1533 = vunpack.c.l.b16 %v1517
      %v1534 = vunpack.c.l.b16 %v1518
      %v1535 = vunpack.c.l.b16 %v1519
      %v1536 = vunpack.c.l.b16 %v1520
      %v1537 = vunpack.c.l.b16 %v1521
      %v1538 = vunpack.c.l.b16 %v1522
      %v1539 = vpack.c.b16 %v1532, %v1531
      %v1540 = vpack.c.b16 %v1534, %v1533
      %v1541 = vpack.c.b16 %v1536, %v1535
      %v1542 = vpack.c.b16 %v1538, %v1537
      %v1548 = vsel %vm831, %v1498, 0
      %v1551 = vsel %vm831, %v1499, 0
      %v1554 = vsel %vm831, %v1500, 0
      %v1557 = vsel %vm831, %v1501, 0
      %v1560 = vsel %vm831, %v1502, 0
      %v1563 = vsel %vm831, %v1503, 0
      %v1566 = vsel %vm831, %v1504, 0
      %v1569 = vsel %vm831, %v1505, 0
      %v1572 = vsel %vm831, %v1506, 0
      %v1575 = vsel %vm831, %v1507, 0
      %v1578 = vsel %vm831, %v1508, 0
      %v1581 = vsel %vm831, %v1509, 0
      %v1584 = vsel %vm831, %v1510, 0
      %v1587 = vsel %vm831, %v1511, 0
      %v1590 = vsel %vm831, %v1512, 0
      %v1593 = vsel %vm831, %v1513, 0
      %1595 = vmatprep.subr.bf16.mxu0 0
      %1596 = vmatpush1.bf16.msra.mxu0 0
      %1597 = vmatprep.subr.bf16.mxu0 0
      %1598 = vmatpush1.bf16.msra.mxu0 0
      %1599 = vmatprep.subr.bf16.mxu0 0
      %1600 = vmatpush1.bf16.msra.mxu0 0
      %1601 = vmatprep.subr.bf16.mxu0 0
      %1602 = vmatpush1.bf16.msra.mxu0 0
      %1603 = vmatprep.subr.bf16.mxu0 0
      %1604 = vmatpush1.bf16.msra.mxu0 %v1542
      %1605 = vmatprep.subr.bf16.mxu0 0
      %1606 = vmatpush1.bf16.msra.mxu0 %v1541
      %1607 = vmatprep.subr.bf16.mxu0 0
      %1608 = vmatpush1.bf16.msra.mxu0 %v1540
      %1609 = vmatprep.subr.bf16.mxu0 0
      %1610 = vmatpush1.bf16.msra.mxu0 %v1539
      %1611 = vmatprep.subr.bf16.mxu0 0
      %1612 = vmatpush2.bf16.msra.mxu0 0
      %1613 = vmatprep.subr.bf16.mxu0 0
      %1614 = vmatpush2.bf16.msra.mxu0 0
      %1615 = vmatprep.subr.bf16.mxu0 0
      %1616 = vmatpush2.bf16.msra.mxu0 0
      %1617 = vmatprep.subr.bf16.mxu0 0
      %1618 = vmatpush2.bf16.msra.mxu0 0
      %1619 = vmatprep.subr.bf16.mxu0 0
      %1620 = vmatpush2.bf16.msra.mxu0 0
      %1621 = vmatprep.subr.bf16.mxu0 0
      %1622 = vmatpush2.bf16.msra.mxu0 0
      %1623 = vmatprep.subr.bf16.mxu0 0
      %1624 = vmatpush2.bf16.msra.mxu0 0
      %1625 = vmatprep.subr.bf16.mxu0 0
      %1626 = vmatpush2.bf16.msra.mxu0 0
      %1627 = vmatprep.mubr.bf16.mxu0 0
      %1628 = vmatmul.mubr.bf16.gmra.mxu0 %v1548
      %v1629 = vpop.f32.mrf.mxu0
      %v1630 = vadd.f32 0.0, %v1629
      %v1631 = vpop.f32.mrf.mxu0
      %v1632 = vpop.f32.mrf.mxu0
      %v1633 = vadd.f32 0.0, %v1632
      %v1634 = vpop.f32.mrf.mxu0
      %1635 = vmatprep.mubr.bf16.mxu0 0
      %1636 = vmatmul.mubr.bf16.gmra.mxu0 %v1551
      %v1637 = vpop.f32.mrf.mxu0
      %v1638 = vadd.f32 0.0, %v1637
      %v1639 = vpop.f32.mrf.mxu0
      %v1640 = vpop.f32.mrf.mxu0
      %v1641 = vadd.f32 0.0, %v1640
      %v1642 = vpop.f32.mrf.mxu0
      %1643 = vmatprep.mubr.bf16.mxu0 0
      %1644 = vmatmul.mubr.bf16.gmra.mxu0 %v1554
      %v1645 = vpop.f32.mrf.mxu0
      %v1646 = vadd.f32 0.0, %v1645
      %v1647 = vpop.f32.mrf.mxu0
      %v1648 = vpop.f32.mrf.mxu0
      %v1649 = vadd.f32 0.0, %v1648
      %v1650 = vpop.f32.mrf.mxu0
      %1651 = vmatprep.mubr.bf16.mxu0 0
      %1652 = vmatmul.mubr.bf16.gmra.mxu0 %v1557
      %v1653 = vpop.f32.mrf.mxu0
      %v1654 = vadd.f32 0.0, %v1653
      %v1655 = vpop.f32.mrf.mxu0
      %v1656 = vpop.f32.mrf.mxu0
      %v1657 = vadd.f32 0.0, %v1656
      %v1658 = vpop.f32.mrf.mxu0
      %1659 = vmatprep.mubr.bf16.mxu0 0
      %1660 = vmatmul.mubr.bf16.gmra.mxu0 %v1560
      %v1661 = vpop.f32.mrf.mxu0
      %v1662 = vadd.f32 0.0, %v1661
      %v1663 = vpop.f32.mrf.mxu0
      %v1664 = vpop.f32.mrf.mxu0
      %v1665 = vadd.f32 0.0, %v1664
      %v1666 = vpop.f32.mrf.mxu0
      %1667 = vmatprep.mubr.bf16.mxu0 0
      %1668 = vmatmul.mubr.bf16.gmra.mxu0 %v1563
      %v1669 = vpop.f32.mrf.mxu0
      %v1670 = vadd.f32 0.0, %v1669
      %v1671 = vpop.f32.mrf.mxu0
      %v1672 = vpop.f32.mrf.mxu0
      %v1673 = vadd.f32 0.0, %v1672
      %v1674 = vpop.f32.mrf.mxu0
      %1675 = vmatprep.mubr.bf16.mxu0 0
      %1676 = vmatmul.mubr.bf16.gmra.mxu0 %v1566
      %v1677 = vpop.f32.mrf.mxu0
      %v1678 = vadd.f32 0.0, %v1677
      %v1679 = vpop.f32.mrf.mxu0
      %v1680 = vpop.f32.mrf.mxu0
      %v1681 = vadd.f32 0.0, %v1680
      %v1682 = vpop.f32.mrf.mxu0
      %1683 = vmatprep.mubr.bf16.mxu0 0
      %1684 = vmatmul.mubr.bf16.gmra.mxu0 %v1569
      %v1685 = vpop.f32.mrf.mxu0
      %v1686 = vadd.f32 0.0, %v1685
      %v1687 = vpop.f32.mrf.mxu0
      %v1688 = vpop.f32.mrf.mxu0
      %v1689 = vadd.f32 0.0, %v1688
      %v1690 = vpop.f32.mrf.mxu0
      %1691 = vmatprep.mubr.bf16.mxu0 0
      %1692 = vmatmul.mubr.bf16.gmra.mxu0 %v1572
      %v1693 = vpop.f32.mrf.mxu0
      %v1694 = vadd.f32 0.0, %v1693
      %v1695 = vpop.f32.mrf.mxu0
      %v1696 = vpop.f32.mrf.mxu0
      %v1697 = vadd.f32 0.0, %v1696
      %v1698 = vpop.f32.mrf.mxu0
      %1699 = vmatprep.mubr.bf16.mxu0 0
      %1700 = vmatmul.mubr.bf16.gmra.mxu0 %v1575
      %v1701 = vpop.f32.mrf.mxu0
      %v1702 = vadd.f32 0.0, %v1701
      %v1703 = vpop.f32.mrf.mxu0
      %v1704 = vpop.f32.mrf.mxu0
      %v1705 = vadd.f32 0.0, %v1704
      %v1706 = vpop.f32.mrf.mxu0
      %1707 = vmatprep.mubr.bf16.mxu0 0
      %1708 = vmatmul.mubr.bf16.gmra.mxu0 %v1578
      %v1709 = vpop.f32.mrf.mxu0
      %v1710 = vadd.f32 0.0, %v1709
      %v1711 = vpop.f32.mrf.mxu0
      %v1712 = vpop.f32.mrf.mxu0
      %v1713 = vadd.f32 0.0, %v1712
      %v1714 = vpop.f32.mrf.mxu0
      %1715 = vmatprep.mubr.bf16.mxu0 0
      %1716 = vmatmul.mubr.bf16.gmra.mxu0 %v1581
      %v1717 = vpop.f32.mrf.mxu0
      %v1718 = vadd.f32 0.0, %v1717
      %v1719 = vpop.f32.mrf.mxu0
      %v1720 = vpop.f32.mrf.mxu0
      %v1721 = vadd.f32 0.0, %v1720
      %v1722 = vpop.f32.mrf.mxu0
      %1723 = vmatprep.mubr.bf16.mxu0 0
      %1724 = vmatmul.mubr.bf16.gmra.mxu0 %v1584
      %v1725 = vpop.f32.mrf.mxu0
      %v1726 = vadd.f32 0.0, %v1725
      %v1727 = vpop.f32.mrf.mxu0
      %v1728 = vpop.f32.mrf.mxu0
      %v1729 = vadd.f32 0.0, %v1728
      %v1730 = vpop.f32.mrf.mxu0
      %1731 = vmatprep.mubr.bf16.mxu0 0
      %1732 = vmatmul.mubr.bf16.gmra.mxu0 %v1587
      %v1733 = vpop.f32.mrf.mxu0
      %v1734 = vadd.f32 0.0, %v1733
      %v1735 = vpop.f32.mrf.mxu0
      %v1736 = vpop.f32.mrf.mxu0
      %v1737 = vadd.f32 0.0, %v1736
      %v1738 = vpop.f32.mrf.mxu0
      %1739 = vmatprep.mubr.bf16.mxu0 0
      %1740 = vmatmul.mubr.bf16.gmra.mxu0 %v1590
      %v1741 = vpop.f32.mrf.mxu0
      %v1742 = vadd.f32 0.0, %v1741
      %v1743 = vpop.f32.mrf.mxu0
      %v1744 = vpop.f32.mrf.mxu0
      %v1745 = vadd.f32 0.0, %v1744
      %v1746 = vpop.f32.mrf.mxu0
      %1747 = vmatprep.mubr.bf16.mxu0 0
      %1748 = vmatmul.mubr.bf16.gmra.mxu0 %v1593
      %v1749 = vpop.f32.mrf.mxu0
      %v1750 = vadd.f32 0.0, %v1749
      %v1751 = vpop.f32.mrf.mxu0
      %v1752 = vpop.f32.mrf.mxu0
      %v1753 = vadd.f32 0.0, %v1752
      %v1754 = vpop.f32.mrf.mxu0
      %1755 = vdwg.mxu0
      %v1756 = vadd.f32 %v1340, %v1630
      %v1757 = vadd.f32 %v1343, %v1633
      %v1758 = vadd.f32 %v1348, %v1638
      %v1759 = vadd.f32 %v1351, %v1641
      %v1760 = vadd.f32 %v1356, %v1646
      %v1761 = vadd.f32 %v1359, %v1649
      %v1762 = vadd.f32 %v1364, %v1654
      %v1763 = vadd.f32 %v1367, %v1657
      %v1764 = vadd.f32 %v1372, %v1662
      %v1765 = vadd.f32 %v1375, %v1665
      %v1766 = vadd.f32 %v1380, %v1670
      %v1767 = vadd.f32 %v1383, %v1673
      %v1768 = vadd.f32 %v1388, %v1678
      %v1769 = vadd.f32 %v1391, %v1681
      %v1770 = vadd.f32 %v1396, %v1686
      %v1771 = vadd.f32 %v1399, %v1689
      %v1772 = vadd.f32 %v1404, %v1694
      %v1773 = vadd.f32 %v1407, %v1697
      %v1774 = vadd.f32 %v1412, %v1702
      %v1775 = vadd.f32 %v1415, %v1705
      %v1776 = vadd.f32 %v1420, %v1710
      %v1777 = vadd.f32 %v1423, %v1713
      %v1778 = vadd.f32 %v1428, %v1718
      %v1779 = vadd.f32 %v1431, %v1721
      %v1780 = vadd.f32 %v1436, %v1726
      %v1781 = vadd.f32 %v1439, %v1729
      %v1782 = vadd.f32 %v1444, %v1734
      %v1783 = vadd.f32 %v1447, %v1737
      %v1784 = vadd.f32 %v1452, %v1742
      %v1785 = vadd.f32 %v1455, %v1745
      %v1786 = vadd.f32 %v1460, %v1750
      %v1787 = vadd.f32 %v1463, %v1753
      %s1788 = scalar_lea.vmem [#allocation2], 24
      %v1789 = vld [vmem:[%s1788] sm:$0xff]
      %v1790 = vld [vmem:[%s1788 + $0x8] sm:$0xff]
      %v1791 = vld [vmem:[%s1788 + $0x18] sm:$0xff]
      %v1792 = vld [vmem:[%s1788 + $0x20] sm:$0xff]
      %v1793 = vld [vmem:[%s1788 + $0x30] sm:$0xff]
      %v1794 = vld [vmem:[%s1788 + $0x38] sm:$0xff]
      %v1795 = vld [vmem:[%s1788 + $0x48] sm:$0xff]
      %v1796 = vld [vmem:[%s1788 + $0x50] sm:$0xff]
      %v1797 = vld [vmem:[%s1788 + $0x60] sm:$0xff]
      %v1798 = vld [vmem:[%s1788 + $0x68] sm:$0xff]
      %v1799 = vld [vmem:[%s1788 + $0x78] sm:$0xff]
      %v1800 = vld [vmem:[%s1788 + $0x80] sm:$0xff]
      %v1801 = vld [vmem:[%s1788 + $0x90] sm:$0xff]
      %v1802 = vld [vmem:[%s1788 + $0x98] sm:$0xff]
      %v1803 = vld [vmem:[%s1788 + $0xa8] sm:$0xff]
      %v1804 = vld [vmem:[%s1788 + $0xb0] sm:$0xff]
      %v1805 = vld [vmem:[%s1788 + $0xc0] sm:$0xff]
      %v1806 = vld [vmem:[%s1788 + $0xc8] sm:$0xff]
      %v1807 = vld [vmem:[%s1788 + $0xd8] sm:$0xff]
      %v1808 = vld [vmem:[%s1788 + $0xe0] sm:$0xff]
      %v1809 = vld [vmem:[%s1788 + $0xf0] sm:$0xff]
      %v1810 = vld [vmem:[%s1788 + $0xf8] sm:$0xff]
      %v1811 = vld [vmem:[%s1788 + $0x108] sm:$0xff]
      %v1812 = vld [vmem:[%s1788 + $0x110] sm:$0xff]
      %v1813 = vld [vmem:[%s1788 + $0x120] sm:$0xff]
      %v1814 = vld [vmem:[%s1788 + $0x128] sm:$0xff]
      %v1815 = vld [vmem:[%s1788 + $0x138] sm:$0xff]
      %v1816 = vld [vmem:[%s1788 + $0x140] sm:$0xff]
      %v1817 = vld [vmem:[%s1788 + $0x150] sm:$0xff]
      %v1818 = vld [vmem:[%s1788 + $0x158] sm:$0xff]
      %v1819 = vld [vmem:[%s1788 + $0x168] sm:$0xff]
      %v1820 = vld [vmem:[%s1788 + $0x170] sm:$0xff]
      %v1821 = vpack.c.bf16 %v1790, %v1789
      %v1822 = vpack.c.bf16 %v1792, %v1791
      %v1823 = vpack.c.bf16 %v1794, %v1793
      %v1824 = vpack.c.bf16 %v1796, %v1795
      %v1825 = vpack.c.bf16 %v1798, %v1797
      %v1826 = vpack.c.bf16 %v1800, %v1799
      %v1827 = vpack.c.bf16 %v1802, %v1801
      %v1828 = vpack.c.bf16 %v1804, %v1803
      %v1829 = vpack.c.bf16 %v1806, %v1805
      %v1830 = vpack.c.bf16 %v1808, %v1807
      %v1831 = vpack.c.bf16 %v1810, %v1809
      %v1832 = vpack.c.bf16 %v1812, %v1811
      %v1833 = vpack.c.bf16 %v1814, %v1813
      %v1834 = vpack.c.bf16 %v1816, %v1815
      %v1835 = vpack.c.bf16 %v1818, %v1817
      %v1836 = vpack.c.bf16 %v1820, %v1819
      %s1837 = scalar_lea.vmem %s3, 96
      %v1838 = vld [vmem:[%s1837] sm:$0xf]
      %v1839 = vld [vmem:[%s1837 + $0x4] sm:$0xf]
      %v1840 = vld [vmem:[%s1837 + $0x8] sm:$0xf]
      %v1841 = vld [vmem:[%s1837 + $0xc] sm:$0xf]
      %v1842 = vld [vmem:[%s1837 + $0x10] sm:$0xf]
      %v1843 = vld [vmem:[%s1837 + $0x14] sm:$0xf]
      %v1844 = vld [vmem:[%s1837 + $0x18] sm:$0xf]
      %v1845 = vld [vmem:[%s1837 + $0x1c] sm:$0xf]
      %v1854 = vunpack.c.l.b16 %v1838
      %v1855 = vunpack.c.l.b16 %v1839
      %v1856 = vunpack.c.l.b16 %v1840
      %v1857 = vunpack.c.l.b16 %v1841
      %v1858 = vunpack.c.l.b16 %v1842
      %v1859 = vunpack.c.l.b16 %v1843
      %v1860 = vunpack.c.l.b16 %v1844
      %v1861 = vunpack.c.l.b16 %v1845
      %v1862 = vpack.c.b16 %v1855, %v1854
      %v1863 = vpack.c.b16 %v1857, %v1856
      %v1864 = vpack.c.b16 %v1859, %v1858
      %v1865 = vpack.c.b16 %v1861, %v1860
      %v1871 = vsel %vm831, %v1821, 0
      %v1874 = vsel %vm831, %v1822, 0
      %v1877 = vsel %vm831, %v1823, 0
      %v1880 = vsel %vm831, %v1824, 0
      %v1883 = vsel %vm831, %v1825, 0
      %v1886 = vsel %vm831, %v1826, 0
      %v1889 = vsel %vm831, %v1827, 0
      %v1892 = vsel %vm831, %v1828, 0
      %v1895 = vsel %vm831, %v1829, 0
      %v1898 = vsel %vm831, %v1830, 0
      %v1901 = vsel %vm831, %v1831, 0
      %v1904 = vsel %vm831, %v1832, 0
      %v1907 = vsel %vm831, %v1833, 0
      %v1910 = vsel %vm831, %v1834, 0
      %v1913 = vsel %vm831, %v1835, 0
      %v1916 = vsel %vm831, %v1836, 0
      %1918 = vmatprep.subr.bf16.mxu0 0
      %1919 = vmatpush1.bf16.msra.mxu0 0
      %1920 = vmatprep.subr.bf16.mxu0 0
      %1921 = vmatpush1.bf16.msra.mxu0 0
      %1922 = vmatprep.subr.bf16.mxu0 0
      %1923 = vmatpush1.bf16.msra.mxu0 0
      %1924 = vmatprep.subr.bf16.mxu0 0
      %1925 = vmatpush1.bf16.msra.mxu0 0
      %1926 = vmatprep.subr.bf16.mxu0 0
      %1927 = vmatpush1.bf16.msra.mxu0 %v1865
      %1928 = vmatprep.subr.bf16.mxu0 0
      %1929 = vmatpush1.bf16.msra.mxu0 %v1864
      %1930 = vmatprep.subr.bf16.mxu0 0
      %1931 = vmatpush1.bf16.msra.mxu0 %v1863
      %1932 = vmatprep.subr.bf16.mxu0 0
      %1933 = vmatpush1.bf16.msra.mxu0 %v1862
      %1934 = vmatprep.subr.bf16.mxu0 0
      %1935 = vmatpush2.bf16.msra.mxu0 0
      %1936 = vmatprep.subr.bf16.mxu0 0
      %1937 = vmatpush2.bf16.msra.mxu0 0
      %1938 = vmatprep.subr.bf16.mxu0 0
      %1939 = vmatpush2.bf16.msra.mxu0 0
      %1940 = vmatprep.subr.bf16.mxu0 0
      %1941 = vmatpush2.bf16.msra.mxu0 0
      %1942 = vmatprep.subr.bf16.mxu0 0
      %1943 = vmatpush2.bf16.msra.mxu0 0
      %1944 = vmatprep.subr.bf16.mxu0 0
      %1945 = vmatpush2.bf16.msra.mxu0 0
      %1946 = vmatprep.subr.bf16.mxu0 0
      %1947 = vmatpush2.bf16.msra.mxu0 0
      %1948 = vmatprep.subr.bf16.mxu0 0
      %1949 = vmatpush2.bf16.msra.mxu0 0
      %1950 = vmatprep.mubr.bf16.mxu0 0
      %1951 = vmatmul.mubr.bf16.gmra.mxu0 %v1871
      %v1952 = vpop.f32.mrf.mxu0
      %v1953 = vadd.f32 0.0, %v1952
      %v1954 = vpop.f32.mrf.mxu0
      %v1955 = vpop.f32.mrf.mxu0
      %v1956 = vadd.f32 0.0, %v1955
      %v1957 = vpop.f32.mrf.mxu0
      %1958 = vmatprep.mubr.bf16.mxu0 0
      %1959 = vmatmul.mubr.bf16.gmra.mxu0 %v1874
      %v1960 = vpop.f32.mrf.mxu0
      %v1961 = vadd.f32 0.0, %v1960
      %v1962 = vpop.f32.mrf.mxu0
      %v1963 = vpop.f32.mrf.mxu0
      %v1964 = vadd.f32 0.0, %v1963
      %v1965 = vpop.f32.mrf.mxu0
      %1966 = vmatprep.mubr.bf16.mxu0 0
      %1967 = vmatmul.mubr.bf16.gmra.mxu0 %v1877
      %v1968 = vpop.f32.mrf.mxu0
      %v1969 = vadd.f32 0.0, %v1968
      %v1970 = vpop.f32.mrf.mxu0
      %v1971 = vpop.f32.mrf.mxu0
      %v1972 = vadd.f32 0.0, %v1971
      %v1973 = vpop.f32.mrf.mxu0
      %1974 = vmatprep.mubr.bf16.mxu0 0
      %1975 = vmatmul.mubr.bf16.gmra.mxu0 %v1880
      %v1976 = vpop.f32.mrf.mxu0
      %v1977 = vadd.f32 0.0, %v1976
      %v1978 = vpop.f32.mrf.mxu0
      %v1979 = vpop.f32.mrf.mxu0
      %v1980 = vadd.f32 0.0, %v1979
      %v1981 = vpop.f32.mrf.mxu0
      %1982 = vmatprep.mubr.bf16.mxu0 0
      %1983 = vmatmul.mubr.bf16.gmra.mxu0 %v1883
      %v1984 = vpop.f32.mrf.mxu0
      %v1985 = vadd.f32 0.0, %v1984
      %v1986 = vpop.f32.mrf.mxu0
      %v1987 = vpop.f32.mrf.mxu0
      %v1988 = vadd.f32 0.0, %v1987
      %v1989 = vpop.f32.mrf.mxu0
      %1990 = vmatprep.mubr.bf16.mxu0 0
      %1991 = vmatmul.mubr.bf16.gmra.mxu0 %v1886
      %v1992 = vpop.f32.mrf.mxu0
      %v1993 = vadd.f32 0.0, %v1992
      %v1994 = vpop.f32.mrf.mxu0
      %v1995 = vpop.f32.mrf.mxu0
      %v1996 = vadd.f32 0.0, %v1995
      %v1997 = vpop.f32.mrf.mxu0
      %1998 = vmatprep.mubr.bf16.mxu0 0
      %1999 = vmatmul.mubr.bf16.gmra.mxu0 %v1889
      %v2000 = vpop.f32.mrf.mxu0
      %v2001 = vadd.f32 0.0, %v2000
      %v2002 = vpop.f32.mrf.mxu0
      %v2003 = vpop.f32.mrf.mxu0
      %v2004 = vadd.f32 0.0, %v2003
      %v2005 = vpop.f32.mrf.mxu0
      %2006 = vmatprep.mubr.bf16.mxu0 0
      %2007 = vmatmul.mubr.bf16.gmra.mxu0 %v1892
      %v2008 = vpop.f32.mrf.mxu0
      %v2009 = vadd.f32 0.0, %v2008
      %v2010 = vpop.f32.mrf.mxu0
      %v2011 = vpop.f32.mrf.mxu0
      %v2012 = vadd.f32 0.0, %v2011
      %v2013 = vpop.f32.mrf.mxu0
      %2014 = vmatprep.mubr.bf16.mxu0 0
      %2015 = vmatmul.mubr.bf16.gmra.mxu0 %v1895
      %v2016 = vpop.f32.mrf.mxu0
      %v2017 = vadd.f32 0.0, %v2016
      %v2018 = vpop.f32.mrf.mxu0
      %v2019 = vpop.f32.mrf.mxu0
      %v2020 = vadd.f32 0.0, %v2019
      %v2021 = vpop.f32.mrf.mxu0
      %2022 = vmatprep.mubr.bf16.mxu0 0
      %2023 = vmatmul.mubr.bf16.gmra.mxu0 %v1898
      %v2024 = vpop.f32.mrf.mxu0
      %v2025 = vadd.f32 0.0, %v2024
      %v2026 = vpop.f32.mrf.mxu0
      %v2027 = vpop.f32.mrf.mxu0
      %v2028 = vadd.f32 0.0, %v2027
      %v2029 = vpop.f32.mrf.mxu0
      %2030 = vmatprep.mubr.bf16.mxu0 0
      %2031 = vmatmul.mubr.bf16.gmra.mxu0 %v1901
      %v2032 = vpop.f32.mrf.mxu0
      %v2033 = vadd.f32 0.0, %v2032
      %v2034 = vpop.f32.mrf.mxu0
      %v2035 = vpop.f32.mrf.mxu0
      %v2036 = vadd.f32 0.0, %v2035
      %v2037 = vpop.f32.mrf.mxu0
      %2038 = vmatprep.mubr.bf16.mxu0 0
      %2039 = vmatmul.mubr.bf16.gmra.mxu0 %v1904
      %v2040 = vpop.f32.mrf.mxu0
      %v2041 = vadd.f32 0.0, %v2040
      %v2042 = vpop.f32.mrf.mxu0
      %v2043 = vpop.f32.mrf.mxu0
      %v2044 = vadd.f32 0.0, %v2043
      %v2045 = vpop.f32.mrf.mxu0
      %2046 = vmatprep.mubr.bf16.mxu0 0
      %2047 = vmatmul.mubr.bf16.gmra.mxu0 %v1907
      %v2048 = vpop.f32.mrf.mxu0
      %v2049 = vadd.f32 0.0, %v2048
      %v2050 = vpop.f32.mrf.mxu0
      %v2051 = vpop.f32.mrf.mxu0
      %v2052 = vadd.f32 0.0, %v2051
      %v2053 = vpop.f32.mrf.mxu0
      %2054 = vmatprep.mubr.bf16.mxu0 0
      %2055 = vmatmul.mubr.bf16.gmra.mxu0 %v1910
      %v2056 = vpop.f32.mrf.mxu0
      %v2057 = vadd.f32 0.0, %v2056
      %v2058 = vpop.f32.mrf.mxu0
      %v2059 = vpop.f32.mrf.mxu0
      %v2060 = vadd.f32 0.0, %v2059
      %v2061 = vpop.f32.mrf.mxu0
      %2062 = vmatprep.mubr.bf16.mxu0 0
      %2063 = vmatmul.mubr.bf16.gmra.mxu0 %v1913
      %v2064 = vpop.f32.mrf.mxu0
      %v2065 = vadd.f32 0.0, %v2064
      %v2066 = vpop.f32.mrf.mxu0
      %v2067 = vpop.f32.mrf.mxu0
      %v2068 = vadd.f32 0.0, %v2067
      %v2069 = vpop.f32.mrf.mxu0
      %2070 = vmatprep.mubr.bf16.mxu0 0
      %2071 = vmatmul.mubr.bf16.gmra.mxu0 %v1916
      %v2072 = vpop.f32.mrf.mxu0
      %v2073 = vadd.f32 0.0, %v2072
      %v2074 = vpop.f32.mrf.mxu0
      %v2075 = vpop.f32.mrf.mxu0
      %v2076 = vadd.f32 0.0, %v2075
      %v2077 = vpop.f32.mrf.mxu0
      %2078 = vdwg.mxu0
      %v2079 = vadd.f32 %v1756, %v1953
      %v2080 = vadd.f32 %v1757, %v1956
      %v2081 = vadd.f32 %v1758, %v1961
      %v2082 = vadd.f32 %v1759, %v1964
      %v2083 = vadd.f32 %v1760, %v1969
      %v2084 = vadd.f32 %v1761, %v1972
      %v2085 = vadd.f32 %v1762, %v1977
      %v2086 = vadd.f32 %v1763, %v1980
      %v2087 = vadd.f32 %v1764, %v1985
      %v2088 = vadd.f32 %v1765, %v1988
      %v2089 = vadd.f32 %v1766, %v1993
      %v2090 = vadd.f32 %v1767, %v1996
      %v2091 = vadd.f32 %v1768, %v2001
      %v2092 = vadd.f32 %v1769, %v2004
      %v2093 = vadd.f32 %v1770, %v2009
      %v2094 = vadd.f32 %v1771, %v2012
      %v2095 = vadd.f32 %v1772, %v2017
      %v2096 = vadd.f32 %v1773, %v2020
      %v2097 = vadd.f32 %v1774, %v2025
      %v2098 = vadd.f32 %v1775, %v2028
      %v2099 = vadd.f32 %v1776, %v2033
      %v2100 = vadd.f32 %v1777, %v2036
      %v2101 = vadd.f32 %v1778, %v2041
      %v2102 = vadd.f32 %v1779, %v2044
      %v2103 = vadd.f32 %v1780, %v2049
      %v2104 = vadd.f32 %v1781, %v2052
      %v2105 = vadd.f32 %v1782, %v2057
      %v2106 = vadd.f32 %v1783, %v2060
      %v2107 = vadd.f32 %v1784, %v2065
      %v2108 = vadd.f32 %v1785, %v2068
      %v2109 = vadd.f32 %v1786, %v2073
      %v2110 = vadd.f32 %v1787, %v2076
      %v2111 = vld [vmem:[%s1788 + $0x1] sm:$0xff]
      %v2112 = vld [vmem:[%s1788 + $0x9] sm:$0xff]
      %v2113 = vld [vmem:[%s1788 + $0x19] sm:$0xff]
      %v2114 = vld [vmem:[%s1788 + $0x21] sm:$0xff]
      %v2115 = vld [vmem:[%s1788 + $0x31] sm:$0xff]
      %v2116 = vld [vmem:[%s1788 + $0x39] sm:$0xff]
      %v2117 = vld [vmem:[%s1788 + $0x49] sm:$0xff]
      %v2118 = vld [vmem:[%s1788 + $0x51] sm:$0xff]
      %v2119 = vld [vmem:[%s1788 + $0x61] sm:$0xff]
      %v2120 = vld [vmem:[%s1788 + $0x69] sm:$0xff]
      %v2121 = vld [vmem:[%s1788 + $0x79] sm:$0xff]
      %v2122 = vld [vmem:[%s1788 + $0x81] sm:$0xff]
      %v2123 = vld [vmem:[%s1788 + $0x91] sm:$0xff]
      %v2124 = vld [vmem:[%s1788 + $0x99] sm:$0xff]
      %v2125 = vld [vmem:[%s1788 + $0xa9] sm:$0xff]
      %v2126 = vld [vmem:[%s1788 + $0xb1] sm:$0xff]
      %v2127 = vld [vmem:[%s1788 + $0xc1] sm:$0xff]
      %v2128 = vld [vmem:[%s1788 + $0xc9] sm:$0xff]
      %v2129 = vld [vmem:[%s1788 + $0xd9] sm:$0xff]
      %v2130 = vld [vmem:[%s1788 + $0xe1] sm:$0xff]
      %v2131 = vld [vmem:[%s1788 + $0xf1] sm:$0xff]
      %v2132 = vld [vmem:[%s1788 + $0xf9] sm:$0xff]
      %v2133 = vld [vmem:[%s1788 + $0x109] sm:$0xff]
      %v2134 = vld [vmem:[%s1788 + $0x111] sm:$0xff]
      %v2135 = vld [vmem:[%s1788 + $0x121] sm:$0xff]
      %v2136 = vld [vmem:[%s1788 + $0x129] sm:$0xff]
      %v2137 = vld [vmem:[%s1788 + $0x139] sm:$0xff]
      %v2138 = vld [vmem:[%s1788 + $0x141] sm:$0xff]
      %v2139 = vld [vmem:[%s1788 + $0x151] sm:$0xff]
      %v2140 = vld [vmem:[%s1788 + $0x159] sm:$0xff]
      %v2141 = vld [vmem:[%s1788 + $0x169] sm:$0xff]
      %v2142 = vld [vmem:[%s1788 + $0x171] sm:$0xff]
      %v2143 = vpack.c.bf16 %v2112, %v2111
      %v2144 = vpack.c.bf16 %v2114, %v2113
      %v2145 = vpack.c.bf16 %v2116, %v2115
      %v2146 = vpack.c.bf16 %v2118, %v2117
      %v2147 = vpack.c.bf16 %v2120, %v2119
      %v2148 = vpack.c.bf16 %v2122, %v2121
      %v2149 = vpack.c.bf16 %v2124, %v2123
      %v2150 = vpack.c.bf16 %v2126, %v2125
      %v2151 = vpack.c.bf16 %v2128, %v2127
      %v2152 = vpack.c.bf16 %v2130, %v2129
      %v2153 = vpack.c.bf16 %v2132, %v2131
      %v2154 = vpack.c.bf16 %v2134, %v2133
      %v2155 = vpack.c.bf16 %v2136, %v2135
      %v2156 = vpack.c.bf16 %v2138, %v2137
      %v2157 = vpack.c.bf16 %v2140, %v2139
      %v2158 = vpack.c.bf16 %v2142, %v2141
      %s2159 = scalar_lea.vmem %s3, 128
      %v2160 = vld [vmem:[%s2159] sm:$0xf]
      %v2161 = vld [vmem:[%s2159 + $0x4] sm:$0xf]
      %v2162 = vld [vmem:[%s2159 + $0x8] sm:$0xf]
      %v2163 = vld [vmem:[%s2159 + $0xc] sm:$0xf]
      %v2164 = vld [vmem:[%s2159 + $0x10] sm:$0xf]
      %v2165 = vld [vmem:[%s2159 + $0x14] sm:$0xf]
      %v2166 = vld [vmem:[%s2159 + $0x18] sm:$0xf]
      %v2167 = vld [vmem:[%s2159 + $0x1c] sm:$0xf]
      %v2176 = vunpack.c.l.b16 %v2160
      %v2177 = vunpack.c.l.b16 %v2161
      %v2178 = vunpack.c.l.b16 %v2162
      %v2179 = vunpack.c.l.b16 %v2163
      %v2180 = vunpack.c.l.b16 %v2164
      %v2181 = vunpack.c.l.b16 %v2165
      %v2182 = vunpack.c.l.b16 %v2166
      %v2183 = vunpack.c.l.b16 %v2167
      %v2184 = vpack.c.b16 %v2177, %v2176
      %v2185 = vpack.c.b16 %v2179, %v2178
      %v2186 = vpack.c.b16 %v2181, %v2180
      %v2187 = vpack.c.b16 %v2183, %v2182
      %v2193 = vsel %vm831, %v2143, 0
      %v2196 = vsel %vm831, %v2144, 0
      %v2199 = vsel %vm831, %v2145, 0
      %v2202 = vsel %vm831, %v2146, 0
      %v2205 = vsel %vm831, %v2147, 0
      %v2208 = vsel %vm831, %v2148, 0
      %v2211 = vsel %vm831, %v2149, 0
      %v2214 = vsel %vm831, %v2150, 0
      %v2217 = vsel %vm831, %v2151, 0
      %v2220 = vsel %vm831, %v2152, 0
      %v2223 = vsel %vm831, %v2153, 0
      %v2226 = vsel %vm831, %v2154, 0
      %v2229 = vsel %vm831, %v2155, 0
      %v2232 = vsel %vm831, %v2156, 0
      %v2235 = vsel %vm831, %v2157, 0
      %v2238 = vsel %vm831, %v2158, 0
      %2240 = vmatprep.subr.bf16.mxu0 0
      %2241 = vmatpush1.bf16.msra.mxu0 0
      %2242 = vmatprep.subr.bf16.mxu0 0
      %2243 = vmatpush1.bf16.msra.mxu0 0
      %2244 = vmatprep.subr.bf16.mxu0 0
      %2245 = vmatpush1.bf16.msra.mxu0 0
      %2246 = vmatprep.subr.bf16.mxu0 0
      %2247 = vmatpush1.bf16.msra.mxu0 0
      %2248 = vmatprep.subr.bf16.mxu0 0
      %2249 = vmatpush1.bf16.msra.mxu0 %v2187
      %2250 = vmatprep.subr.bf16.mxu0 0
      %2251 = vmatpush1.bf16.msra.mxu0 %v2186
      %2252 = vmatprep.subr.bf16.mxu0 0
      %2253 = vmatpush1.bf16.msra.mxu0 %v2185
      %2254 = vmatprep.subr.bf16.mxu0 0
      %2255 = vmatpush1.bf16.msra.mxu0 %v2184
      %2256 = vmatprep.subr.bf16.mxu0 0
      %2257 = vmatpush2.bf16.msra.mxu0 0
      %2258 = vmatprep.subr.bf16.mxu0 0
      %2259 = vmatpush2.bf16.msra.mxu0 0
      %2260 = vmatprep.subr.bf16.mxu0 0
      %2261 = vmatpush2.bf16.msra.mxu0 0
      %2262 = vmatprep.subr.bf16.mxu0 0
      %2263 = vmatpush2.bf16.msra.mxu0 0
      %2264 = vmatprep.subr.bf16.mxu0 0
      %2265 = vmatpush2.bf16.msra.mxu0 0
      %2266 = vmatprep.subr.bf16.mxu0 0
      %2267 = vmatpush2.bf16.msra.mxu0 0
      %2268 = vmatprep.subr.bf16.mxu0 0
      %2269 = vmatpush2.bf16.msra.mxu0 0
      %2270 = vmatprep.subr.bf16.mxu0 0
      %2271 = vmatpush2.bf16.msra.mxu0 0
      %2272 = vmatprep.mubr.bf16.mxu0 0
      %2273 = vmatmul.mubr.bf16.gmra.mxu0 %v2193
      %v2274 = vpop.f32.mrf.mxu0
      %v2275 = vadd.f32 0.0, %v2274
      %v2276 = vpop.f32.mrf.mxu0
      %v2277 = vpop.f32.mrf.mxu0
      %v2278 = vadd.f32 0.0, %v2277
      %v2279 = vpop.f32.mrf.mxu0
      %2280 = vmatprep.mubr.bf16.mxu0 0
      %2281 = vmatmul.mubr.bf16.gmra.mxu0 %v2196
      %v2282 = vpop.f32.mrf.mxu0
      %v2283 = vadd.f32 0.0, %v2282
      %v2284 = vpop.f32.mrf.mxu0
      %v2285 = vpop.f32.mrf.mxu0
      %v2286 = vadd.f32 0.0, %v2285
      %v2287 = vpop.f32.mrf.mxu0
      %2288 = vmatprep.mubr.bf16.mxu0 0
      %2289 = vmatmul.mubr.bf16.gmra.mxu0 %v2199
      %v2290 = vpop.f32.mrf.mxu0
      %v2291 = vadd.f32 0.0, %v2290
      %v2292 = vpop.f32.mrf.mxu0
      %v2293 = vpop.f32.mrf.mxu0
      %v2294 = vadd.f32 0.0, %v2293
      %v2295 = vpop.f32.mrf.mxu0
      %2296 = vmatprep.mubr.bf16.mxu0 0
      %2297 = vmatmul.mubr.bf16.gmra.mxu0 %v2202
      %v2298 = vpop.f32.mrf.mxu0
      %v2299 = vadd.f32 0.0, %v2298
      %v2300 = vpop.f32.mrf.mxu0
      %v2301 = vpop.f32.mrf.mxu0
      %v2302 = vadd.f32 0.0, %v2301
      %v2303 = vpop.f32.mrf.mxu0
      %2304 = vmatprep.mubr.bf16.mxu0 0
      %2305 = vmatmul.mubr.bf16.gmra.mxu0 %v2205
      %v2306 = vpop.f32.mrf.mxu0
      %v2307 = vadd.f32 0.0, %v2306
      %v2308 = vpop.f32.mrf.mxu0
      %v2309 = vpop.f32.mrf.mxu0
      %v2310 = vadd.f32 0.0, %v2309
      %v2311 = vpop.f32.mrf.mxu0
      %2312 = vmatprep.mubr.bf16.mxu0 0
      %2313 = vmatmul.mubr.bf16.gmra.mxu0 %v2208
      %v2314 = vpop.f32.mrf.mxu0
      %v2315 = vadd.f32 0.0, %v2314
      %v2316 = vpop.f32.mrf.mxu0
      %v2317 = vpop.f32.mrf.mxu0
      %v2318 = vadd.f32 0.0, %v2317
      %v2319 = vpop.f32.mrf.mxu0
      %2320 = vmatprep.mubr.bf16.mxu0 0
      %2321 = vmatmul.mubr.bf16.gmra.mxu0 %v2211
      %v2322 = vpop.f32.mrf.mxu0
      %v2323 = vadd.f32 0.0, %v2322
      %v2324 = vpop.f32.mrf.mxu0
      %v2325 = vpop.f32.mrf.mxu0
      %v2326 = vadd.f32 0.0, %v2325
      %v2327 = vpop.f32.mrf.mxu0
      %2328 = vmatprep.mubr.bf16.mxu0 0
      %2329 = vmatmul.mubr.bf16.gmra.mxu0 %v2214
      %v2330 = vpop.f32.mrf.mxu0
      %v2331 = vadd.f32 0.0, %v2330
      %v2332 = vpop.f32.mrf.mxu0
      %v2333 = vpop.f32.mrf.mxu0
      %v2334 = vadd.f32 0.0, %v2333
      %v2335 = vpop.f32.mrf.mxu0
      %2336 = vmatprep.mubr.bf16.mxu0 0
      %2337 = vmatmul.mubr.bf16.gmra.mxu0 %v2217
      %v2338 = vpop.f32.mrf.mxu0
      %v2339 = vadd.f32 0.0, %v2338
      %v2340 = vpop.f32.mrf.mxu0
      %v2341 = vpop.f32.mrf.mxu0
      %v2342 = vadd.f32 0.0, %v2341
      %v2343 = vpop.f32.mrf.mxu0
      %2344 = vmatprep.mubr.bf16.mxu0 0
      %2345 = vmatmul.mubr.bf16.gmra.mxu0 %v2220
      %v2346 = vpop.f32.mrf.mxu0
      %v2347 = vadd.f32 0.0, %v2346
      %v2348 = vpop.f32.mrf.mxu0
      %v2349 = vpop.f32.mrf.mxu0
      %v2350 = vadd.f32 0.0, %v2349
      %v2351 = vpop.f32.mrf.mxu0
      %2352 = vmatprep.mubr.bf16.mxu0 0
      %2353 = vmatmul.mubr.bf16.gmra.mxu0 %v2223
      %v2354 = vpop.f32.mrf.mxu0
      %v2355 = vadd.f32 0.0, %v2354
      %v2356 = vpop.f32.mrf.mxu0
      %v2357 = vpop.f32.mrf.mxu0
      %v2358 = vadd.f32 0.0, %v2357
      %v2359 = vpop.f32.mrf.mxu0
      %2360 = vmatprep.mubr.bf16.mxu0 0
      %2361 = vmatmul.mubr.bf16.gmra.mxu0 %v2226
      %v2362 = vpop.f32.mrf.mxu0
      %v2363 = vadd.f32 0.0, %v2362
      %v2364 = vpop.f32.mrf.mxu0
      %v2365 = vpop.f32.mrf.mxu0
      %v2366 = vadd.f32 0.0, %v2365
      %v2367 = vpop.f32.mrf.mxu0
      %2368 = vmatprep.mubr.bf16.mxu0 0
      %2369 = vmatmul.mubr.bf16.gmra.mxu0 %v2229
      %v2370 = vpop.f32.mrf.mxu0
      %v2371 = vadd.f32 0.0, %v2370
      %v2372 = vpop.f32.mrf.mxu0
      %v2373 = vpop.f32.mrf.mxu0
      %v2374 = vadd.f32 0.0, %v2373
      %v2375 = vpop.f32.mrf.mxu0
      %2376 = vmatprep.mubr.bf16.mxu0 0
      %2377 = vmatmul.mubr.bf16.gmra.mxu0 %v2232
      %v2378 = vpop.f32.mrf.mxu0
      %v2379 = vadd.f32 0.0, %v2378
      %v2380 = vpop.f32.mrf.mxu0
      %v2381 = vpop.f32.mrf.mxu0
      %v2382 = vadd.f32 0.0, %v2381
      %v2383 = vpop.f32.mrf.mxu0
      %2384 = vmatprep.mubr.bf16.mxu0 0
      %2385 = vmatmul.mubr.bf16.gmra.mxu0 %v2235
      %v2386 = vpop.f32.mrf.mxu0
      %v2387 = vadd.f32 0.0, %v2386
      %v2388 = vpop.f32.mrf.mxu0
      %v2389 = vpop.f32.mrf.mxu0
      %v2390 = vadd.f32 0.0, %v2389
      %v2391 = vpop.f32.mrf.mxu0
      %2392 = vmatprep.mubr.bf16.mxu0 0
      %2393 = vmatmul.mubr.bf16.gmra.mxu0 %v2238
      %v2394 = vpop.f32.mrf.mxu0
      %v2395 = vadd.f32 0.0, %v2394
      %v2396 = vpop.f32.mrf.mxu0
      %v2397 = vpop.f32.mrf.mxu0
      %v2398 = vadd.f32 0.0, %v2397
      %v2399 = vpop.f32.mrf.mxu0
      %2400 = vdwg.mxu0
      %v2401 = vadd.f32 %v2079, %v2275
      %v2402 = vadd.f32 %v2080, %v2278
      %v2403 = vadd.f32 %v2081, %v2283
      %v2404 = vadd.f32 %v2082, %v2286
      %v2405 = vadd.f32 %v2083, %v2291
      %v2406 = vadd.f32 %v2084, %v2294
      %v2407 = vadd.f32 %v2085, %v2299
      %v2408 = vadd.f32 %v2086, %v2302
      %v2409 = vadd.f32 %v2087, %v2307
      %v2410 = vadd.f32 %v2088, %v2310
      %v2411 = vadd.f32 %v2089, %v2315
      %v2412 = vadd.f32 %v2090, %v2318
      %v2413 = vadd.f32 %v2091, %v2323
      %v2414 = vadd.f32 %v2092, %v2326
      %v2415 = vadd.f32 %v2093, %v2331
      %v2416 = vadd.f32 %v2094, %v2334
      %v2417 = vadd.f32 %v2095, %v2339
      %v2418 = vadd.f32 %v2096, %v2342
      %v2419 = vadd.f32 %v2097, %v2347
      %v2420 = vadd.f32 %v2098, %v2350
      %v2421 = vadd.f32 %v2099, %v2355
      %v2422 = vadd.f32 %v2100, %v2358
      %v2423 = vadd.f32 %v2101, %v2363
      %v2424 = vadd.f32 %v2102, %v2366
      %v2425 = vadd.f32 %v2103, %v2371
      %v2426 = vadd.f32 %v2104, %v2374
      %v2427 = vadd.f32 %v2105, %v2379
      %v2428 = vadd.f32 %v2106, %v2382
      %v2429 = vadd.f32 %v2107, %v2387
      %v2430 = vadd.f32 %v2108, %v2390
      %v2431 = vadd.f32 %v2109, %v2395
      %v2432 = vadd.f32 %v2110, %v2398
      %v2433 = vld [vmem:[%s1788 + $0x2] sm:$0xff]
      %v2434 = vld [vmem:[%s1788 + $0xa] sm:$0xff]
      %v2435 = vld [vmem:[%s1788 + $0x1a] sm:$0xff]
      %v2436 = vld [vmem:[%s1788 + $0x22] sm:$0xff]
      %v2437 = vld [vmem:[%s1788 + $0x32] sm:$0xff]
      %v2438 = vld [vmem:[%s1788 + $0x3a] sm:$0xff]
      %v2439 = vld [vmem:[%s1788 + $0x4a] sm:$0xff]
      %v2440 = vld [vmem:[%s1788 + $0x52] sm:$0xff]
      %v2441 = vld [vmem:[%s1788 + $0x62] sm:$0xff]
      %v2442 = vld [vmem:[%s1788 + $0x6a] sm:$0xff]
      %v2443 = vld [vmem:[%s1788 + $0x7a] sm:$0xff]
      %v2444 = vld [vmem:[%s1788 + $0x82] sm:$0xff]
      %v2445 = vld [vmem:[%s1788 + $0x92] sm:$0xff]
      %v2446 = vld [vmem:[%s1788 + $0x9a] sm:$0xff]
      %v2447 = vld [vmem:[%s1788 + $0xaa] sm:$0xff]
      %v2448 = vld [vmem:[%s1788 + $0xb2] sm:$0xff]
      %v2449 = vld [vmem:[%s1788 + $0xc2] sm:$0xff]
      %v2450 = vld [vmem:[%s1788 + $0xca] sm:$0xff]
      %v2451 = vld [vmem:[%s1788 + $0xda] sm:$0xff]
      %v2452 = vld [vmem:[%s1788 + $0xe2] sm:$0xff]
      %v2453 = vld [vmem:[%s1788 + $0xf2] sm:$0xff]
      %v2454 = vld [vmem:[%s1788 + $0xfa] sm:$0xff]
      %v2455 = vld [vmem:[%s1788 + $0x10a] sm:$0xff]
      %v2456 = vld [vmem:[%s1788 + $0x112] sm:$0xff]
      %v2457 = vld [vmem:[%s1788 + $0x122] sm:$0xff]
      %v2458 = vld [vmem:[%s1788 + $0x12a] sm:$0xff]
      %v2459 = vld [vmem:[%s1788 + $0x13a] sm:$0xff]
      %v2460 = vld [vmem:[%s1788 + $0x142] sm:$0xff]
      %v2461 = vld [vmem:[%s1788 + $0x152] sm:$0xff]
      %v2462 = vld [vmem:[%s1788 + $0x15a] sm:$0xff]
      %v2463 = vld [vmem:[%s1788 + $0x16a] sm:$0xff]
      %v2464 = vld [vmem:[%s1788 + $0x172] sm:$0xff]
      %v2465 = vpack.c.bf16 %v2434, %v2433
      %v2466 = vpack.c.bf16 %v2436, %v2435
      %v2467 = vpack.c.bf16 %v2438, %v2437
      %v2468 = vpack.c.bf16 %v2440, %v2439
      %v2469 = vpack.c.bf16 %v2442, %v2441
      %v2470 = vpack.c.bf16 %v2444, %v2443
      %v2471 = vpack.c.bf16 %v2446, %v2445
      %v2472 = vpack.c.bf16 %v2448, %v2447
      %v2473 = vpack.c.bf16 %v2450, %v2449
      %v2474 = vpack.c.bf16 %v2452, %v2451
      %v2475 = vpack.c.bf16 %v2454, %v2453
      %v2476 = vpack.c.bf16 %v2456, %v2455
      %v2477 = vpack.c.bf16 %v2458, %v2457
      %v2478 = vpack.c.bf16 %v2460, %v2459
      %v2479 = vpack.c.bf16 %v2462, %v2461
      %v2480 = vpack.c.bf16 %v2464, %v2463
      %s2481 = scalar_lea.vmem %s3, 160
      %v2482 = vld [vmem:[%s2481] sm:$0xf]
      %v2483 = vld [vmem:[%s2481 + $0x4] sm:$0xf]
      %v2484 = vld [vmem:[%s2481 + $0x8] sm:$0xf]
      %v2485 = vld [vmem:[%s2481 + $0xc] sm:$0xf]
      %v2486 = vld [vmem:[%s2481 + $0x10] sm:$0xf]
      %v2487 = vld [vmem:[%s2481 + $0x14] sm:$0xf]
      %v2488 = vld [vmem:[%s2481 + $0x18] sm:$0xf]
      %v2489 = vld [vmem:[%s2481 + $0x1c] sm:$0xf]
      %v2498 = vunpack.c.l.b16 %v2482
      %v2499 = vunpack.c.l.b16 %v2483
      %v2500 = vunpack.c.l.b16 %v2484
      %v2501 = vunpack.c.l.b16 %v2485
      %v2502 = vunpack.c.l.b16 %v2486
      %v2503 = vunpack.c.l.b16 %v2487
      %v2504 = vunpack.c.l.b16 %v2488
      %v2505 = vunpack.c.l.b16 %v2489
      %v2506 = vpack.c.b16 %v2499, %v2498
      %v2507 = vpack.c.b16 %v2501, %v2500
      %v2508 = vpack.c.b16 %v2503, %v2502
      %v2509 = vpack.c.b16 %v2505, %v2504
      %v2515 = vsel %vm831, %v2465, 0
      %v2518 = vsel %vm831, %v2466, 0
      %v2521 = vsel %vm831, %v2467, 0
      %v2524 = vsel %vm831, %v2468, 0
      %v2527 = vsel %vm831, %v2469, 0
      %v2530 = vsel %vm831, %v2470, 0
      %v2533 = vsel %vm831, %v2471, 0
      %v2536 = vsel %vm831, %v2472, 0
      %v2539 = vsel %vm831, %v2473, 0
      %v2542 = vsel %vm831, %v2474, 0
      %v2545 = vsel %vm831, %v2475, 0
      %v2548 = vsel %vm831, %v2476, 0
      %v2551 = vsel %vm831, %v2477, 0
      %v2554 = vsel %vm831, %v2478, 0
      %v2557 = vsel %vm831, %v2479, 0
      %v2560 = vsel %vm831, %v2480, 0
      %2562 = vmatprep.subr.bf16.mxu0 0
      %2563 = vmatpush1.bf16.msra.mxu0 0
      %2564 = vmatprep.subr.bf16.mxu0 0
      %2565 = vmatpush1.bf16.msra.mxu0 0
      %2566 = vmatprep.subr.bf16.mxu0 0
      %2567 = vmatpush1.bf16.msra.mxu0 0
      %2568 = vmatprep.subr.bf16.mxu0 0
      %2569 = vmatpush1.bf16.msra.mxu0 0
      %2570 = vmatprep.subr.bf16.mxu0 0
      %2571 = vmatpush1.bf16.msra.mxu0 %v2509
      %2572 = vmatprep.subr.bf16.mxu0 0
      %2573 = vmatpush1.bf16.msra.mxu0 %v2508
      %2574 = vmatprep.subr.bf16.mxu0 0
      %2575 = vmatpush1.bf16.msra.mxu0 %v2507
      %2576 = vmatprep.subr.bf16.mxu0 0
      %2577 = vmatpush1.bf16.msra.mxu0 %v2506
      %2578 = vmatprep.subr.bf16.mxu0 0
      %2579 = vmatpush2.bf16.msra.mxu0 0
      %2580 = vmatprep.subr.bf16.mxu0 0
      %2581 = vmatpush2.bf16.msra.mxu0 0
      %2582 = vmatprep.subr.bf16.mxu0 0
      %2583 = vmatpush2.bf16.msra.mxu0 0
      %2584 = vmatprep.subr.bf16.mxu0 0
      %2585 = vmatpush2.bf16.msra.mxu0 0
      %2586 = vmatprep.subr.bf16.mxu0 0
      %2587 = vmatpush2.bf16.msra.mxu0 0
      %2588 = vmatprep.subr.bf16.mxu0 0
      %2589 = vmatpush2.bf16.msra.mxu0 0
      %2590 = vmatprep.subr.bf16.mxu0 0
      %2591 = vmatpush2.bf16.msra.mxu0 0
      %2592 = vmatprep.subr.bf16.mxu0 0
      %2593 = vmatpush2.bf16.msra.mxu0 0
      %2594 = vmatprep.mubr.bf16.mxu0 0
      %2595 = vmatmul.mubr.bf16.gmra.mxu0 %v2515
      %v2596 = vpop.f32.mrf.mxu0
      %v2597 = vadd.f32 0.0, %v2596
      %v2598 = vpop.f32.mrf.mxu0
      %v2599 = vpop.f32.mrf.mxu0
      %v2600 = vadd.f32 0.0, %v2599
      %v2601 = vpop.f32.mrf.mxu0
      %2602 = vmatprep.mubr.bf16.mxu0 0
      %2603 = vmatmul.mubr.bf16.gmra.mxu0 %v2518
      %v2604 = vpop.f32.mrf.mxu0
      %v2605 = vadd.f32 0.0, %v2604
      %v2606 = vpop.f32.mrf.mxu0
      %v2607 = vpop.f32.mrf.mxu0
      %v2608 = vadd.f32 0.0, %v2607
      %v2609 = vpop.f32.mrf.mxu0
      %2610 = vmatprep.mubr.bf16.mxu0 0
      %2611 = vmatmul.mubr.bf16.gmra.mxu0 %v2521
      %v2612 = vpop.f32.mrf.mxu0
      %v2613 = vadd.f32 0.0, %v2612
      %v2614 = vpop.f32.mrf.mxu0
      %v2615 = vpop.f32.mrf.mxu0
      %v2616 = vadd.f32 0.0, %v2615
      %v2617 = vpop.f32.mrf.mxu0
      %2618 = vmatprep.mubr.bf16.mxu0 0
      %2619 = vmatmul.mubr.bf16.gmra.mxu0 %v2524
      %v2620 = vpop.f32.mrf.mxu0
      %v2621 = vadd.f32 0.0, %v2620
      %v2622 = vpop.f32.mrf.mxu0
      %v2623 = vpop.f32.mrf.mxu0
      %v2624 = vadd.f32 0.0, %v2623
      %v2625 = vpop.f32.mrf.mxu0
      %2626 = vmatprep.mubr.bf16.mxu0 0
      %2627 = vmatmul.mubr.bf16.gmra.mxu0 %v2527
      %v2628 = vpop.f32.mrf.mxu0
      %v2629 = vadd.f32 0.0, %v2628
      %v2630 = vpop.f32.mrf.mxu0
      %v2631 = vpop.f32.mrf.mxu0
      %v2632 = vadd.f32 0.0, %v2631
      %v2633 = vpop.f32.mrf.mxu0
      %2634 = vmatprep.mubr.bf16.mxu0 0
      %2635 = vmatmul.mubr.bf16.gmra.mxu0 %v2530
      %v2636 = vpop.f32.mrf.mxu0
      %v2637 = vadd.f32 0.0, %v2636
      %v2638 = vpop.f32.mrf.mxu0
      %v2639 = vpop.f32.mrf.mxu0
      %v2640 = vadd.f32 0.0, %v2639
      %v2641 = vpop.f32.mrf.mxu0
      %2642 = vmatprep.mubr.bf16.mxu0 0
      %2643 = vmatmul.mubr.bf16.gmra.mxu0 %v2533
      %v2644 = vpop.f32.mrf.mxu0
      %v2645 = vadd.f32 0.0, %v2644
      %v2646 = vpop.f32.mrf.mxu0
      %v2647 = vpop.f32.mrf.mxu0
      %v2648 = vadd.f32 0.0, %v2647
      %v2649 = vpop.f32.mrf.mxu0
      %2650 = vmatprep.mubr.bf16.mxu0 0
      %2651 = vmatmul.mubr.bf16.gmra.mxu0 %v2536
      %v2652 = vpop.f32.mrf.mxu0
      %v2653 = vadd.f32 0.0, %v2652
      %v2654 = vpop.f32.mrf.mxu0
      %v2655 = vpop.f32.mrf.mxu0
      %v2656 = vadd.f32 0.0, %v2655
      %v2657 = vpop.f32.mrf.mxu0
      %2658 = vmatprep.mubr.bf16.mxu0 0
      %2659 = vmatmul.mubr.bf16.gmra.mxu0 %v2539
      %v2660 = vpop.f32.mrf.mxu0
      %v2661 = vadd.f32 0.0, %v2660
      %v2662 = vpop.f32.mrf.mxu0
      %v2663 = vpop.f32.mrf.mxu0
      %v2664 = vadd.f32 0.0, %v2663
      %v2665 = vpop.f32.mrf.mxu0
      %2666 = vmatprep.mubr.bf16.mxu0 0
      %2667 = vmatmul.mubr.bf16.gmra.mxu0 %v2542
      %v2668 = vpop.f32.mrf.mxu0
      %v2669 = vadd.f32 0.0, %v2668
      %v2670 = vpop.f32.mrf.mxu0
      %v2671 = vpop.f32.mrf.mxu0
      %v2672 = vadd.f32 0.0, %v2671
      %v2673 = vpop.f32.mrf.mxu0
      %2674 = vmatprep.mubr.bf16.mxu0 0
      %2675 = vmatmul.mubr.bf16.gmra.mxu0 %v2545
      %v2676 = vpop.f32.mrf.mxu0
      %v2677 = vadd.f32 0.0, %v2676
      %v2678 = vpop.f32.mrf.mxu0
      %v2679 = vpop.f32.mrf.mxu0
      %v2680 = vadd.f32 0.0, %v2679
      %v2681 = vpop.f32.mrf.mxu0
      %2682 = vmatprep.mubr.bf16.mxu0 0
      %2683 = vmatmul.mubr.bf16.gmra.mxu0 %v2548
      %v2684 = vpop.f32.mrf.mxu0
      %v2685 = vadd.f32 0.0, %v2684
      %v2686 = vpop.f32.mrf.mxu0
      %v2687 = vpop.f32.mrf.mxu0
      %v2688 = vadd.f32 0.0, %v2687
      %v2689 = vpop.f32.mrf.mxu0
      %2690 = vmatprep.mubr.bf16.mxu0 0
      %2691 = vmatmul.mubr.bf16.gmra.mxu0 %v2551
      %v2692 = vpop.f32.mrf.mxu0
      %v2693 = vadd.f32 0.0, %v2692
      %v2694 = vpop.f32.mrf.mxu0
      %v2695 = vpop.f32.mrf.mxu0
      %v2696 = vadd.f32 0.0, %v2695
      %v2697 = vpop.f32.mrf.mxu0
      %2698 = vmatprep.mubr.bf16.mxu0 0
      %2699 = vmatmul.mubr.bf16.gmra.mxu0 %v2554
      %v2700 = vpop.f32.mrf.mxu0
      %v2701 = vadd.f32 0.0, %v2700
      %v2702 = vpop.f32.mrf.mxu0
      %v2703 = vpop.f32.mrf.mxu0
      %v2704 = vadd.f32 0.0, %v2703
      %v2705 = vpop.f32.mrf.mxu0
      %2706 = vmatprep.mubr.bf16.mxu0 0
      %2707 = vmatmul.mubr.bf16.gmra.mxu0 %v2557
      %v2708 = vpop.f32.mrf.mxu0
      %v2709 = vadd.f32 0.0, %v2708
      %v2710 = vpop.f32.mrf.mxu0
      %v2711 = vpop.f32.mrf.mxu0
      %v2712 = vadd.f32 0.0, %v2711
      %v2713 = vpop.f32.mrf.mxu0
      %2714 = vmatprep.mubr.bf16.mxu0 0
      %2715 = vmatmul.mubr.bf16.gmra.mxu0 %v2560
      %v2716 = vpop.f32.mrf.mxu0
      %v2717 = vadd.f32 0.0, %v2716
      %v2718 = vpop.f32.mrf.mxu0
      %v2719 = vpop.f32.mrf.mxu0
      %v2720 = vadd.f32 0.0, %v2719
      %v2721 = vpop.f32.mrf.mxu0
      %2722 = vdwg.mxu0
      %v2723 = vadd.f32 %v2401, %v2597
      %v2724 = vadd.f32 %v2402, %v2600
      %v2725 = vadd.f32 %v2403, %v2605
      %v2726 = vadd.f32 %v2404, %v2608
      %v2727 = vadd.f32 %v2405, %v2613
      %v2728 = vadd.f32 %v2406, %v2616
      %v2729 = vadd.f32 %v2407, %v2621
      %v2730 = vadd.f32 %v2408, %v2624
      %v2731 = vadd.f32 %v2409, %v2629
      %v2732 = vadd.f32 %v2410, %v2632
      %v2733 = vadd.f32 %v2411, %v2637
      %v2734 = vadd.f32 %v2412, %v2640
      %v2735 = vadd.f32 %v2413, %v2645
      %v2736 = vadd.f32 %v2414, %v2648
      %v2737 = vadd.f32 %v2415, %v2653
      %v2738 = vadd.f32 %v2416, %v2656
      %v2739 = vadd.f32 %v2417, %v2661
      %v2740 = vadd.f32 %v2418, %v2664
      %v2741 = vadd.f32 %v2419, %v2669
      %v2742 = vadd.f32 %v2420, %v2672
      %v2743 = vadd.f32 %v2421, %v2677
      %v2744 = vadd.f32 %v2422, %v2680
      %v2745 = vadd.f32 %v2423, %v2685
      %v2746 = vadd.f32 %v2424, %v2688
      %v2747 = vadd.f32 %v2425, %v2693
      %v2748 = vadd.f32 %v2426, %v2696
      %v2749 = vadd.f32 %v2427, %v2701
      %v2750 = vadd.f32 %v2428, %v2704
      %v2751 = vadd.f32 %v2429, %v2709
      %v2752 = vadd.f32 %v2430, %v2712
      %v2753 = vadd.f32 %v2431, %v2717
      %v2754 = vadd.f32 %v2432, %v2720
      %s2755 = scalar_lea.vmem [#allocation2], 48
      %v2756 = vld [vmem:[%s2755] sm:$0xff]
      %v2757 = vld [vmem:[%s2755 + $0x8] sm:$0xff]
      %v2758 = vld [vmem:[%s2755 + $0x18] sm:$0xff]
      %v2759 = vld [vmem:[%s2755 + $0x20] sm:$0xff]
      %v2760 = vld [vmem:[%s2755 + $0x30] sm:$0xff]
      %v2761 = vld [vmem:[%s2755 + $0x38] sm:$0xff]
      %v2762 = vld [vmem:[%s2755 + $0x48] sm:$0xff]
      %v2763 = vld [vmem:[%s2755 + $0x50] sm:$0xff]
      %v2764 = vld [vmem:[%s2755 + $0x60] sm:$0xff]
      %v2765 = vld [vmem:[%s2755 + $0x68] sm:$0xff]
      %v2766 = vld [vmem:[%s2755 + $0x78] sm:$0xff]
      %v2767 = vld [vmem:[%s2755 + $0x80] sm:$0xff]
      %v2768 = vld [vmem:[%s2755 + $0x90] sm:$0xff]
      %v2769 = vld [vmem:[%s2755 + $0x98] sm:$0xff]
      %v2770 = vld [vmem:[%s2755 + $0xa8] sm:$0xff]
      %v2771 = vld [vmem:[%s2755 + $0xb0] sm:$0xff]
      %v2772 = vld [vmem:[%s2755 + $0xc0] sm:$0xff]
      %v2773 = vld [vmem:[%s2755 + $0xc8] sm:$0xff]
      %v2774 = vld [vmem:[%s2755 + $0xd8] sm:$0xff]
      %v2775 = vld [vmem:[%s2755 + $0xe0] sm:$0xff]
      %v2776 = vld [vmem:[%s2755 + $0xf0] sm:$0xff]
      %v2777 = vld [vmem:[%s2755 + $0xf8] sm:$0xff]
      %v2778 = vld [vmem:[%s2755 + $0x108] sm:$0xff]
      %v2779 = vld [vmem:[%s2755 + $0x110] sm:$0xff]
      %v2780 = vld [vmem:[%s2755 + $0x120] sm:$0xff]
      %v2781 = vld [vmem:[%s2755 + $0x128] sm:$0xff]
      %v2782 = vld [vmem:[%s2755 + $0x138] sm:$0xff]
      %v2783 = vld [vmem:[%s2755 + $0x140] sm:$0xff]
      %v2784 = vld [vmem:[%s2755 + $0x150] sm:$0xff]
      %v2785 = vld [vmem:[%s2755 + $0x158] sm:$0xff]
      %v2786 = vld [vmem:[%s2755 + $0x168] sm:$0xff]
      %v2787 = vld [vmem:[%s2755 + $0x170] sm:$0xff]
      %v2788 = vpack.c.bf16 %v2757, %v2756
      %v2789 = vpack.c.bf16 %v2759, %v2758
      %v2790 = vpack.c.bf16 %v2761, %v2760
      %v2791 = vpack.c.bf16 %v2763, %v2762
      %v2792 = vpack.c.bf16 %v2765, %v2764
      %v2793 = vpack.c.bf16 %v2767, %v2766
      %v2794 = vpack.c.bf16 %v2769, %v2768
      %v2795 = vpack.c.bf16 %v2771, %v2770
      %v2796 = vpack.c.bf16 %v2773, %v2772
      %v2797 = vpack.c.bf16 %v2775, %v2774
      %v2798 = vpack.c.bf16 %v2777, %v2776
      %v2799 = vpack.c.bf16 %v2779, %v2778
      %v2800 = vpack.c.bf16 %v2781, %v2780
      %v2801 = vpack.c.bf16 %v2783, %v2782
      %v2802 = vpack.c.bf16 %v2785, %v2784
      %v2803 = vpack.c.bf16 %v2787, %v2786
      %s2804 = scalar_lea.vmem %s3, 192
      %v2805 = vld [vmem:[%s2804] sm:$0xf]
      %v2806 = vld [vmem:[%s2804 + $0x4] sm:$0xf]
      %v2807 = vld [vmem:[%s2804 + $0x8] sm:$0xf]
      %v2808 = vld [vmem:[%s2804 + $0xc] sm:$0xf]
      %v2809 = vld [vmem:[%s2804 + $0x10] sm:$0xf]
      %v2810 = vld [vmem:[%s2804 + $0x14] sm:$0xf]
      %v2811 = vld [vmem:[%s2804 + $0x18] sm:$0xf]
      %v2812 = vld [vmem:[%s2804 + $0x1c] sm:$0xf]
      %v2821 = vunpack.c.l.b16 %v2805
      %v2822 = vunpack.c.l.b16 %v2806
      %v2823 = vunpack.c.l.b16 %v2807
      %v2824 = vunpack.c.l.b16 %v2808
      %v2825 = vunpack.c.l.b16 %v2809
      %v2826 = vunpack.c.l.b16 %v2810
      %v2827 = vunpack.c.l.b16 %v2811
      %v2828 = vunpack.c.l.b16 %v2812
      %v2829 = vpack.c.b16 %v2822, %v2821
      %v2830 = vpack.c.b16 %v2824, %v2823
      %v2831 = vpack.c.b16 %v2826, %v2825
      %v2832 = vpack.c.b16 %v2828, %v2827
      %v2838 = vsel %vm831, %v2788, 0
      %v2841 = vsel %vm831, %v2789, 0
      %v2844 = vsel %vm831, %v2790, 0
      %v2847 = vsel %vm831, %v2791, 0
      %v2850 = vsel %vm831, %v2792, 0
      %v2853 = vsel %vm831, %v2793, 0
      %v2856 = vsel %vm831, %v2794, 0
      %v2859 = vsel %vm831, %v2795, 0
      %v2862 = vsel %vm831, %v2796, 0
      %v2865 = vsel %vm831, %v2797, 0
      %v2868 = vsel %vm831, %v2798, 0
      %v2871 = vsel %vm831, %v2799, 0
      %v2874 = vsel %vm831, %v2800, 0
      %v2877 = vsel %vm831, %v2801, 0
      %v2880 = vsel %vm831, %v2802, 0
      %v2883 = vsel %vm831, %v2803, 0
      %2885 = vmatprep.subr.bf16.mxu0 0
      %2886 = vmatpush1.bf16.msra.mxu0 0
      %2887 = vmatprep.subr.bf16.mxu0 0
      %2888 = vmatpush1.bf16.msra.mxu0 0
      %2889 = vmatprep.subr.bf16.mxu0 0
      %2890 = vmatpush1.bf16.msra.mxu0 0
      %2891 = vmatprep.subr.bf16.mxu0 0
      %2892 = vmatpush1.bf16.msra.mxu0 0
      %2893 = vmatprep.subr.bf16.mxu0 0
      %2894 = vmatpush1.bf16.msra.mxu0 %v2832
      %2895 = vmatprep.subr.bf16.mxu0 0
      %2896 = vmatpush1.bf16.msra.mxu0 %v2831
      %2897 = vmatprep.subr.bf16.mxu0 0
      %2898 = vmatpush1.bf16.msra.mxu0 %v2830
      %2899 = vmatprep.subr.bf16.mxu0 0
      %2900 = vmatpush1.bf16.msra.mxu0 %v2829
      %2901 = vmatprep.subr.bf16.mxu0 0
      %2902 = vmatpush2.bf16.msra.mxu0 0
      %2903 = vmatprep.subr.bf16.mxu0 0
      %2904 = vmatpush2.bf16.msra.mxu0 0
      %2905 = vmatprep.subr.bf16.mxu0 0
      %2906 = vmatpush2.bf16.msra.mxu0 0
      %2907 = vmatprep.subr.bf16.mxu0 0
      %2908 = vmatpush2.bf16.msra.mxu0 0
      %2909 = vmatprep.subr.bf16.mxu0 0
      %2910 = vmatpush2.bf16.msra.mxu0 0
      %2911 = vmatprep.subr.bf16.mxu0 0
      %2912 = vmatpush2.bf16.msra.mxu0 0
      %2913 = vmatprep.subr.bf16.mxu0 0
      %2914 = vmatpush2.bf16.msra.mxu0 0
      %2915 = vmatprep.subr.bf16.mxu0 0
      %2916 = vmatpush2.bf16.msra.mxu0 0
      %2917 = vmatprep.mubr.bf16.mxu0 0
      %2918 = vmatmul.mubr.bf16.gmra.mxu0 %v2838
      %v2919 = vpop.f32.mrf.mxu0
      %v2920 = vadd.f32 0.0, %v2919
      %v2921 = vpop.f32.mrf.mxu0
      %v2922 = vpop.f32.mrf.mxu0
      %v2923 = vadd.f32 0.0, %v2922
      %v2924 = vpop.f32.mrf.mxu0
      %2925 = vmatprep.mubr.bf16.mxu0 0
      %2926 = vmatmul.mubr.bf16.gmra.mxu0 %v2841
      %v2927 = vpop.f32.mrf.mxu0
      %v2928 = vadd.f32 0.0, %v2927
      %v2929 = vpop.f32.mrf.mxu0
      %v2930 = vpop.f32.mrf.mxu0
      %v2931 = vadd.f32 0.0, %v2930
      %v2932 = vpop.f32.mrf.mxu0
      %2933 = vmatprep.mubr.bf16.mxu0 0
      %2934 = vmatmul.mubr.bf16.gmra.mxu0 %v2844
      %v2935 = vpop.f32.mrf.mxu0
      %v2936 = vadd.f32 0.0, %v2935
      %v2937 = vpop.f32.mrf.mxu0
      %v2938 = vpop.f32.mrf.mxu0
      %v2939 = vadd.f32 0.0, %v2938
      %v2940 = vpop.f32.mrf.mxu0
      %2941 = vmatprep.mubr.bf16.mxu0 0
      %2942 = vmatmul.mubr.bf16.gmra.mxu0 %v2847
      %v2943 = vpop.f32.mrf.mxu0
      %v2944 = vadd.f32 0.0, %v2943
      %v2945 = vpop.f32.mrf.mxu0
      %v2946 = vpop.f32.mrf.mxu0
      %v2947 = vadd.f32 0.0, %v2946
      %v2948 = vpop.f32.mrf.mxu0
      %2949 = vmatprep.mubr.bf16.mxu0 0
      %2950 = vmatmul.mubr.bf16.gmra.mxu0 %v2850
      %v2951 = vpop.f32.mrf.mxu0
      %v2952 = vadd.f32 0.0, %v2951
      %v2953 = vpop.f32.mrf.mxu0
      %v2954 = vpop.f32.mrf.mxu0
      %v2955 = vadd.f32 0.0, %v2954
      %v2956 = vpop.f32.mrf.mxu0
      %2957 = vmatprep.mubr.bf16.mxu0 0
      %2958 = vmatmul.mubr.bf16.gmra.mxu0 %v2853
      %v2959 = vpop.f32.mrf.mxu0
      %v2960 = vadd.f32 0.0, %v2959
      %v2961 = vpop.f32.mrf.mxu0
      %v2962 = vpop.f32.mrf.mxu0
      %v2963 = vadd.f32 0.0, %v2962
      %v2964 = vpop.f32.mrf.mxu0
      %2965 = vmatprep.mubr.bf16.mxu0 0
      %2966 = vmatmul.mubr.bf16.gmra.mxu0 %v2856
      %v2967 = vpop.f32.mrf.mxu0
      %v2968 = vadd.f32 0.0, %v2967
      %v2969 = vpop.f32.mrf.mxu0
      %v2970 = vpop.f32.mrf.mxu0
      %v2971 = vadd.f32 0.0, %v2970
      %v2972 = vpop.f32.mrf.mxu0
      %2973 = vmatprep.mubr.bf16.mxu0 0
      %2974 = vmatmul.mubr.bf16.gmra.mxu0 %v2859
      %v2975 = vpop.f32.mrf.mxu0
      %v2976 = vadd.f32 0.0, %v2975
      %v2977 = vpop.f32.mrf.mxu0
      %v2978 = vpop.f32.mrf.mxu0
      %v2979 = vadd.f32 0.0, %v2978
      %v2980 = vpop.f32.mrf.mxu0
      %2981 = vmatprep.mubr.bf16.mxu0 0
      %2982 = vmatmul.mubr.bf16.gmra.mxu0 %v2862
      %v2983 = vpop.f32.mrf.mxu0
      %v2984 = vadd.f32 0.0, %v2983
      %v2985 = vpop.f32.mrf.mxu0
      %v2986 = vpop.f32.mrf.mxu0
      %v2987 = vadd.f32 0.0, %v2986
      %v2988 = vpop.f32.mrf.mxu0
      %2989 = vmatprep.mubr.bf16.mxu0 0
      %2990 = vmatmul.mubr.bf16.gmra.mxu0 %v2865
      %v2991 = vpop.f32.mrf.mxu0
      %v2992 = vadd.f32 0.0, %v2991
      %v2993 = vpop.f32.mrf.mxu0
      %v2994 = vpop.f32.mrf.mxu0
      %v2995 = vadd.f32 0.0, %v2994
      %v2996 = vpop.f32.mrf.mxu0
      %2997 = vmatprep.mubr.bf16.mxu0 0
      %2998 = vmatmul.mubr.bf16.gmra.mxu0 %v2868
      %v2999 = vpop.f32.mrf.mxu0
      %v3000 = vadd.f32 0.0, %v2999
      %v3001 = vpop.f32.mrf.mxu0
      %v3002 = vpop.f32.mrf.mxu0
      %v3003 = vadd.f32 0.0, %v3002
      %v3004 = vpop.f32.mrf.mxu0
      %3005 = vmatprep.mubr.bf16.mxu0 0
      %3006 = vmatmul.mubr.bf16.gmra.mxu0 %v2871
      %v3007 = vpop.f32.mrf.mxu0
      %v3008 = vadd.f32 0.0, %v3007
      %v3009 = vpop.f32.mrf.mxu0
      %v3010 = vpop.f32.mrf.mxu0
      %v3011 = vadd.f32 0.0, %v3010
      %v3012 = vpop.f32.mrf.mxu0
      %3013 = vmatprep.mubr.bf16.mxu0 0
      %3014 = vmatmul.mubr.bf16.gmra.mxu0 %v2874
      %v3015 = vpop.f32.mrf.mxu0
      %v3016 = vadd.f32 0.0, %v3015
      %v3017 = vpop.f32.mrf.mxu0
      %v3018 = vpop.f32.mrf.mxu0
      %v3019 = vadd.f32 0.0, %v3018
      %v3020 = vpop.f32.mrf.mxu0
      %3021 = vmatprep.mubr.bf16.mxu0 0
      %3022 = vmatmul.mubr.bf16.gmra.mxu0 %v2877
      %v3023 = vpop.f32.mrf.mxu0
      %v3024 = vadd.f32 0.0, %v3023
      %v3025 = vpop.f32.mrf.mxu0
      %v3026 = vpop.f32.mrf.mxu0
      %v3027 = vadd.f32 0.0, %v3026
      %v3028 = vpop.f32.mrf.mxu0
      %3029 = vmatprep.mubr.bf16.mxu0 0
      %3030 = vmatmul.mubr.bf16.gmra.mxu0 %v2880
      %v3031 = vpop.f32.mrf.mxu0
      %v3032 = vadd.f32 0.0, %v3031
      %v3033 = vpop.f32.mrf.mxu0
      %v3034 = vpop.f32.mrf.mxu0
      %v3035 = vadd.f32 0.0, %v3034
      %v3036 = vpop.f32.mrf.mxu0
      %3037 = vmatprep.mubr.bf16.mxu0 0
      %3038 = vmatmul.mubr.bf16.gmra.mxu0 %v2883
      %v3039 = vpop.f32.mrf.mxu0
      %v3040 = vadd.f32 0.0, %v3039
      %v3041 = vpop.f32.mrf.mxu0
      %v3042 = vpop.f32.mrf.mxu0
      %v3043 = vadd.f32 0.0, %v3042
      %v3044 = vpop.f32.mrf.mxu0
      %3045 = vdwg.mxu0
      %v3046 = vadd.f32 %v2723, %v2920
      %v3047 = vadd.f32 %v2724, %v2923
      %v3048 = vadd.f32 %v2725, %v2928
      %v3049 = vadd.f32 %v2726, %v2931
      %v3050 = vadd.f32 %v2727, %v2936
      %v3051 = vadd.f32 %v2728, %v2939
      %v3052 = vadd.f32 %v2729, %v2944
      %v3053 = vadd.f32 %v2730, %v2947
      %v3054 = vadd.f32 %v2731, %v2952
      %v3055 = vadd.f32 %v2732, %v2955
      %v3056 = vadd.f32 %v2733, %v2960
      %v3057 = vadd.f32 %v2734, %v2963
      %v3058 = vadd.f32 %v2735, %v2968
      %v3059 = vadd.f32 %v2736, %v2971
      %v3060 = vadd.f32 %v2737, %v2976
      %v3061 = vadd.f32 %v2738, %v2979
      %v3062 = vadd.f32 %v2739, %v2984
      %v3063 = vadd.f32 %v2740, %v2987
      %v3064 = vadd.f32 %v2741, %v2992
      %v3065 = vadd.f32 %v2742, %v2995
      %v3066 = vadd.f32 %v2743, %v3000
      %v3067 = vadd.f32 %v2744, %v3003
      %v3068 = vadd.f32 %v2745, %v3008
      %v3069 = vadd.f32 %v2746, %v3011
      %v3070 = vadd.f32 %v2747, %v3016
      %v3071 = vadd.f32 %v2748, %v3019
      %v3072 = vadd.f32 %v2749, %v3024
      %v3073 = vadd.f32 %v2750, %v3027
      %v3074 = vadd.f32 %v2751, %v3032
      %v3075 = vadd.f32 %v2752, %v3035
      %v3076 = vadd.f32 %v2753, %v3040
      %v3077 = vadd.f32 %v2754, %v3043
      %v3078 = vld [vmem:[%s2755 + $0x1] sm:$0xff]
      %v3079 = vld [vmem:[%s2755 + $0x9] sm:$0xff]
      %v3080 = vld [vmem:[%s2755 + $0x19] sm:$0xff]
      %v3081 = vld [vmem:[%s2755 + $0x21] sm:$0xff]
      %v3082 = vld [vmem:[%s2755 + $0x31] sm:$0xff]
      %v3083 = vld [vmem:[%s2755 + $0x39] sm:$0xff]
      %v3084 = vld [vmem:[%s2755 + $0x49] sm:$0xff]
      %v3085 = vld [vmem:[%s2755 + $0x51] sm:$0xff]
      %v3086 = vld [vmem:[%s2755 + $0x61] sm:$0xff]
      %v3087 = vld [vmem:[%s2755 + $0x69] sm:$0xff]
      %v3088 = vld [vmem:[%s2755 + $0x79] sm:$0xff]
      %v3089 = vld [vmem:[%s2755 + $0x81] sm:$0xff]
      %v3090 = vld [vmem:[%s2755 + $0x91] sm:$0xff]
      %v3091 = vld [vmem:[%s2755 + $0x99] sm:$0xff]
      %v3092 = vld [vmem:[%s2755 + $0xa9] sm:$0xff]
      %v3093 = vld [vmem:[%s2755 + $0xb1] sm:$0xff]
      %v3094 = vld [vmem:[%s2755 + $0xc1] sm:$0xff]
      %v3095 = vld [vmem:[%s2755 + $0xc9] sm:$0xff]
      %v3096 = vld [vmem:[%s2755 + $0xd9] sm:$0xff]
      %v3097 = vld [vmem:[%s2755 + $0xe1] sm:$0xff]
      %v3098 = vld [vmem:[%s2755 + $0xf1] sm:$0xff]
      %v3099 = vld [vmem:[%s2755 + $0xf9] sm:$0xff]
      %v3100 = vld [vmem:[%s2755 + $0x109] sm:$0xff]
      %v3101 = vld [vmem:[%s2755 + $0x111] sm:$0xff]
      %v3102 = vld [vmem:[%s2755 + $0x121] sm:$0xff]
      %v3103 = vld [vmem:[%s2755 + $0x129] sm:$0xff]
      %v3104 = vld [vmem:[%s2755 + $0x139] sm:$0xff]
      %v3105 = vld [vmem:[%s2755 + $0x141] sm:$0xff]
      %v3106 = vld [vmem:[%s2755 + $0x151] sm:$0xff]
      %v3107 = vld [vmem:[%s2755 + $0x159] sm:$0xff]
      %v3108 = vld [vmem:[%s2755 + $0x169] sm:$0xff]
      %v3109 = vld [vmem:[%s2755 + $0x171] sm:$0xff]
      %v3110 = vpack.c.bf16 %v3079, %v3078
      %v3111 = vpack.c.bf16 %v3081, %v3080
      %v3112 = vpack.c.bf16 %v3083, %v3082
      %v3113 = vpack.c.bf16 %v3085, %v3084
      %v3114 = vpack.c.bf16 %v3087, %v3086
      %v3115 = vpack.c.bf16 %v3089, %v3088
      %v3116 = vpack.c.bf16 %v3091, %v3090
      %v3117 = vpack.c.bf16 %v3093, %v3092
      %v3118 = vpack.c.bf16 %v3095, %v3094
      %v3119 = vpack.c.bf16 %v3097, %v3096
      %v3120 = vpack.c.bf16 %v3099, %v3098
      %v3121 = vpack.c.bf16 %v3101, %v3100
      %v3122 = vpack.c.bf16 %v3103, %v3102
      %v3123 = vpack.c.bf16 %v3105, %v3104
      %v3124 = vpack.c.bf16 %v3107, %v3106
      %v3125 = vpack.c.bf16 %v3109, %v3108
      %s3126 = scalar_lea.vmem %s3, 224
      %v3127 = vld [vmem:[%s3126] sm:$0xf]
      %v3128 = vld [vmem:[%s3126 + $0x4] sm:$0xf]
      %v3129 = vld [vmem:[%s3126 + $0x8] sm:$0xf]
      %v3130 = vld [vmem:[%s3126 + $0xc] sm:$0xf]
      %v3131 = vld [vmem:[%s3126 + $0x10] sm:$0xf]
      %v3132 = vld [vmem:[%s3126 + $0x14] sm:$0xf]
      %v3133 = vld [vmem:[%s3126 + $0x18] sm:$0xf]
      %v3134 = vld [vmem:[%s3126 + $0x1c] sm:$0xf]
      %v3143 = vunpack.c.l.b16 %v3127
      %v3144 = vunpack.c.l.b16 %v3128
      %v3145 = vunpack.c.l.b16 %v3129
      %v3146 = vunpack.c.l.b16 %v3130
      %v3147 = vunpack.c.l.b16 %v3131
      %v3148 = vunpack.c.l.b16 %v3132
      %v3149 = vunpack.c.l.b16 %v3133
      %v3150 = vunpack.c.l.b16 %v3134
      %v3151 = vpack.c.b16 %v3144, %v3143
      %v3152 = vpack.c.b16 %v3146, %v3145
      %v3153 = vpack.c.b16 %v3148, %v3147
      %v3154 = vpack.c.b16 %v3150, %v3149
      %v3160 = vsel %vm831, %v3110, 0
      %v3163 = vsel %vm831, %v3111, 0
      %v3166 = vsel %vm831, %v3112, 0
      %v3169 = vsel %vm831, %v3113, 0
      %v3172 = vsel %vm831, %v3114, 0
      %v3175 = vsel %vm831, %v3115, 0
      %v3178 = vsel %vm831, %v3116, 0
      %v3181 = vsel %vm831, %v3117, 0
      %v3184 = vsel %vm831, %v3118, 0
      %v3187 = vsel %vm831, %v3119, 0
      %v3190 = vsel %vm831, %v3120, 0
      %v3193 = vsel %vm831, %v3121, 0
      %v3196 = vsel %vm831, %v3122, 0
      %v3199 = vsel %vm831, %v3123, 0
      %v3202 = vsel %vm831, %v3124, 0
      %v3205 = vsel %vm831, %v3125, 0
      %3207 = vmatprep.subr.bf16.mxu0 0
      %3208 = vmatpush1.bf16.msra.mxu0 0
      %3209 = vmatprep.subr.bf16.mxu0 0
      %3210 = vmatpush1.bf16.msra.mxu0 0
      %3211 = vmatprep.subr.bf16.mxu0 0
      %3212 = vmatpush1.bf16.msra.mxu0 0
      %3213 = vmatprep.subr.bf16.mxu0 0
      %3214 = vmatpush1.bf16.msra.mxu0 0
      %3215 = vmatprep.subr.bf16.mxu0 0
      %3216 = vmatpush1.bf16.msra.mxu0 %v3154
      %3217 = vmatprep.subr.bf16.mxu0 0
      %3218 = vmatpush1.bf16.msra.mxu0 %v3153
      %3219 = vmatprep.subr.bf16.mxu0 0
      %3220 = vmatpush1.bf16.msra.mxu0 %v3152
      %3221 = vmatprep.subr.bf16.mxu0 0
      %3222 = vmatpush1.bf16.msra.mxu0 %v3151
      %3223 = vmatprep.subr.bf16.mxu0 0
      %3224 = vmatpush2.bf16.msra.mxu0 0
      %3225 = vmatprep.subr.bf16.mxu0 0
      %3226 = vmatpush2.bf16.msra.mxu0 0
      %3227 = vmatprep.subr.bf16.mxu0 0
      %3228 = vmatpush2.bf16.msra.mxu0 0
      %3229 = vmatprep.subr.bf16.mxu0 0
      %3230 = vmatpush2.bf16.msra.mxu0 0
      %3231 = vmatprep.subr.bf16.mxu0 0
      %3232 = vmatpush2.bf16.msra.mxu0 0
      %3233 = vmatprep.subr.bf16.mxu0 0
      %3234 = vmatpush2.bf16.msra.mxu0 0
      %3235 = vmatprep.subr.bf16.mxu0 0
      %3236 = vmatpush2.bf16.msra.mxu0 0
      %3237 = vmatprep.subr.bf16.mxu0 0
      %3238 = vmatpush2.bf16.msra.mxu0 0
      %3239 = vmatprep.mubr.bf16.mxu0 0
      %3240 = vmatmul.mubr.bf16.gmra.mxu0 %v3160
      %v3241 = vpop.f32.mrf.mxu0
      %v3242 = vadd.f32 0.0, %v3241
      %v3243 = vpop.f32.mrf.mxu0
      %v3244 = vpop.f32.mrf.mxu0
      %v3245 = vadd.f32 0.0, %v3244
      %v3246 = vpop.f32.mrf.mxu0
      %3247 = vmatprep.mubr.bf16.mxu0 0
      %3248 = vmatmul.mubr.bf16.gmra.mxu0 %v3163
      %v3249 = vpop.f32.mrf.mxu0
      %v3250 = vadd.f32 0.0, %v3249
      %v3251 = vpop.f32.mrf.mxu0
      %v3252 = vpop.f32.mrf.mxu0
      %v3253 = vadd.f32 0.0, %v3252
      %v3254 = vpop.f32.mrf.mxu0
      %3255 = vmatprep.mubr.bf16.mxu0 0
      %3256 = vmatmul.mubr.bf16.gmra.mxu0 %v3166
      %v3257 = vpop.f32.mrf.mxu0
      %v3258 = vadd.f32 0.0, %v3257
      %v3259 = vpop.f32.mrf.mxu0
      %v3260 = vpop.f32.mrf.mxu0
      %v3261 = vadd.f32 0.0, %v3260
      %v3262 = vpop.f32.mrf.mxu0
      %3263 = vmatprep.mubr.bf16.mxu0 0
      %3264 = vmatmul.mubr.bf16.gmra.mxu0 %v3169
      %v3265 = vpop.f32.mrf.mxu0
      %v3266 = vadd.f32 0.0, %v3265
      %v3267 = vpop.f32.mrf.mxu0
      %v3268 = vpop.f32.mrf.mxu0
      %v3269 = vadd.f32 0.0, %v3268
      %v3270 = vpop.f32.mrf.mxu0
      %3271 = vmatprep.mubr.bf16.mxu0 0
      %3272 = vmatmul.mubr.bf16.gmra.mxu0 %v3172
      %v3273 = vpop.f32.mrf.mxu0
      %v3274 = vadd.f32 0.0, %v3273
      %v3275 = vpop.f32.mrf.mxu0
      %v3276 = vpop.f32.mrf.mxu0
      %v3277 = vadd.f32 0.0, %v3276
      %v3278 = vpop.f32.mrf.mxu0
      %3279 = vmatprep.mubr.bf16.mxu0 0
      %3280 = vmatmul.mubr.bf16.gmra.mxu0 %v3175
      %v3281 = vpop.f32.mrf.mxu0
      %v3282 = vadd.f32 0.0, %v3281
      %v3283 = vpop.f32.mrf.mxu0
      %v3284 = vpop.f32.mrf.mxu0
      %v3285 = vadd.f32 0.0, %v3284
      %v3286 = vpop.f32.mrf.mxu0
      %3287 = vmatprep.mubr.bf16.mxu0 0
      %3288 = vmatmul.mubr.bf16.gmra.mxu0 %v3178
      %v3289 = vpop.f32.mrf.mxu0
      %v3290 = vadd.f32 0.0, %v3289
      %v3291 = vpop.f32.mrf.mxu0
      %v3292 = vpop.f32.mrf.mxu0
      %v3293 = vadd.f32 0.0, %v3292
      %v3294 = vpop.f32.mrf.mxu0
      %3295 = vmatprep.mubr.bf16.mxu0 0
      %3296 = vmatmul.mubr.bf16.gmra.mxu0 %v3181
      %v3297 = vpop.f32.mrf.mxu0
      %v3298 = vadd.f32 0.0, %v3297
      %v3299 = vpop.f32.mrf.mxu0
      %v3300 = vpop.f32.mrf.mxu0
      %v3301 = vadd.f32 0.0, %v3300
      %v3302 = vpop.f32.mrf.mxu0
      %3303 = vmatprep.mubr.bf16.mxu0 0
      %3304 = vmatmul.mubr.bf16.gmra.mxu0 %v3184
      %v3305 = vpop.f32.mrf.mxu0
      %v3306 = vadd.f32 0.0, %v3305
      %v3307 = vpop.f32.mrf.mxu0
      %v3308 = vpop.f32.mrf.mxu0
      %v3309 = vadd.f32 0.0, %v3308
      %v3310 = vpop.f32.mrf.mxu0
      %3311 = vmatprep.mubr.bf16.mxu0 0
      %3312 = vmatmul.mubr.bf16.gmra.mxu0 %v3187
      %v3313 = vpop.f32.mrf.mxu0
      %v3314 = vadd.f32 0.0, %v3313
      %v3315 = vpop.f32.mrf.mxu0
      %v3316 = vpop.f32.mrf.mxu0
      %v3317 = vadd.f32 0.0, %v3316
      %v3318 = vpop.f32.mrf.mxu0
      %3319 = vmatprep.mubr.bf16.mxu0 0
      %3320 = vmatmul.mubr.bf16.gmra.mxu0 %v3190
      %v3321 = vpop.f32.mrf.mxu0
      %v3322 = vadd.f32 0.0, %v3321
      %v3323 = vpop.f32.mrf.mxu0
      %v3324 = vpop.f32.mrf.mxu0
      %v3325 = vadd.f32 0.0, %v3324
      %v3326 = vpop.f32.mrf.mxu0
      %3327 = vmatprep.mubr.bf16.mxu0 0
      %3328 = vmatmul.mubr.bf16.gmra.mxu0 %v3193
      %v3329 = vpop.f32.mrf.mxu0
      %v3330 = vadd.f32 0.0, %v3329
      %v3331 = vpop.f32.mrf.mxu0
      %v3332 = vpop.f32.mrf.mxu0
      %v3333 = vadd.f32 0.0, %v3332
      %v3334 = vpop.f32.mrf.mxu0
      %3335 = vmatprep.mubr.bf16.mxu0 0
      %3336 = vmatmul.mubr.bf16.gmra.mxu0 %v3196
      %v3337 = vpop.f32.mrf.mxu0
      %v3338 = vadd.f32 0.0, %v3337
      %v3339 = vpop.f32.mrf.mxu0
      %v3340 = vpop.f32.mrf.mxu0
      %v3341 = vadd.f32 0.0, %v3340
      %v3342 = vpop.f32.mrf.mxu0
      %3343 = vmatprep.mubr.bf16.mxu0 0
      %3344 = vmatmul.mubr.bf16.gmra.mxu0 %v3199
      %v3345 = vpop.f32.mrf.mxu0
      %v3346 = vadd.f32 0.0, %v3345
      %v3347 = vpop.f32.mrf.mxu0
      %v3348 = vpop.f32.mrf.mxu0
      %v3349 = vadd.f32 0.0, %v3348
      %v3350 = vpop.f32.mrf.mxu0
      %3351 = vmatprep.mubr.bf16.mxu0 0
      %3352 = vmatmul.mubr.bf16.gmra.mxu0 %v3202
      %v3353 = vpop.f32.mrf.mxu0
      %v3354 = vadd.f32 0.0, %v3353
      %v3355 = vpop.f32.mrf.mxu0
      %v3356 = vpop.f32.mrf.mxu0
      %v3357 = vadd.f32 0.0, %v3356
      %v3358 = vpop.f32.mrf.mxu0
      %3359 = vmatprep.mubr.bf16.mxu0 0
      %3360 = vmatmul.mubr.bf16.gmra.mxu0 %v3205
      %v3361 = vpop.f32.mrf.mxu0
      %v3362 = vadd.f32 0.0, %v3361
      %v3363 = vpop.f32.mrf.mxu0
      %v3364 = vpop.f32.mrf.mxu0
      %v3365 = vadd.f32 0.0, %v3364
      %v3366 = vpop.f32.mrf.mxu0
      %3367 = vdwg.mxu0
      %v3368 = vadd.f32 %v3046, %v3242
      %v3369 = vadd.f32 %v3047, %v3245
      %v3370 = vadd.f32 %v3048, %v3250
      %v3371 = vadd.f32 %v3049, %v3253
      %v3372 = vadd.f32 %v3050, %v3258
      %v3373 = vadd.f32 %v3051, %v3261
      %v3374 = vadd.f32 %v3052, %v3266
      %v3375 = vadd.f32 %v3053, %v3269
      %v3376 = vadd.f32 %v3054, %v3274
      %v3377 = vadd.f32 %v3055, %v3277
      %v3378 = vadd.f32 %v3056, %v3282
      %v3379 = vadd.f32 %v3057, %v3285
      %v3380 = vadd.f32 %v3058, %v3290
      %v3381 = vadd.f32 %v3059, %v3293
      %v3382 = vadd.f32 %v3060, %v3298
      %v3383 = vadd.f32 %v3061, %v3301
      %v3384 = vadd.f32 %v3062, %v3306
      %v3385 = vadd.f32 %v3063, %v3309
      %v3386 = vadd.f32 %v3064, %v3314
      %v3387 = vadd.f32 %v3065, %v3317
      %v3388 = vadd.f32 %v3066, %v3322
      %v3389 = vadd.f32 %v3067, %v3325
      %v3390 = vadd.f32 %v3068, %v3330
      %v3391 = vadd.f32 %v3069, %v3333
      %v3392 = vadd.f32 %v3070, %v3338
      %v3393 = vadd.f32 %v3071, %v3341
      %v3394 = vadd.f32 %v3072, %v3346
      %v3395 = vadd.f32 %v3073, %v3349
      %v3396 = vadd.f32 %v3074, %v3354
      %v3397 = vadd.f32 %v3075, %v3357
      %v3398 = vadd.f32 %v3076, %v3362
      %v3399 = vadd.f32 %v3077, %v3365
      %v3400 = vld [vmem:[%s2755 + $0x2] sm:$0xff]
      %v3401 = vld [vmem:[%s2755 + $0xa] sm:$0xff]
      %v3402 = vld [vmem:[%s2755 + $0x1a] sm:$0xff]
      %v3403 = vld [vmem:[%s2755 + $0x22] sm:$0xff]
      %v3404 = vld [vmem:[%s2755 + $0x32] sm:$0xff]
      %v3405 = vld [vmem:[%s2755 + $0x3a] sm:$0xff]
      %v3406 = vld [vmem:[%s2755 + $0x4a] sm:$0xff]
      %v3407 = vld [vmem:[%s2755 + $0x52] sm:$0xff]
      %v3408 = vld [vmem:[%s2755 + $0x62] sm:$0xff]
      %v3409 = vld [vmem:[%s2755 + $0x6a] sm:$0xff]
      %v3410 = vld [vmem:[%s2755 + $0x7a] sm:$0xff]
      %v3411 = vld [vmem:[%s2755 + $0x82] sm:$0xff]
      %v3412 = vld [vmem:[%s2755 + $0x92] sm:$0xff]
      %v3413 = vld [vmem:[%s2755 + $0x9a] sm:$0xff]
      %v3414 = vld [vmem:[%s2755 + $0xaa] sm:$0xff]
      %v3415 = vld [vmem:[%s2755 + $0xb2] sm:$0xff]
      %v3416 = vld [vmem:[%s2755 + $0xc2] sm:$0xff]
      %v3417 = vld [vmem:[%s2755 + $0xca] sm:$0xff]
      %v3418 = vld [vmem:[%s2755 + $0xda] sm:$0xff]
      %v3419 = vld [vmem:[%s2755 + $0xe2] sm:$0xff]
      %v3420 = vld [vmem:[%s2755 + $0xf2] sm:$0xff]
      %v3421 = vld [vmem:[%s2755 + $0xfa] sm:$0xff]
      %v3422 = vld [vmem:[%s2755 + $0x10a] sm:$0xff]
      %v3423 = vld [vmem:[%s2755 + $0x112] sm:$0xff]
      %v3424 = vld [vmem:[%s2755 + $0x122] sm:$0xff]
      %v3425 = vld [vmem:[%s2755 + $0x12a] sm:$0xff]
      %v3426 = vld [vmem:[%s2755 + $0x13a] sm:$0xff]
      %v3427 = vld [vmem:[%s2755 + $0x142] sm:$0xff]
      %v3428 = vld [vmem:[%s2755 + $0x152] sm:$0xff]
      %v3429 = vld [vmem:[%s2755 + $0x15a] sm:$0xff]
      %v3430 = vld [vmem:[%s2755 + $0x16a] sm:$0xff]
      %v3431 = vld [vmem:[%s2755 + $0x172] sm:$0xff]
      %v3432 = vpack.c.bf16 %v3401, %v3400
      %v3433 = vpack.c.bf16 %v3403, %v3402
      %v3434 = vpack.c.bf16 %v3405, %v3404
      %v3435 = vpack.c.bf16 %v3407, %v3406
      %v3436 = vpack.c.bf16 %v3409, %v3408
      %v3437 = vpack.c.bf16 %v3411, %v3410
      %v3438 = vpack.c.bf16 %v3413, %v3412
      %v3439 = vpack.c.bf16 %v3415, %v3414
      %v3440 = vpack.c.bf16 %v3417, %v3416
      %v3441 = vpack.c.bf16 %v3419, %v3418
      %v3442 = vpack.c.bf16 %v3421, %v3420
      %v3443 = vpack.c.bf16 %v3423, %v3422
      %v3444 = vpack.c.bf16 %v3425, %v3424
      %v3445 = vpack.c.bf16 %v3427, %v3426
      %v3446 = vpack.c.bf16 %v3429, %v3428
      %v3447 = vpack.c.bf16 %v3431, %v3430
      %s3448 = scalar_lea.vmem %s3, 256
      %v3449 = vld [vmem:[%s3448] sm:$0xf]
      %v3450 = vld [vmem:[%s3448 + $0x4] sm:$0xf]
      %v3451 = vld [vmem:[%s3448 + $0x8] sm:$0xf]
      %v3452 = vld [vmem:[%s3448 + $0xc] sm:$0xf]
      %v3453 = vld [vmem:[%s3448 + $0x10] sm:$0xf]
      %v3454 = vld [vmem:[%s3448 + $0x14] sm:$0xf]
      %v3455 = vld [vmem:[%s3448 + $0x18] sm:$0xf]
      %v3456 = vld [vmem:[%s3448 + $0x1c] sm:$0xf]
      %v3465 = vunpack.c.l.b16 %v3449
      %v3466 = vunpack.c.l.b16 %v3450
      %v3467 = vunpack.c.l.b16 %v3451
      %v3468 = vunpack.c.l.b16 %v3452
      %v3469 = vunpack.c.l.b16 %v3453
      %v3470 = vunpack.c.l.b16 %v3454
      %v3471 = vunpack.c.l.b16 %v3455
      %v3472 = vunpack.c.l.b16 %v3456
      %v3473 = vpack.c.b16 %v3466, %v3465
      %v3474 = vpack.c.b16 %v3468, %v3467
      %v3475 = vpack.c.b16 %v3470, %v3469
      %v3476 = vpack.c.b16 %v3472, %v3471
      %v3482 = vsel %vm831, %v3432, 0
      %v3485 = vsel %vm831, %v3433, 0
      %v3488 = vsel %vm831, %v3434, 0
      %v3491 = vsel %vm831, %v3435, 0
      %v3494 = vsel %vm831, %v3436, 0
      %v3497 = vsel %vm831, %v3437, 0
      %v3500 = vsel %vm831, %v3438, 0
      %v3503 = vsel %vm831, %v3439, 0
      %v3506 = vsel %vm831, %v3440, 0
      %v3509 = vsel %vm831, %v3441, 0
      %v3512 = vsel %vm831, %v3442, 0
      %v3515 = vsel %vm831, %v3443, 0
      %v3518 = vsel %vm831, %v3444, 0
      %v3521 = vsel %vm831, %v3445, 0
      %v3524 = vsel %vm831, %v3446, 0
      %v3527 = vsel %vm831, %v3447, 0
      %3529 = vmatprep.subr.bf16.mxu0 0
      %3530 = vmatpush1.bf16.msra.mxu0 0
      %3531 = vmatprep.subr.bf16.mxu0 0
      %3532 = vmatpush1.bf16.msra.mxu0 0
      %3533 = vmatprep.subr.bf16.mxu0 0
      %3534 = vmatpush1.bf16.msra.mxu0 0
      %3535 = vmatprep.subr.bf16.mxu0 0
      %3536 = vmatpush1.bf16.msra.mxu0 0
      %3537 = vmatprep.subr.bf16.mxu0 0
      %3538 = vmatpush1.bf16.msra.mxu0 %v3476
      %3539 = vmatprep.subr.bf16.mxu0 0
      %3540 = vmatpush1.bf16.msra.mxu0 %v3475
      %3541 = vmatprep.subr.bf16.mxu0 0
      %3542 = vmatpush1.bf16.msra.mxu0 %v3474
      %3543 = vmatprep.subr.bf16.mxu0 0
      %3544 = vmatpush1.bf16.msra.mxu0 %v3473
      %3545 = vmatprep.subr.bf16.mxu0 0
      %3546 = vmatpush2.bf16.msra.mxu0 0
      %3547 = vmatprep.subr.bf16.mxu0 0
      %3548 = vmatpush2.bf16.msra.mxu0 0
      %3549 = vmatprep.subr.bf16.mxu0 0
      %3550 = vmatpush2.bf16.msra.mxu0 0
      %3551 = vmatprep.subr.bf16.mxu0 0
      %3552 = vmatpush2.bf16.msra.mxu0 0
      %3553 = vmatprep.subr.bf16.mxu0 0
      %3554 = vmatpush2.bf16.msra.mxu0 0
      %3555 = vmatprep.subr.bf16.mxu0 0
      %3556 = vmatpush2.bf16.msra.mxu0 0
      %3557 = vmatprep.subr.bf16.mxu0 0
      %3558 = vmatpush2.bf16.msra.mxu0 0
      %3559 = vmatprep.subr.bf16.mxu0 0
      %3560 = vmatpush2.bf16.msra.mxu0 0
      %3561 = vmatprep.mubr.bf16.mxu0 0
      %3562 = vmatmul.mubr.bf16.gmra.mxu0 %v3482
      %v3563 = vpop.f32.mrf.mxu0
      %v3564 = vadd.f32 0.0, %v3563
      %v3565 = vpop.f32.mrf.mxu0
      %v3566 = vpop.f32.mrf.mxu0
      %v3567 = vadd.f32 0.0, %v3566
      %v3568 = vpop.f32.mrf.mxu0
      %3569 = vmatprep.mubr.bf16.mxu0 0
      %3570 = vmatmul.mubr.bf16.gmra.mxu0 %v3485
      %v3571 = vpop.f32.mrf.mxu0
      %v3572 = vadd.f32 0.0, %v3571
      %v3573 = vpop.f32.mrf.mxu0
      %v3574 = vpop.f32.mrf.mxu0
      %v3575 = vadd.f32 0.0, %v3574
      %v3576 = vpop.f32.mrf.mxu0
      %3577 = vmatprep.mubr.bf16.mxu0 0
      %3578 = vmatmul.mubr.bf16.gmra.mxu0 %v3488
      %v3579 = vpop.f32.mrf.mxu0
      %v3580 = vadd.f32 0.0, %v3579
      %v3581 = vpop.f32.mrf.mxu0
      %v3582 = vpop.f32.mrf.mxu0
      %v3583 = vadd.f32 0.0, %v3582
      %v3584 = vpop.f32.mrf.mxu0
      %3585 = vmatprep.mubr.bf16.mxu0 0
      %3586 = vmatmul.mubr.bf16.gmra.mxu0 %v3491
      %v3587 = vpop.f32.mrf.mxu0
      %v3588 = vadd.f32 0.0, %v3587
      %v3589 = vpop.f32.mrf.mxu0
      %v3590 = vpop.f32.mrf.mxu0
      %v3591 = vadd.f32 0.0, %v3590
      %v3592 = vpop.f32.mrf.mxu0
      %3593 = vmatprep.mubr.bf16.mxu0 0
      %3594 = vmatmul.mubr.bf16.gmra.mxu0 %v3494
      %v3595 = vpop.f32.mrf.mxu0
      %v3596 = vadd.f32 0.0, %v3595
      %v3597 = vpop.f32.mrf.mxu0
      %v3598 = vpop.f32.mrf.mxu0
      %v3599 = vadd.f32 0.0, %v3598
      %v3600 = vpop.f32.mrf.mxu0
      %3601 = vmatprep.mubr.bf16.mxu0 0
      %3602 = vmatmul.mubr.bf16.gmra.mxu0 %v3497
      %v3603 = vpop.f32.mrf.mxu0
      %v3604 = vadd.f32 0.0, %v3603
      %v3605 = vpop.f32.mrf.mxu0
      %v3606 = vpop.f32.mrf.mxu0
      %v3607 = vadd.f32 0.0, %v3606
      %v3608 = vpop.f32.mrf.mxu0
      %3609 = vmatprep.mubr.bf16.mxu0 0
      %3610 = vmatmul.mubr.bf16.gmra.mxu0 %v3500
      %v3611 = vpop.f32.mrf.mxu0
      %v3612 = vadd.f32 0.0, %v3611
      %v3613 = vpop.f32.mrf.mxu0
      %v3614 = vpop.f32.mrf.mxu0
      %v3615 = vadd.f32 0.0, %v3614
      %v3616 = vpop.f32.mrf.mxu0
      %3617 = vmatprep.mubr.bf16.mxu0 0
      %3618 = vmatmul.mubr.bf16.gmra.mxu0 %v3503
      %v3619 = vpop.f32.mrf.mxu0
      %v3620 = vadd.f32 0.0, %v3619
      %v3621 = vpop.f32.mrf.mxu0
      %v3622 = vpop.f32.mrf.mxu0
      %v3623 = vadd.f32 0.0, %v3622
      %v3624 = vpop.f32.mrf.mxu0
      %3625 = vmatprep.mubr.bf16.mxu0 0
      %3626 = vmatmul.mubr.bf16.gmra.mxu0 %v3506
      %v3627 = vpop.f32.mrf.mxu0
      %v3628 = vadd.f32 0.0, %v3627
      %v3629 = vpop.f32.mrf.mxu0
      %v3630 = vpop.f32.mrf.mxu0
      %v3631 = vadd.f32 0.0, %v3630
      %v3632 = vpop.f32.mrf.mxu0
      %3633 = vmatprep.mubr.bf16.mxu0 0
      %3634 = vmatmul.mubr.bf16.gmra.mxu0 %v3509
      %v3635 = vpop.f32.mrf.mxu0
      %v3636 = vadd.f32 0.0, %v3635
      %v3637 = vpop.f32.mrf.mxu0
      %v3638 = vpop.f32.mrf.mxu0
      %v3639 = vadd.f32 0.0, %v3638
      %v3640 = vpop.f32.mrf.mxu0
      %3641 = vmatprep.mubr.bf16.mxu0 0
      %3642 = vmatmul.mubr.bf16.gmra.mxu0 %v3512
      %v3643 = vpop.f32.mrf.mxu0
      %v3644 = vadd.f32 0.0, %v3643
      %v3645 = vpop.f32.mrf.mxu0
      %v3646 = vpop.f32.mrf.mxu0
      %v3647 = vadd.f32 0.0, %v3646
      %v3648 = vpop.f32.mrf.mxu0
      %3649 = vmatprep.mubr.bf16.mxu0 0
      %3650 = vmatmul.mubr.bf16.gmra.mxu0 %v3515
      %v3651 = vpop.f32.mrf.mxu0
      %v3652 = vadd.f32 0.0, %v3651
      %v3653 = vpop.f32.mrf.mxu0
      %v3654 = vpop.f32.mrf.mxu0
      %v3655 = vadd.f32 0.0, %v3654
      %v3656 = vpop.f32.mrf.mxu0
      %3657 = vmatprep.mubr.bf16.mxu0 0
      %3658 = vmatmul.mubr.bf16.gmra.mxu0 %v3518
      %v3659 = vpop.f32.mrf.mxu0
      %v3660 = vadd.f32 0.0, %v3659
      %v3661 = vpop.f32.mrf.mxu0
      %v3662 = vpop.f32.mrf.mxu0
      %v3663 = vadd.f32 0.0, %v3662
      %v3664 = vpop.f32.mrf.mxu0
      %3665 = vmatprep.mubr.bf16.mxu0 0
      %3666 = vmatmul.mubr.bf16.gmra.mxu0 %v3521
      %v3667 = vpop.f32.mrf.mxu0
      %v3668 = vadd.f32 0.0, %v3667
      %v3669 = vpop.f32.mrf.mxu0
      %v3670 = vpop.f32.mrf.mxu0
      %v3671 = vadd.f32 0.0, %v3670
      %v3672 = vpop.f32.mrf.mxu0
      %3673 = vmatprep.mubr.bf16.mxu0 0
      %3674 = vmatmul.mubr.bf16.gmra.mxu0 %v3524
      %v3675 = vpop.f32.mrf.mxu0
      %v3676 = vadd.f32 0.0, %v3675
      %v3677 = vpop.f32.mrf.mxu0
      %v3678 = vpop.f32.mrf.mxu0
      %v3679 = vadd.f32 0.0, %v3678
      %v3680 = vpop.f32.mrf.mxu0
      %3681 = vmatprep.mubr.bf16.mxu0 0
      %3682 = vmatmul.mubr.bf16.gmra.mxu0 %v3527
      %v3683 = vpop.f32.mrf.mxu0
      %v3684 = vadd.f32 0.0, %v3683
      %v3685 = vpop.f32.mrf.mxu0
      %v3686 = vpop.f32.mrf.mxu0
      %v3687 = vadd.f32 0.0, %v3686
      %v3688 = vpop.f32.mrf.mxu0
      %3689 = vdwg.mxu0
      %v3690 = vadd.f32 %v3368, %v3564
      %v3691 = vadd.f32 %v3369, %v3567
      %v3692 = vadd.f32 %v3370, %v3572
      %v3693 = vadd.f32 %v3371, %v3575
      %v3694 = vadd.f32 %v3372, %v3580
      %v3695 = vadd.f32 %v3373, %v3583
      %v3696 = vadd.f32 %v3374, %v3588
      %v3697 = vadd.f32 %v3375, %v3591
      %v3698 = vadd.f32 %v3376, %v3596
      %v3699 = vadd.f32 %v3377, %v3599
      %v3700 = vadd.f32 %v3378, %v3604
      %v3701 = vadd.f32 %v3379, %v3607
      %v3702 = vadd.f32 %v3380, %v3612
      %v3703 = vadd.f32 %v3381, %v3615
      %v3704 = vadd.f32 %v3382, %v3620
      %v3705 = vadd.f32 %v3383, %v3623
      %v3706 = vadd.f32 %v3384, %v3628
      %v3707 = vadd.f32 %v3385, %v3631
      %v3708 = vadd.f32 %v3386, %v3636
      %v3709 = vadd.f32 %v3387, %v3639
      %v3710 = vadd.f32 %v3388, %v3644
      %v3711 = vadd.f32 %v3389, %v3647
      %v3712 = vadd.f32 %v3390, %v3652
      %v3713 = vadd.f32 %v3391, %v3655
      %v3714 = vadd.f32 %v3392, %v3660
      %v3715 = vadd.f32 %v3393, %v3663
      %v3716 = vadd.f32 %v3394, %v3668
      %v3717 = vadd.f32 %v3395, %v3671
      %v3718 = vadd.f32 %v3396, %v3676
      %v3719 = vadd.f32 %v3397, %v3679
      %v3720 = vadd.f32 %v3398, %v3684
      %v3721 = vadd.f32 %v3399, %v3687
      %v3722 = vld [vmem:[%s4] sm:$0x1]
      %v3724 = vlaneseq
      %v3725 = vshrl.u32 %v3724, 7
      %v3726 = vsub.s32 0, %v3725
      %v3727 = vrot.slane %v3722, %v3726
      %v3729 = vadd.f32 %v3690, %v3727
      %v3730 = vadd.f32 %v3691, %v3727
      %v3731 = vadd.f32 %v3692, %v3727
      %v3732 = vadd.f32 %v3693, %v3727
      %v3733 = vadd.f32 %v3694, %v3727
      %v3734 = vadd.f32 %v3695, %v3727
      %v3735 = vadd.f32 %v3696, %v3727
      %v3736 = vadd.f32 %v3697, %v3727
      %v3737 = vadd.f32 %v3698, %v3727
      %v3738 = vadd.f32 %v3699, %v3727
      %v3739 = vadd.f32 %v3700, %v3727
      %v3740 = vadd.f32 %v3701, %v3727
      %v3741 = vadd.f32 %v3702, %v3727
      %v3742 = vadd.f32 %v3703, %v3727
      %v3743 = vadd.f32 %v3704, %v3727
      %v3744 = vadd.f32 %v3705, %v3727
      %v3745 = vadd.f32 %v3706, %v3727
      %v3746 = vadd.f32 %v3707, %v3727
      %v3747 = vadd.f32 %v3708, %v3727
      %v3748 = vadd.f32 %v3709, %v3727
      %v3749 = vadd.f32 %v3710, %v3727
      %v3750 = vadd.f32 %v3711, %v3727
      %v3751 = vadd.f32 %v3712, %v3727
      %v3752 = vadd.f32 %v3713, %v3727
      %v3753 = vadd.f32 %v3714, %v3727
      %v3754 = vadd.f32 %v3715, %v3727
      %v3755 = vadd.f32 %v3716, %v3727
      %v3756 = vadd.f32 %v3717, %v3727
      %v3757 = vadd.f32 %v3718, %v3727
      %v3758 = vadd.f32 %v3719, %v3727
      %v3759 = vadd.f32 %v3720, %v3727
      %v3760 = vadd.f32 %v3721, %v3727
      %v3761 = vmax.f32 %v3729, 0.0
      %v3762 = vmax.f32 %v3730, 0.0
      %v3763 = vmax.f32 %v3731, 0.0
      %v3764 = vmax.f32 %v3732, 0.0
      %v3765 = vmax.f32 %v3733, 0.0
      %v3766 = vmax.f32 %v3734, 0.0
      %v3767 = vmax.f32 %v3735, 0.0
      %v3768 = vmax.f32 %v3736, 0.0
      %v3769 = vmax.f32 %v3737, 0.0
      %v3770 = vmax.f32 %v3738, 0.0
      %v3771 = vmax.f32 %v3739, 0.0
      %v3772 = vmax.f32 %v3740, 0.0
      %v3773 = vmax.f32 %v3741, 0.0
      %v3774 = vmax.f32 %v3742, 0.0
      %v3775 = vmax.f32 %v3743, 0.0
      %v3776 = vmax.f32 %v3744, 0.0
      %v3777 = vmax.f32 %v3745, 0.0
      %v3778 = vmax.f32 %v3746, 0.0
      %v3779 = vmax.f32 %v3747, 0.0
      %v3780 = vmax.f32 %v3748, 0.0
      %v3781 = vmax.f32 %v3749, 0.0
      %v3782 = vmax.f32 %v3750, 0.0
      %v3783 = vmax.f32 %v3751, 0.0
      %v3784 = vmax.f32 %v3752, 0.0
      %v3785 = vmax.f32 %v3753, 0.0
      %v3786 = vmax.f32 %v3754, 0.0
      %v3787 = vmax.f32 %v3755, 0.0
      %v3788 = vmax.f32 %v3756, 0.0
      %v3789 = vmax.f32 %v3757, 0.0
      %v3790 = vmax.f32 %v3758, 0.0
      %v3791 = vmax.f32 %v3759, 0.0
      %v3792 = vmax.f32 %v3760, 0.0
      %v3825 = vrot.slane %v3761, 7
      %v3826 = vrot.slane %v3762, 7
      %v3827 = vsel %vm696, %v3825, %v3826
      %v3828 = vrot.slane %v3763, 7
      %v3829 = vrot.slane %v3764, 7
      %v3830 = vsel %vm696, %v3828, %v3829
      %v3831 = vrot.slane %v3765, 7
      %v3832 = vrot.slane %v3766, 7
      %v3833 = vsel %vm696, %v3831, %v3832
      %v3834 = vrot.slane %v3767, 7
      %v3835 = vrot.slane %v3768, 7
      %v3836 = vsel %vm696, %v3834, %v3835
      %v3837 = vrot.slane %v3769, 7
      %v3838 = vrot.slane %v3770, 7
      %v3839 = vsel %vm696, %v3837, %v3838
      %v3840 = vrot.slane %v3771, 7
      %v3841 = vrot.slane %v3772, 7
      %v3842 = vsel %vm696, %v3840, %v3841
      %v3843 = vrot.slane %v3773, 7
      %v3844 = vrot.slane %v3774, 7
      %v3845 = vsel %vm696, %v3843, %v3844
      %v3846 = vrot.slane %v3775, 7
      %v3847 = vrot.slane %v3776, 7
      %v3848 = vsel %vm696, %v3846, %v3847
      %v3849 = vrot.slane %v3777, 7
      %v3850 = vrot.slane %v3778, 7
      %v3851 = vsel %vm696, %v3849, %v3850
      %v3852 = vrot.slane %v3779, 7
      %v3853 = vrot.slane %v3780, 7
      %v3854 = vsel %vm696, %v3852, %v3853
      %v3855 = vrot.slane %v3781, 7
      %v3856 = vrot.slane %v3782, 7
      %v3857 = vsel %vm696, %v3855, %v3856
      %v3858 = vrot.slane %v3783, 7
      %v3859 = vrot.slane %v3784, 7
      %v3860 = vsel %vm696, %v3858, %v3859
      %v3861 = vrot.slane %v3785, 7
      %v3862 = vrot.slane %v3786, 7
      %v3863 = vsel %vm696, %v3861, %v3862
      %v3864 = vrot.slane %v3787, 7
      %v3865 = vrot.slane %v3788, 7
      %v3866 = vsel %vm696, %v3864, %v3865
      %v3867 = vrot.slane %v3789, 7
      %v3868 = vrot.slane %v3790, 7
      %v3869 = vsel %vm696, %v3867, %v3868
      %v3870 = vrot.slane %v3791, 7
      %v3871 = vrot.slane %v3792, 7
      %v3872 = vsel %vm696, %v3870, %v3871
      %v3921 = vsel %vm696, 0.0, %v3825
      %v3922 = vsel %vm696, 0.0, %v3828
      %v3923 = vsel %vm696, 0.0, %v3831
      %v3924 = vsel %vm696, 0.0, %v3834
      %v3925 = vsel %vm696, 0.0, %v3837
      %v3926 = vsel %vm696, 0.0, %v3840
      %v3927 = vsel %vm696, 0.0, %v3843
      %v3928 = vsel %vm696, 0.0, %v3846
      %v3929 = vsel %vm696, 0.0, %v3849
      %v3930 = vsel %vm696, 0.0, %v3852
      %v3931 = vsel %vm696, 0.0, %v3855
      %v3932 = vsel %vm696, 0.0, %v3858
      %v3933 = vsel %vm696, 0.0, %v3861
      %v3934 = vsel %vm696, 0.0, %v3864
      %v3935 = vsel %vm696, 0.0, %v3867
      %v3936 = vsel %vm696, 0.0, %v3870
      %v3937 = vsel %vm696, %v3826, 0.0
      %v3938 = vsel %vm696, %v3829, 0.0
      %v3939 = vsel %vm696, %v3832, 0.0
      %v3940 = vsel %vm696, %v3835, 0.0
      %v3941 = vsel %vm696, %v3838, 0.0
      %v3942 = vsel %vm696, %v3841, 0.0
      %v3943 = vsel %vm696, %v3844, 0.0
      %v3944 = vsel %vm696, %v3847, 0.0
      %v3945 = vsel %vm696, %v3850, 0.0
      %v3946 = vsel %vm696, %v3853, 0.0
      %v3947 = vsel %vm696, %v3856, 0.0
      %v3948 = vsel %vm696, %v3859, 0.0
      %v3949 = vsel %vm696, %v3862, 0.0
      %v3950 = vsel %vm696, %v3865, 0.0
      %v3951 = vsel %vm696, %v3868, 0.0
      %v3952 = vsel %vm696, %v3871, 0.0
      %3953 = vst.msk [vmem:[#allocation3] sm:$0xff] %vm831, %v797
      %3954 = vst.msk [vmem:[#allocation3 + $0x8] sm:$0xff] %vm831, %v698
      %3955 = vst.msk [vmem:[#allocation3 + $0x10] sm:$0x3] %vm834, %v814
      %3956 = vst.msk [vmem:[#allocation3 + $0x18] sm:$0xff] %vm831, %v3921
      %3957 = vst.msk [vmem:[#allocation3 + $0x20] sm:$0xff] %vm831, %v3827
      %3958 = vst.msk [vmem:[#allocation3 + $0x28] sm:$0x3] %vm834, %v3937
      %3959 = vst.msk [vmem:[#allocation3 + $0x30] sm:$0xff] %vm831, %v3922
      %3960 = vst.msk [vmem:[#allocation3 + $0x38] sm:$0xff] %vm831, %v3830
      %3961 = vst.msk [vmem:[#allocation3 + $0x40] sm:$0x3] %vm834, %v3938
      %3962 = vst.msk [vmem:[#allocation3 + $0x48] sm:$0xff] %vm831, %v3923
      %3963 = vst.msk [vmem:[#allocation3 + $0x50] sm:$0xff] %vm831, %v3833
      %3964 = vst.msk [vmem:[#allocation3 + $0x58] sm:$0x3] %vm834, %v3939
      %3965 = vst.msk [vmem:[#allocation3 + $0x60] sm:$0xff] %vm831, %v3924
      %3966 = vst.msk [vmem:[#allocation3 + $0x68] sm:$0xff] %vm831, %v3836
      %3967 = vst.msk [vmem:[#allocation3 + $0x70] sm:$0x3] %vm834, %v3940
      %3968 = vst.msk [vmem:[#allocation3 + $0x78] sm:$0xff] %vm831, %v3925
      %3969 = vst.msk [vmem:[#allocation3 + $0x80] sm:$0xff] %vm831, %v3839
      %3970 = vst.msk [vmem:[#allocation3 + $0x88] sm:$0x3] %vm834, %v3941
      %3971 = vst.msk [vmem:[#allocation3 + $0x90] sm:$0xff] %vm831, %v3926
      %3972 = vst.msk [vmem:[#allocation3 + $0x98] sm:$0xff] %vm831, %v3842
      %3973 = vst.msk [vmem:[#allocation3 + $0xa0] sm:$0x3] %vm834, %v3942
      %3974 = vst.msk [vmem:[#allocation3 + $0xa8] sm:$0xff] %vm831, %v3927
      %3975 = vst.msk [vmem:[#allocation3 + $0xb0] sm:$0xff] %vm831, %v3845
      %3976 = vst.msk [vmem:[#allocation3 + $0xb8] sm:$0x3] %vm834, %v3943
      %3977 = vst.msk [vmem:[#allocation3 + $0xc0] sm:$0xff] %vm831, %v3928
      %3978 = vst.msk [vmem:[#allocation3 + $0xc8] sm:$0xff] %vm831, %v3848
      %3979 = vst.msk [vmem:[#allocation3 + $0xd0] sm:$0x3] %vm834, %v3944
      %3980 = vst.msk [vmem:[#allocation3 + $0xd8] sm:$0xff] %vm831, %v3929
      %3981 = vst.msk [vmem:[#allocation3 + $0xe0] sm:$0xff] %vm831, %v3851
      %3982 = vst.msk [vmem:[#allocation3 + $0xe8] sm:$0x3] %vm834, %v3945
      %3983 = vst.msk [vmem:[#allocation3 + $0xf0] sm:$0xff] %vm831, %v3930
      %3984 = vst.msk [vmem:[#allocation3 + $0xf8] sm:$0xff] %vm831, %v3854
      %3985 = vst.msk [vmem:[#allocation3 + $0x100] sm:$0x3] %vm834, %v3946
      %3986 = vst.msk [vmem:[#allocation3 + $0x108] sm:$0xff] %vm831, %v3931
      %3987 = vst.msk [vmem:[#allocation3 + $0x110] sm:$0xff] %vm831, %v3857
      %3988 = vst.msk [vmem:[#allocation3 + $0x118] sm:$0x3] %vm834, %v3947
      %3989 = vst.msk [vmem:[#allocation3 + $0x120] sm:$0xff] %vm831, %v3932
      %3990 = vst.msk [vmem:[#allocation3 + $0x128] sm:$0xff] %vm831, %v3860
      %3991 = vst.msk [vmem:[#allocation3 + $0x130] sm:$0x3] %vm834, %v3948
      %3992 = vst.msk [vmem:[#allocation3 + $0x138] sm:$0xff] %vm831, %v3933
      %3993 = vst.msk [vmem:[#allocation3 + $0x140] sm:$0xff] %vm831, %v3863
      %3994 = vst.msk [vmem:[#allocation3 + $0x148] sm:$0x3] %vm834, %v3949
      %3995 = vst.msk [vmem:[#allocation3 + $0x150] sm:$0xff] %vm831, %v3934
      %3996 = vst.msk [vmem:[#allocation3 + $0x158] sm:$0xff] %vm831, %v3866
      %3997 = vst.msk [vmem:[#allocation3 + $0x160] sm:$0x3] %vm834, %v3950
      %3998 = vst.msk [vmem:[#allocation3 + $0x168] sm:$0xff] %vm831, %v3935
      %3999 = vst.msk [vmem:[#allocation3 + $0x170] sm:$0xff] %vm831, %v3869
      %4000 = vst.msk [vmem:[#allocation3 + $0x178] sm:$0x3] %vm834, %v3951
      %4001 = vst.msk [vmem:[#allocation3 + $0x180] sm:$0xff] %vm831, %v3936
      %4002 = vst.msk [vmem:[#allocation3 + $0x188] sm:$0xff] %vm831, %v3872
      %4003 = vst.msk [vmem:[#allocation3 + $0x190] sm:$0x3] %vm834, %v3952
      %4004 = vst.msk [vmem:[#allocation3 + $0x198] sm:$0xff] %vm831, %v797
      %4005 = vst.msk [vmem:[#allocation3 + $0x1a0] sm:$0xff] %vm831, %v698
      %4006 = vst.msk [vmem:[#allocation3 + $0x1a8] sm:$0x3] %vm834, %v814
      %v4007 = vld [vmem:[#allocation3] sm:$0xff]
      %v4008 = vld [vmem:[#allocation3 + $0x8] sm:$0xff]
      %v4009 = vld [vmem:[#allocation3 + $0x18] sm:$0xff]
      %v4010 = vld [vmem:[#allocation3 + $0x20] sm:$0xff]
      %v4011 = vld [vmem:[#allocation3 + $0x30] sm:$0xff]
      %v4012 = vld [vmem:[#allocation3 + $0x38] sm:$0xff]
      %v4013 = vld [vmem:[#allocation3 + $0x48] sm:$0xff]
      %v4014 = vld [vmem:[#allocation3 + $0x50] sm:$0xff]
      %v4015 = vld [vmem:[#allocation3 + $0x60] sm:$0xff]
      %v4016 = vld [vmem:[#allocation3 + $0x68] sm:$0xff]
      %v4017 = vld [vmem:[#allocation3 + $0x78] sm:$0xff]
      %v4018 = vld [vmem:[#allocation3 + $0x80] sm:$0xff]
      %v4019 = vld [vmem:[#allocation3 + $0x90] sm:$0xff]
      %v4020 = vld [vmem:[#allocation3 + $0x98] sm:$0xff]
      %v4021 = vld [vmem:[#allocation3 + $0xa8] sm:$0xff]
      %v4022 = vld [vmem:[#allocation3 + $0xb0] sm:$0xff]
      %v4023 = vld [vmem:[#allocation3 + $0xc0] sm:$0xff]
      %v4024 = vld [vmem:[#allocation3 + $0xc8] sm:$0xff]
      %v4025 = vld [vmem:[#allocation3 + $0xd8] sm:$0xff]
      %v4026 = vld [vmem:[#allocation3 + $0xe0] sm:$0xff]
      %v4027 = vld [vmem:[#allocation3 + $0xf0] sm:$0xff]
      %v4028 = vld [vmem:[#allocation3 + $0xf8] sm:$0xff]
      %v4029 = vld [vmem:[#allocation3 + $0x108] sm:$0xff]
      %v4030 = vld [vmem:[#allocation3 + $0x110] sm:$0xff]
      %v4031 = vld [vmem:[#allocation3 + $0x120] sm:$0xff]
      %v4032 = vld [vmem:[#allocation3 + $0x128] sm:$0xff]
      %v4033 = vld [vmem:[#allocation3 + $0x138] sm:$0xff]
      %v4034 = vld [vmem:[#allocation3 + $0x140] sm:$0xff]
      %v4035 = vld [vmem:[#allocation3 + $0x150] sm:$0xff]
      %v4036 = vld [vmem:[#allocation3 + $0x158] sm:$0xff]
      %v4037 = vld [vmem:[#allocation3 + $0x168] sm:$0xff]
      %v4038 = vld [vmem:[#allocation3 + $0x170] sm:$0xff]
      %v4039 = vld [vmem:[%s5] sm:$0x3]
      %v4040 = vpack.c.bf16 %v4008, %v4007
      %v4041 = vpack.c.bf16 %v4010, %v4009
      %v4042 = vpack.c.bf16 %v4012, %v4011
      %v4043 = vpack.c.bf16 %v4014, %v4013
      %v4044 = vpack.c.bf16 %v4016, %v4015
      %v4045 = vpack.c.bf16 %v4018, %v4017
      %v4046 = vpack.c.bf16 %v4020, %v4019
      %v4047 = vpack.c.bf16 %v4022, %v4021
      %v4048 = vpack.c.bf16 %v4024, %v4023
      %v4049 = vpack.c.bf16 %v4026, %v4025
      %v4050 = vpack.c.bf16 %v4028, %v4027
      %v4051 = vpack.c.bf16 %v4030, %v4029
      %v4052 = vpack.c.bf16 %v4032, %v4031
      %v4053 = vpack.c.bf16 %v4034, %v4033
      %v4054 = vpack.c.bf16 %v4036, %v4035
      %v4055 = vpack.c.bf16 %v4038, %v4037
      %v4056 = vld [vmem:[#allocation3 + $0x1] sm:$0xff]
      %v4057 = vld [vmem:[#allocation3 + $0x9] sm:$0xff]
      %v4058 = vld [vmem:[#allocation3 + $0x19] sm:$0xff]
      %v4059 = vld [vmem:[#allocation3 + $0x21] sm:$0xff]
      %v4060 = vld [vmem:[#allocation3 + $0x31] sm:$0xff]
      %v4061 = vld [vmem:[#allocation3 + $0x39] sm:$0xff]
      %v4062 = vld [vmem:[#allocation3 + $0x49] sm:$0xff]
      %v4063 = vld [vmem:[#allocation3 + $0x51] sm:$0xff]
      %v4064 = vld [vmem:[#allocation3 + $0x61] sm:$0xff]
      %v4065 = vld [vmem:[#allocation3 + $0x69] sm:$0xff]
      %v4066 = vld [vmem:[#allocation3 + $0x79] sm:$0xff]
      %v4067 = vld [vmem:[#allocation3 + $0x81] sm:$0xff]
      %v4068 = vld [vmem:[#allocation3 + $0x91] sm:$0xff]
      %v4069 = vld [vmem:[#allocation3 + $0x99] sm:$0xff]
      %v4070 = vld [vmem:[#allocation3 + $0xa9] sm:$0xff]
      %v4071 = vld [vmem:[#allocation3 + $0xb1] sm:$0xff]
      %v4072 = vld [vmem:[#allocation3 + $0xc1] sm:$0xff]
      %v4073 = vld [vmem:[#allocation3 + $0xc9] sm:$0xff]
      %v4074 = vld [vmem:[#allocation3 + $0xd9] sm:$0xff]
      %v4075 = vld [vmem:[#allocation3 + $0xe1] sm:$0xff]
      %v4076 = vld [vmem:[#allocation3 + $0xf1] sm:$0xff]
      %v4077 = vld [vmem:[#allocation3 + $0xf9] sm:$0xff]
      %v4078 = vld [vmem:[#allocation3 + $0x109] sm:$0xff]
      %v4079 = vld [vmem:[#allocation3 + $0x111] sm:$0xff]
      %v4080 = vld [vmem:[#allocation3 + $0x121] sm:$0xff]
      %v4081 = vld [vmem:[#allocation3 + $0x129] sm:$0xff]
      %v4082 = vld [vmem:[#allocation3 + $0x139] sm:$0xff]
      %v4083 = vld [vmem:[#allocation3 + $0x141] sm:$0xff]
      %v4084 = vld [vmem:[#allocation3 + $0x151] sm:$0xff]
      %v4085 = vld [vmem:[#allocation3 + $0x159] sm:$0xff]
      %v4086 = vld [vmem:[#allocation3 + $0x169] sm:$0xff]
      %v4087 = vld [vmem:[#allocation3 + $0x171] sm:$0xff]
      %s4088 = scalar_lea.vmem %s5, 2
      %v4089 = vld [vmem:[%s4088] sm:$0x3]
      %v4090 = vpack.c.bf16 %v4057, %v4056
      %v4091 = vpack.c.bf16 %v4059, %v4058
      %v4092 = vpack.c.bf16 %v4061, %v4060
      %v4093 = vpack.c.bf16 %v4063, %v4062
      %v4094 = vpack.c.bf16 %v4065, %v4064
      %v4095 = vpack.c.bf16 %v4067, %v4066
      %v4096 = vpack.c.bf16 %v4069, %v4068
      %v4097 = vpack.c.bf16 %v4071, %v4070
      %v4098 = vpack.c.bf16 %v4073, %v4072
      %v4099 = vpack.c.bf16 %v4075, %v4074
      %v4100 = vpack.c.bf16 %v4077, %v4076
      %v4101 = vpack.c.bf16 %v4079, %v4078
      %v4102 = vpack.c.bf16 %v4081, %v4080
      %v4103 = vpack.c.bf16 %v4083, %v4082
      %v4104 = vpack.c.bf16 %v4085, %v4084
      %v4105 = vpack.c.bf16 %v4087, %v4086
      %v4107 = vsel %vm831, %v4089, 0
      %v4110 = vsel %vm831, %v4090, 0
      %v4113 = vsel %vm831, %v4091, 0
      %v4116 = vsel %vm831, %v4092, 0
      %v4119 = vsel %vm831, %v4093, 0
      %v4122 = vsel %vm831, %v4094, 0
      %v4125 = vsel %vm831, %v4095, 0
      %v4128 = vsel %vm831, %v4096, 0
      %v4131 = vsel %vm831, %v4097, 0
      %v4134 = vsel %vm831, %v4098, 0
      %v4137 = vsel %vm831, %v4099, 0
      %v4140 = vsel %vm831, %v4100, 0
      %v4143 = vsel %vm831, %v4101, 0
      %v4146 = vsel %vm831, %v4102, 0
      %v4149 = vsel %vm831, %v4103, 0
      %v4152 = vsel %vm831, %v4104, 0
      %v4155 = vsel %vm831, %v4105, 0
      %4157 = vmatprep.subr.bf16.mxu0 0
      %4158 = vmatpush1.bf16.xpose.msra.mxu0 %v4131
      %4159 = vmatprep.subr.bf16.mxu0 0
      %4160 = vmatpush1.bf16.xpose.msra.mxu0 %v4128
      %4161 = vmatprep.subr.bf16.mxu0 0
      %4162 = vmatpush1.bf16.xpose.msra.mxu0 %v4125
      %4163 = vmatprep.subr.bf16.mxu0 0
      %4164 = vmatpush1.bf16.xpose.msra.mxu0 %v4122
      %4165 = vmatprep.subr.bf16.mxu0 0
      %4166 = vmatpush1.bf16.xpose.msra.mxu0 %v4119
      %4167 = vmatprep.subr.bf16.mxu0 0
      %4168 = vmatpush1.bf16.xpose.msra.mxu0 %v4116
      %4169 = vmatprep.subr.bf16.mxu0 0
      %4170 = vmatpush1.bf16.xpose.msra.mxu0 %v4113
      %4171 = vmatprep.subr.bf16.mxu0 0
      %4172 = vmatpush1.bf16.xpose.msra.mxu0 %v4110
      %4173 = vmatprep.subr.bf16.mxu0 0
      %4174 = vmatpush2.bf16.xpose.msra.mxu0 %v4155
      %4175 = vmatprep.subr.bf16.mxu0 0
      %4176 = vmatpush2.bf16.xpose.msra.mxu0 %v4152
      %4177 = vmatprep.subr.bf16.mxu0 0
      %4178 = vmatpush2.bf16.xpose.msra.mxu0 %v4149
      %4179 = vmatprep.subr.bf16.mxu0 0
      %4180 = vmatpush2.bf16.xpose.msra.mxu0 %v4146
      %4181 = vmatprep.subr.bf16.mxu0 0
      %4182 = vmatpush2.bf16.xpose.msra.mxu0 %v4143
      %4183 = vmatprep.subr.bf16.mxu0 0
      %4184 = vmatpush2.bf16.xpose.msra.mxu0 %v4140
      %4185 = vmatprep.subr.bf16.mxu0 0
      %4186 = vmatpush2.bf16.xpose.msra.mxu0 %v4137
      %4187 = vmatprep.subr.bf16.mxu0 0
      %4188 = vmatpush2.bf16.xpose.msra.mxu0 %v4134
      %4189 = vmatprep.mubr.bf16.mxu0 0
      %4190 = vmatmul.mubr.bf16.gmra.mxu0 %v4107
      %v4191 = vpop.f32.mrf.mxu0
      %v4192 = vadd.f32 0.0, %v4191
      %v4193 = vpop.f32.mrf.mxu0
      %v4194 = vadd.f32 0.0, %v4193
      %v4195 = vpop.f32.mrf.mxu0
      %v4196 = vpop.f32.mrf.mxu0
      %4197 = vdwg.mxu0
      %v4199 = vsel %vm831, %v4039, 0
      %v4202 = vsel %vm831, %v4040, 0
      %v4205 = vsel %vm831, %v4041, 0
      %v4208 = vsel %vm831, %v4042, 0
      %v4211 = vsel %vm831, %v4043, 0
      %v4214 = vsel %vm831, %v4044, 0
      %v4217 = vsel %vm831, %v4045, 0
      %v4220 = vsel %vm831, %v4046, 0
      %v4223 = vsel %vm831, %v4047, 0
      %v4226 = vsel %vm831, %v4048, 0
      %v4229 = vsel %vm831, %v4049, 0
      %v4232 = vsel %vm831, %v4050, 0
      %v4235 = vsel %vm831, %v4051, 0
      %v4238 = vsel %vm831, %v4052, 0
      %v4241 = vsel %vm831, %v4053, 0
      %v4244 = vsel %vm831, %v4054, 0
      %v4247 = vsel %vm831, %v4055, 0
      %4249 = vmatprep.subr.bf16.mxu0 0
      %4250 = vmatpush1.bf16.xpose.msra.mxu0 %v4223
      %4251 = vmatprep.subr.bf16.mxu0 0
      %4252 = vmatpush1.bf16.xpose.msra.mxu0 %v4220
      %4253 = vmatprep.subr.bf16.mxu0 0
      %4254 = vmatpush1.bf16.xpose.msra.mxu0 %v4217
      %4255 = vmatprep.subr.bf16.mxu0 0
      %4256 = vmatpush1.bf16.xpose.msra.mxu0 %v4214
      %4257 = vmatprep.subr.bf16.mxu0 0
      %4258 = vmatpush1.bf16.xpose.msra.mxu0 %v4211
      %4259 = vmatprep.subr.bf16.mxu0 0
      %4260 = vmatpush1.bf16.xpose.msra.mxu0 %v4208
      %4261 = vmatprep.subr.bf16.mxu0 0
      %4262 = vmatpush1.bf16.xpose.msra.mxu0 %v4205
      %4263 = vmatprep.subr.bf16.mxu0 0
      %4264 = vmatpush1.bf16.xpose.msra.mxu0 %v4202
      %4265 = vmatprep.subr.bf16.mxu0 0
      %4266 = vmatpush2.bf16.xpose.msra.mxu0 %v4247
      %4267 = vmatprep.subr.bf16.mxu0 0
      %4268 = vmatpush2.bf16.xpose.msra.mxu0 %v4244
      %4269 = vmatprep.subr.bf16.mxu0 0
      %4270 = vmatpush2.bf16.xpose.msra.mxu0 %v4241
      %4271 = vmatprep.subr.bf16.mxu0 0
      %4272 = vmatpush2.bf16.xpose.msra.mxu0 %v4238
      %4273 = vmatprep.subr.bf16.mxu0 0
      %4274 = vmatpush2.bf16.xpose.msra.mxu0 %v4235
      %4275 = vmatprep.subr.bf16.mxu0 0
      %4276 = vmatpush2.bf16.xpose.msra.mxu0 %v4232
      %4277 = vmatprep.subr.bf16.mxu0 0
      %4278 = vmatpush2.bf16.xpose.msra.mxu0 %v4229
      %4279 = vmatprep.subr.bf16.mxu0 0
      %4280 = vmatpush2.bf16.xpose.msra.mxu0 %v4226
      %4281 = vmatprep.mubr.bf16.mxu0 0
      %4282 = vmatmul.mubr.bf16.gmra.mxu0 %v4199
      %v4283 = vpop.f32.mrf.mxu0
      %v4284 = vadd.f32 %v4192, %v4283
      %v4285 = vpop.f32.mrf.mxu0
      %v4286 = vadd.f32 %v4194, %v4285
      %v4287 = vpop.f32.mrf.mxu0
      %v4288 = vpop.f32.mrf.mxu0
      %4289 = vdwg.mxu0
      %v4290 = vld [vmem:[#allocation3 + $0x2] sm:$0xff]
      %v4291 = vld [vmem:[#allocation3 + $0xa] sm:$0xff]
      %v4292 = vld [vmem:[#allocation3 + $0x1a] sm:$0xff]
      %v4293 = vld [vmem:[#allocation3 + $0x22] sm:$0xff]
      %v4294 = vld [vmem:[#allocation3 + $0x32] sm:$0xff]
      %v4295 = vld [vmem:[#allocation3 + $0x3a] sm:$0xff]
      %v4296 = vld [vmem:[#allocation3 + $0x4a] sm:$0xff]
      %v4297 = vld [vmem:[#allocation3 + $0x52] sm:$0xff]
      %v4298 = vld [vmem:[#allocation3 + $0x62] sm:$0xff]
      %v4299 = vld [vmem:[#allocation3 + $0x6a] sm:$0xff]
      %v4300 = vld [vmem:[#allocation3 + $0x7a] sm:$0xff]
      %v4301 = vld [vmem:[#allocation3 + $0x82] sm:$0xff]
      %v4302 = vld [vmem:[#allocation3 + $0x92] sm:$0xff]
      %v4303 = vld [vmem:[#allocation3 + $0x9a] sm:$0xff]
      %v4304 = vld [vmem:[#allocation3 + $0xaa] sm:$0xff]
      %v4305 = vld [vmem:[#allocation3 + $0xb2] sm:$0xff]
      %v4306 = vld [vmem:[#allocation3 + $0xc2] sm:$0xff]
      %v4307 = vld [vmem:[#allocation3 + $0xca] sm:$0xff]
      %v4308 = vld [vmem:[#allocation3 + $0xda] sm:$0xff]
      %v4309 = vld [vmem:[#allocation3 + $0xe2] sm:$0xff]
      %v4310 = vld [vmem:[#allocation3 + $0xf2] sm:$0xff]
      %v4311 = vld [vmem:[#allocation3 + $0xfa] sm:$0xff]
      %v4312 = vld [vmem:[#allocation3 + $0x10a] sm:$0xff]
      %v4313 = vld [vmem:[#allocation3 + $0x112] sm:$0xff]
      %v4314 = vld [vmem:[#allocation3 + $0x122] sm:$0xff]
      %v4315 = vld [vmem:[#allocation3 + $0x12a] sm:$0xff]
      %v4316 = vld [vmem:[#allocation3 + $0x13a] sm:$0xff]
      %v4317 = vld [vmem:[#allocation3 + $0x142] sm:$0xff]
      %v4318 = vld [vmem:[#allocation3 + $0x152] sm:$0xff]
      %v4319 = vld [vmem:[#allocation3 + $0x15a] sm:$0xff]
      %v4320 = vld [vmem:[#allocation3 + $0x16a] sm:$0xff]
      %v4321 = vld [vmem:[#allocation3 + $0x172] sm:$0xff]
      %s4322 = scalar_lea.vmem %s5, 4
      %v4323 = vld [vmem:[%s4322] sm:$0x3]
      %v4324 = vpack.c.bf16 %v4291, %v4290
      %v4325 = vpack.c.bf16 %v4293, %v4292
      %v4326 = vpack.c.bf16 %v4295, %v4294
      %v4327 = vpack.c.bf16 %v4297, %v4296
      %v4328 = vpack.c.bf16 %v4299, %v4298
      %v4329 = vpack.c.bf16 %v4301, %v4300
      %v4330 = vpack.c.bf16 %v4303, %v4302
      %v4331 = vpack.c.bf16 %v4305, %v4304
      %v4332 = vpack.c.bf16 %v4307, %v4306
      %v4333 = vpack.c.bf16 %v4309, %v4308
      %v4334 = vpack.c.bf16 %v4311, %v4310
      %v4335 = vpack.c.bf16 %v4313, %v4312
      %v4336 = vpack.c.bf16 %v4315, %v4314
      %v4337 = vpack.c.bf16 %v4317, %v4316
      %v4338 = vpack.c.bf16 %v4319, %v4318
      %v4339 = vpack.c.bf16 %v4321, %v4320
      %v4341 = vsel %vm831, %v4323, 0
      %v4344 = vsel %vm831, %v4324, 0
      %v4347 = vsel %vm831, %v4325, 0
      %v4350 = vsel %vm831, %v4326, 0
      %v4353 = vsel %vm831, %v4327, 0
      %v4356 = vsel %vm831, %v4328, 0
      %v4359 = vsel %vm831, %v4329, 0
      %v4362 = vsel %vm831, %v4330, 0
      %v4365 = vsel %vm831, %v4331, 0
      %v4368 = vsel %vm831, %v4332, 0
      %v4371 = vsel %vm831, %v4333, 0
      %v4374 = vsel %vm831, %v4334, 0
      %v4377 = vsel %vm831, %v4335, 0
      %v4380 = vsel %vm831, %v4336, 0
      %v4383 = vsel %vm831, %v4337, 0
      %v4386 = vsel %vm831, %v4338, 0
      %v4389 = vsel %vm831, %v4339, 0
      %4391 = vmatprep.subr.bf16.mxu0 0
      %4392 = vmatpush1.bf16.xpose.msra.mxu0 %v4365
      %4393 = vmatprep.subr.bf16.mxu0 0
      %4394 = vmatpush1.bf16.xpose.msra.mxu0 %v4362
      %4395 = vmatprep.subr.bf16.mxu0 0
      %4396 = vmatpush1.bf16.xpose.msra.mxu0 %v4359
      %4397 = vmatprep.subr.bf16.mxu0 0
      %4398 = vmatpush1.bf16.xpose.msra.mxu0 %v4356
      %4399 = vmatprep.subr.bf16.mxu0 0
      %4400 = vmatpush1.bf16.xpose.msra.mxu0 %v4353
      %4401 = vmatprep.subr.bf16.mxu0 0
      %4402 = vmatpush1.bf16.xpose.msra.mxu0 %v4350
      %4403 = vmatprep.subr.bf16.mxu0 0
      %4404 = vmatpush1.bf16.xpose.msra.mxu0 %v4347
      %4405 = vmatprep.subr.bf16.mxu0 0
      %4406 = vmatpush1.bf16.xpose.msra.mxu0 %v4344
      %4407 = vmatprep.subr.bf16.mxu0 0
      %4408 = vmatpush2.bf16.xpose.msra.mxu0 %v4389
      %4409 = vmatprep.subr.bf16.mxu0 0
      %4410 = vmatpush2.bf16.xpose.msra.mxu0 %v4386
      %4411 = vmatprep.subr.bf16.mxu0 0
      %4412 = vmatpush2.bf16.xpose.msra.mxu0 %v4383
      %4413 = vmatprep.subr.bf16.mxu0 0
      %4414 = vmatpush2.bf16.xpose.msra.mxu0 %v4380
      %4415 = vmatprep.subr.bf16.mxu0 0
      %4416 = vmatpush2.bf16.xpose.msra.mxu0 %v4377
      %4417 = vmatprep.subr.bf16.mxu0 0
      %4418 = vmatpush2.bf16.xpose.msra.mxu0 %v4374
      %4419 = vmatprep.subr.bf16.mxu0 0
      %4420 = vmatpush2.bf16.xpose.msra.mxu0 %v4371
      %4421 = vmatprep.subr.bf16.mxu0 0
      %4422 = vmatpush2.bf16.xpose.msra.mxu0 %v4368
      %4423 = vmatprep.mubr.bf16.mxu0 0
      %4424 = vmatmul.mubr.bf16.gmra.mxu0 %v4341
      %v4425 = vpop.f32.mrf.mxu0
      %v4426 = vadd.f32 0.0, %v4425
      %v4427 = vpop.f32.mrf.mxu0
      %v4428 = vadd.f32 0.0, %v4427
      %v4429 = vpop.f32.mrf.mxu0
      %v4430 = vpop.f32.mrf.mxu0
      %4431 = vdwg.mxu0
      %v4432 = vadd.f32 %v4284, %v4426
      %v4433 = vadd.f32 %v4286, %v4428
      %s4434 = scalar_lea.vmem [#allocation3], 24
      %v4435 = vld [vmem:[%s4434] sm:$0xff]
      %v4436 = vld [vmem:[%s4434 + $0x8] sm:$0xff]
      %v4437 = vld [vmem:[%s4434 + $0x18] sm:$0xff]
      %v4438 = vld [vmem:[%s4434 + $0x20] sm:$0xff]
      %v4439 = vld [vmem:[%s4434 + $0x30] sm:$0xff]
      %v4440 = vld [vmem:[%s4434 + $0x38] sm:$0xff]
      %v4441 = vld [vmem:[%s4434 + $0x48] sm:$0xff]
      %v4442 = vld [vmem:[%s4434 + $0x50] sm:$0xff]
      %v4443 = vld [vmem:[%s4434 + $0x60] sm:$0xff]
      %v4444 = vld [vmem:[%s4434 + $0x68] sm:$0xff]
      %v4445 = vld [vmem:[%s4434 + $0x78] sm:$0xff]
      %v4446 = vld [vmem:[%s4434 + $0x80] sm:$0xff]
      %v4447 = vld [vmem:[%s4434 + $0x90] sm:$0xff]
      %v4448 = vld [vmem:[%s4434 + $0x98] sm:$0xff]
      %v4449 = vld [vmem:[%s4434 + $0xa8] sm:$0xff]
      %v4450 = vld [vmem:[%s4434 + $0xb0] sm:$0xff]
      %v4451 = vld [vmem:[%s4434 + $0xc0] sm:$0xff]
      %v4452 = vld [vmem:[%s4434 + $0xc8] sm:$0xff]
      %v4453 = vld [vmem:[%s4434 + $0xd8] sm:$0xff]
      %v4454 = vld [vmem:[%s4434 + $0xe0] sm:$0xff]
      %v4455 = vld [vmem:[%s4434 + $0xf0] sm:$0xff]
      %v4456 = vld [vmem:[%s4434 + $0xf8] sm:$0xff]
      %v4457 = vld [vmem:[%s4434 + $0x108] sm:$0xff]
      %v4458 = vld [vmem:[%s4434 + $0x110] sm:$0xff]
      %v4459 = vld [vmem:[%s4434 + $0x120] sm:$0xff]
      %v4460 = vld [vmem:[%s4434 + $0x128] sm:$0xff]
      %v4461 = vld [vmem:[%s4434 + $0x138] sm:$0xff]
      %v4462 = vld [vmem:[%s4434 + $0x140] sm:$0xff]
      %v4463 = vld [vmem:[%s4434 + $0x150] sm:$0xff]
      %v4464 = vld [vmem:[%s4434 + $0x158] sm:$0xff]
      %v4465 = vld [vmem:[%s4434 + $0x168] sm:$0xff]
      %v4466 = vld [vmem:[%s4434 + $0x170] sm:$0xff]
      %s4467 = scalar_lea.vmem %s5, 6
      %v4468 = vld [vmem:[%s4467] sm:$0x3]
      %v4469 = vpack.c.bf16 %v4436, %v4435
      %v4470 = vpack.c.bf16 %v4438, %v4437
      %v4471 = vpack.c.bf16 %v4440, %v4439
      %v4472 = vpack.c.bf16 %v4442, %v4441
      %v4473 = vpack.c.bf16 %v4444, %v4443
      %v4474 = vpack.c.bf16 %v4446, %v4445
      %v4475 = vpack.c.bf16 %v4448, %v4447
      %v4476 = vpack.c.bf16 %v4450, %v4449
      %v4477 = vpack.c.bf16 %v4452, %v4451
      %v4478 = vpack.c.bf16 %v4454, %v4453
      %v4479 = vpack.c.bf16 %v4456, %v4455
      %v4480 = vpack.c.bf16 %v4458, %v4457
      %v4481 = vpack.c.bf16 %v4460, %v4459
      %v4482 = vpack.c.bf16 %v4462, %v4461
      %v4483 = vpack.c.bf16 %v4464, %v4463
      %v4484 = vpack.c.bf16 %v4466, %v4465
      %v4486 = vsel %vm831, %v4468, 0
      %v4489 = vsel %vm831, %v4469, 0
      %v4492 = vsel %vm831, %v4470, 0
      %v4495 = vsel %vm831, %v4471, 0
      %v4498 = vsel %vm831, %v4472, 0
      %v4501 = vsel %vm831, %v4473, 0
      %v4504 = vsel %vm831, %v4474, 0
      %v4507 = vsel %vm831, %v4475, 0
      %v4510 = vsel %vm831, %v4476, 0
      %v4513 = vsel %vm831, %v4477, 0
      %v4516 = vsel %vm831, %v4478, 0
      %v4519 = vsel %vm831, %v4479, 0
      %v4522 = vsel %vm831, %v4480, 0
      %v4525 = vsel %vm831, %v4481, 0
      %v4528 = vsel %vm831, %v4482, 0
      %v4531 = vsel %vm831, %v4483, 0
      %v4534 = vsel %vm831, %v4484, 0
      %4536 = vmatprep.subr.bf16.mxu0 0
      %4537 = vmatpush1.bf16.xpose.msra.mxu0 %v4510
      %4538 = vmatprep.subr.bf16.mxu0 0
      %4539 = vmatpush1.bf16.xpose.msra.mxu0 %v4507
      %4540 = vmatprep.subr.bf16.mxu0 0
      %4541 = vmatpush1.bf16.xpose.msra.mxu0 %v4504
      %4542 = vmatprep.subr.bf16.mxu0 0
      %4543 = vmatpush1.bf16.xpose.msra.mxu0 %v4501
      %4544 = vmatprep.subr.bf16.mxu0 0
      %4545 = vmatpush1.bf16.xpose.msra.mxu0 %v4498
      %4546 = vmatprep.subr.bf16.mxu0 0
      %4547 = vmatpush1.bf16.xpose.msra.mxu0 %v4495
      %4548 = vmatprep.subr.bf16.mxu0 0
      %4549 = vmatpush1.bf16.xpose.msra.mxu0 %v4492
      %4550 = vmatprep.subr.bf16.mxu0 0
      %4551 = vmatpush1.bf16.xpose.msra.mxu0 %v4489
      %4552 = vmatprep.subr.bf16.mxu0 0
      %4553 = vmatpush2.bf16.xpose.msra.mxu0 %v4534
      %4554 = vmatprep.subr.bf16.mxu0 0
      %4555 = vmatpush2.bf16.xpose.msra.mxu0 %v4531
      %4556 = vmatprep.subr.bf16.mxu0 0
      %4557 = vmatpush2.bf16.xpose.msra.mxu0 %v4528
      %4558 = vmatprep.subr.bf16.mxu0 0
      %4559 = vmatpush2.bf16.xpose.msra.mxu0 %v4525
      %4560 = vmatprep.subr.bf16.mxu0 0
      %4561 = vmatpush2.bf16.xpose.msra.mxu0 %v4522
      %4562 = vmatprep.subr.bf16.mxu0 0
      %4563 = vmatpush2.bf16.xpose.msra.mxu0 %v4519
      %4564 = vmatprep.subr.bf16.mxu0 0
      %4565 = vmatpush2.bf16.xpose.msra.mxu0 %v4516
      %4566 = vmatprep.subr.bf16.mxu0 0
      %4567 = vmatpush2.bf16.xpose.msra.mxu0 %v4513
      %4568 = vmatprep.mubr.bf16.mxu0 0
      %4569 = vmatmul.mubr.bf16.gmra.mxu0 %v4486
      %v4570 = vpop.f32.mrf.mxu0
      %v4571 = vadd.f32 0.0, %v4570
      %v4572 = vpop.f32.mrf.mxu0
      %v4573 = vadd.f32 0.0, %v4572
      %v4574 = vpop.f32.mrf.mxu0
      %v4575 = vpop.f32.mrf.mxu0
      %4576 = vdwg.mxu0
      %v4577 = vadd.f32 %v4432, %v4571
      %v4578 = vadd.f32 %v4433, %v4573
      %v4579 = vld [vmem:[%s4434 + $0x1] sm:$0xff]
      %v4580 = vld [vmem:[%s4434 + $0x9] sm:$0xff]
      %v4581 = vld [vmem:[%s4434 + $0x19] sm:$0xff]
      %v4582 = vld [vmem:[%s4434 + $0x21] sm:$0xff]
      %v4583 = vld [vmem:[%s4434 + $0x31] sm:$0xff]
      %v4584 = vld [vmem:[%s4434 + $0x39] sm:$0xff]
      %v4585 = vld [vmem:[%s4434 + $0x49] sm:$0xff]
      %v4586 = vld [vmem:[%s4434 + $0x51] sm:$0xff]
      %v4587 = vld [vmem:[%s4434 + $0x61] sm:$0xff]
      %v4588 = vld [vmem:[%s4434 + $0x69] sm:$0xff]
      %v4589 = vld [vmem:[%s4434 + $0x79] sm:$0xff]
      %v4590 = vld [vmem:[%s4434 + $0x81] sm:$0xff]
      %v4591 = vld [vmem:[%s4434 + $0x91] sm:$0xff]
      %v4592 = vld [vmem:[%s4434 + $0x99] sm:$0xff]
      %v4593 = vld [vmem:[%s4434 + $0xa9] sm:$0xff]
      %v4594 = vld [vmem:[%s4434 + $0xb1] sm:$0xff]
      %v4595 = vld [vmem:[%s4434 + $0xc1] sm:$0xff]
      %v4596 = vld [vmem:[%s4434 + $0xc9] sm:$0xff]
      %v4597 = vld [vmem:[%s4434 + $0xd9] sm:$0xff]
      %v4598 = vld [vmem:[%s4434 + $0xe1] sm:$0xff]
      %v4599 = vld [vmem:[%s4434 + $0xf1] sm:$0xff]
      %v4600 = vld [vmem:[%s4434 + $0xf9] sm:$0xff]
      %v4601 = vld [vmem:[%s4434 + $0x109] sm:$0xff]
      %v4602 = vld [vmem:[%s4434 + $0x111] sm:$0xff]
      %v4603 = vld [vmem:[%s4434 + $0x121] sm:$0xff]
      %v4604 = vld [vmem:[%s4434 + $0x129] sm:$0xff]
      %v4605 = vld [vmem:[%s4434 + $0x139] sm:$0xff]
      %v4606 = vld [vmem:[%s4434 + $0x141] sm:$0xff]
      %v4607 = vld [vmem:[%s4434 + $0x151] sm:$0xff]
      %v4608 = vld [vmem:[%s4434 + $0x159] sm:$0xff]
      %v4609 = vld [vmem:[%s4434 + $0x169] sm:$0xff]
      %v4610 = vld [vmem:[%s4434 + $0x171] sm:$0xff]
      %s4611 = scalar_lea.vmem %s5, 8
      %v4612 = vld [vmem:[%s4611] sm:$0x3]
      %v4613 = vpack.c.bf16 %v4580, %v4579
      %v4614 = vpack.c.bf16 %v4582, %v4581
      %v4615 = vpack.c.bf16 %v4584, %v4583
      %v4616 = vpack.c.bf16 %v4586, %v4585
      %v4617 = vpack.c.bf16 %v4588, %v4587
      %v4618 = vpack.c.bf16 %v4590, %v4589
      %v4619 = vpack.c.bf16 %v4592, %v4591
      %v4620 = vpack.c.bf16 %v4594, %v4593
      %v4621 = vpack.c.bf16 %v4596, %v4595
      %v4622 = vpack.c.bf16 %v4598, %v4597
      %v4623 = vpack.c.bf16 %v4600, %v4599
      %v4624 = vpack.c.bf16 %v4602, %v4601
      %v4625 = vpack.c.bf16 %v4604, %v4603
      %v4626 = vpack.c.bf16 %v4606, %v4605
      %v4627 = vpack.c.bf16 %v4608, %v4607
      %v4628 = vpack.c.bf16 %v4610, %v4609
      %v4630 = vsel %vm831, %v4612, 0
      %v4633 = vsel %vm831, %v4613, 0
      %v4636 = vsel %vm831, %v4614, 0
      %v4639 = vsel %vm831, %v4615, 0
      %v4642 = vsel %vm831, %v4616, 0
      %v4645 = vsel %vm831, %v4617, 0
      %v4648 = vsel %vm831, %v4618, 0
      %v4651 = vsel %vm831, %v4619, 0
      %v4654 = vsel %vm831, %v4620, 0
      %v4657 = vsel %vm831, %v4621, 0
      %v4660 = vsel %vm831, %v4622, 0
      %v4663 = vsel %vm831, %v4623, 0
      %v4666 = vsel %vm831, %v4624, 0
      %v4669 = vsel %vm831, %v4625, 0
      %v4672 = vsel %vm831, %v4626, 0
      %v4675 = vsel %vm831, %v4627, 0
      %v4678 = vsel %vm831, %v4628, 0
      %4680 = vmatprep.subr.bf16.mxu0 0
      %4681 = vmatpush1.bf16.xpose.msra.mxu0 %v4654
      %4682 = vmatprep.subr.bf16.mxu0 0
      %4683 = vmatpush1.bf16.xpose.msra.mxu0 %v4651
      %4684 = vmatprep.subr.bf16.mxu0 0
      %4685 = vmatpush1.bf16.xpose.msra.mxu0 %v4648
      %4686 = vmatprep.subr.bf16.mxu0 0
      %4687 = vmatpush1.bf16.xpose.msra.mxu0 %v4645
      %4688 = vmatprep.subr.bf16.mxu0 0
      %4689 = vmatpush1.bf16.xpose.msra.mxu0 %v4642
      %4690 = vmatprep.subr.bf16.mxu0 0
      %4691 = vmatpush1.bf16.xpose.msra.mxu0 %v4639
      %4692 = vmatprep.subr.bf16.mxu0 0
      %4693 = vmatpush1.bf16.xpose.msra.mxu0 %v4636
      %4694 = vmatprep.subr.bf16.mxu0 0
      %4695 = vmatpush1.bf16.xpose.msra.mxu0 %v4633
      %4696 = vmatprep.subr.bf16.mxu0 0
      %4697 = vmatpush2.bf16.xpose.msra.mxu0 %v4678
      %4698 = vmatprep.subr.bf16.mxu0 0
      %4699 = vmatpush2.bf16.xpose.msra.mxu0 %v4675
      %4700 = vmatprep.subr.bf16.mxu0 0
      %4701 = vmatpush2.bf16.xpose.msra.mxu0 %v4672
      %4702 = vmatprep.subr.bf16.mxu0 0
      %4703 = vmatpush2.bf16.xpose.msra.mxu0 %v4669
      %4704 = vmatprep.subr.bf16.mxu0 0
      %4705 = vmatpush2.bf16.xpose.msra.mxu0 %v4666
      %4706 = vmatprep.subr.bf16.mxu0 0
      %4707 = vmatpush2.bf16.xpose.msra.mxu0 %v4663
      %4708 = vmatprep.subr.bf16.mxu0 0
      %4709 = vmatpush2.bf16.xpose.msra.mxu0 %v4660
      %4710 = vmatprep.subr.bf16.mxu0 0
      %4711 = vmatpush2.bf16.xpose.msra.mxu0 %v4657
      %4712 = vmatprep.mubr.bf16.mxu0 0
      %4713 = vmatmul.mubr.bf16.gmra.mxu0 %v4630
      %v4714 = vpop.f32.mrf.mxu0
      %v4715 = vadd.f32 0.0, %v4714
      %v4716 = vpop.f32.mrf.mxu0
      %v4717 = vadd.f32 0.0, %v4716
      %v4718 = vpop.f32.mrf.mxu0
      %v4719 = vpop.f32.mrf.mxu0
      %4720 = vdwg.mxu0
      %v4721 = vadd.f32 %v4577, %v4715
      %v4722 = vadd.f32 %v4578, %v4717
      %v4723 = vld [vmem:[%s4434 + $0x2] sm:$0xff]
      %v4724 = vld [vmem:[%s4434 + $0xa] sm:$0xff]
      %v4725 = vld [vmem:[%s4434 + $0x1a] sm:$0xff]
      %v4726 = vld [vmem:[%s4434 + $0x22] sm:$0xff]
      %v4727 = vld [vmem:[%s4434 + $0x32] sm:$0xff]
      %v4728 = vld [vmem:[%s4434 + $0x3a] sm:$0xff]
      %v4729 = vld [vmem:[%s4434 + $0x4a] sm:$0xff]
      %v4730 = vld [vmem:[%s4434 + $0x52] sm:$0xff]
      %v4731 = vld [vmem:[%s4434 + $0x62] sm:$0xff]
      %v4732 = vld [vmem:[%s4434 + $0x6a] sm:$0xff]
      %v4733 = vld [vmem:[%s4434 + $0x7a] sm:$0xff]
      %v4734 = vld [vmem:[%s4434 + $0x82] sm:$0xff]
      %v4735 = vld [vmem:[%s4434 + $0x92] sm:$0xff]
      %v4736 = vld [vmem:[%s4434 + $0x9a] sm:$0xff]
      %v4737 = vld [vmem:[%s4434 + $0xaa] sm:$0xff]
      %v4738 = vld [vmem:[%s4434 + $0xb2] sm:$0xff]
      %v4739 = vld [vmem:[%s4434 + $0xc2] sm:$0xff]
      %v4740 = vld [vmem:[%s4434 + $0xca] sm:$0xff]
      %v4741 = vld [vmem:[%s4434 + $0xda] sm:$0xff]
      %v4742 = vld [vmem:[%s4434 + $0xe2] sm:$0xff]
      %v4743 = vld [vmem:[%s4434 + $0xf2] sm:$0xff]
      %v4744 = vld [vmem:[%s4434 + $0xfa] sm:$0xff]
      %v4745 = vld [vmem:[%s4434 + $0x10a] sm:$0xff]
      %v4746 = vld [vmem:[%s4434 + $0x112] sm:$0xff]
      %v4747 = vld [vmem:[%s4434 + $0x122] sm:$0xff]
      %v4748 = vld [vmem:[%s4434 + $0x12a] sm:$0xff]
      %v4749 = vld [vmem:[%s4434 + $0x13a] sm:$0xff]
      %v4750 = vld [vmem:[%s4434 + $0x142] sm:$0xff]
      %v4751 = vld [vmem:[%s4434 + $0x152] sm:$0xff]
      %v4752 = vld [vmem:[%s4434 + $0x15a] sm:$0xff]
      %v4753 = vld [vmem:[%s4434 + $0x16a] sm:$0xff]
      %v4754 = vld [vmem:[%s4434 + $0x172] sm:$0xff]
      %s4755 = scalar_lea.vmem %s5, 10
      %v4756 = vld [vmem:[%s4755] sm:$0x3]
      %v4757 = vpack.c.bf16 %v4724, %v4723
      %v4758 = vpack.c.bf16 %v4726, %v4725
      %v4759 = vpack.c.bf16 %v4728, %v4727
      %v4760 = vpack.c.bf16 %v4730, %v4729
      %v4761 = vpack.c.bf16 %v4732, %v4731
      %v4762 = vpack.c.bf16 %v4734, %v4733
      %v4763 = vpack.c.bf16 %v4736, %v4735
      %v4764 = vpack.c.bf16 %v4738, %v4737
      %v4765 = vpack.c.bf16 %v4740, %v4739
      %v4766 = vpack.c.bf16 %v4742, %v4741
      %v4767 = vpack.c.bf16 %v4744, %v4743
      %v4768 = vpack.c.bf16 %v4746, %v4745
      %v4769 = vpack.c.bf16 %v4748, %v4747
      %v4770 = vpack.c.bf16 %v4750, %v4749
      %v4771 = vpack.c.bf16 %v4752, %v4751
      %v4772 = vpack.c.bf16 %v4754, %v4753
      %v4774 = vsel %vm831, %v4756, 0
      %v4777 = vsel %vm831, %v4757, 0
      %v4780 = vsel %vm831, %v4758, 0
      %v4783 = vsel %vm831, %v4759, 0
      %v4786 = vsel %vm831, %v4760, 0
      %v4789 = vsel %vm831, %v4761, 0
      %v4792 = vsel %vm831, %v4762, 0
      %v4795 = vsel %vm831, %v4763, 0
      %v4798 = vsel %vm831, %v4764, 0
      %v4801 = vsel %vm831, %v4765, 0
      %v4804 = vsel %vm831, %v4766, 0
      %v4807 = vsel %vm831, %v4767, 0
      %v4810 = vsel %vm831, %v4768, 0
      %v4813 = vsel %vm831, %v4769, 0
      %v4816 = vsel %vm831, %v4770, 0
      %v4819 = vsel %vm831, %v4771, 0
      %v4822 = vsel %vm831, %v4772, 0
      %4824 = vmatprep.subr.bf16.mxu0 0
      %4825 = vmatpush1.bf16.xpose.msra.mxu0 %v4798
      %4826 = vmatprep.subr.bf16.mxu0 0
      %4827 = vmatpush1.bf16.xpose.msra.mxu0 %v4795
      %4828 = vmatprep.subr.bf16.mxu0 0
      %4829 = vmatpush1.bf16.xpose.msra.mxu0 %v4792
      %4830 = vmatprep.subr.bf16.mxu0 0
      %4831 = vmatpush1.bf16.xpose.msra.mxu0 %v4789
      %4832 = vmatprep.subr.bf16.mxu0 0
      %4833 = vmatpush1.bf16.xpose.msra.mxu0 %v4786
      %4834 = vmatprep.subr.bf16.mxu0 0
      %4835 = vmatpush1.bf16.xpose.msra.mxu0 %v4783
      %4836 = vmatprep.subr.bf16.mxu0 0
      %4837 = vmatpush1.bf16.xpose.msra.mxu0 %v4780
      %4838 = vmatprep.subr.bf16.mxu0 0
      %4839 = vmatpush1.bf16.xpose.msra.mxu0 %v4777
      %4840 = vmatprep.subr.bf16.mxu0 0
      %4841 = vmatpush2.bf16.xpose.msra.mxu0 %v4822
      %4842 = vmatprep.subr.bf16.mxu0 0
      %4843 = vmatpush2.bf16.xpose.msra.mxu0 %v4819
      %4844 = vmatprep.subr.bf16.mxu0 0
      %4845 = vmatpush2.bf16.xpose.msra.mxu0 %v4816
      %4846 = vmatprep.subr.bf16.mxu0 0
      %4847 = vmatpush2.bf16.xpose.msra.mxu0 %v4813
      %4848 = vmatprep.subr.bf16.mxu0 0
      %4849 = vmatpush2.bf16.xpose.msra.mxu0 %v4810
      %4850 = vmatprep.subr.bf16.mxu0 0
      %4851 = vmatpush2.bf16.xpose.msra.mxu0 %v4807
      %4852 = vmatprep.subr.bf16.mxu0 0
      %4853 = vmatpush2.bf16.xpose.msra.mxu0 %v4804
      %4854 = vmatprep.subr.bf16.mxu0 0
      %4855 = vmatpush2.bf16.xpose.msra.mxu0 %v4801
      %4856 = vmatprep.mubr.bf16.mxu0 0
      %4857 = vmatmul.mubr.bf16.gmra.mxu0 %v4774
      %v4858 = vpop.f32.mrf.mxu0
      %v4859 = vadd.f32 0.0, %v4858
      %v4860 = vpop.f32.mrf.mxu0
      %v4861 = vadd.f32 0.0, %v4860
      %v4862 = vpop.f32.mrf.mxu0
      %v4863 = vpop.f32.mrf.mxu0
      %4864 = vdwg.mxu0
      %v4865 = vadd.f32 %v4721, %v4859
      %v4866 = vadd.f32 %v4722, %v4861
      %s4867 = scalar_lea.vmem [#allocation3], 48
      %v4868 = vld [vmem:[%s4867] sm:$0xff]
      %v4869 = vld [vmem:[%s4867 + $0x8] sm:$0xff]
      %v4870 = vld [vmem:[%s4867 + $0x18] sm:$0xff]
      %v4871 = vld [vmem:[%s4867 + $0x20] sm:$0xff]
      %v4872 = vld [vmem:[%s4867 + $0x30] sm:$0xff]
      %v4873 = vld [vmem:[%s4867 + $0x38] sm:$0xff]
      %v4874 = vld [vmem:[%s4867 + $0x48] sm:$0xff]
      %v4875 = vld [vmem:[%s4867 + $0x50] sm:$0xff]
      %v4876 = vld [vmem:[%s4867 + $0x60] sm:$0xff]
      %v4877 = vld [vmem:[%s4867 + $0x68] sm:$0xff]
      %v4878 = vld [vmem:[%s4867 + $0x78] sm:$0xff]
      %v4879 = vld [vmem:[%s4867 + $0x80] sm:$0xff]
      %v4880 = vld [vmem:[%s4867 + $0x90] sm:$0xff]
      %v4881 = vld [vmem:[%s4867 + $0x98] sm:$0xff]
      %v4882 = vld [vmem:[%s4867 + $0xa8] sm:$0xff]
      %v4883 = vld [vmem:[%s4867 + $0xb0] sm:$0xff]
      %v4884 = vld [vmem:[%s4867 + $0xc0] sm:$0xff]
      %v4885 = vld [vmem:[%s4867 + $0xc8] sm:$0xff]
      %v4886 = vld [vmem:[%s4867 + $0xd8] sm:$0xff]
      %v4887 = vld [vmem:[%s4867 + $0xe0] sm:$0xff]
      %v4888 = vld [vmem:[%s4867 + $0xf0] sm:$0xff]
      %v4889 = vld [vmem:[%s4867 + $0xf8] sm:$0xff]
      %v4890 = vld [vmem:[%s4867 + $0x108] sm:$0xff]
      %v4891 = vld [vmem:[%s4867 + $0x110] sm:$0xff]
      %v4892 = vld [vmem:[%s4867 + $0x120] sm:$0xff]
      %v4893 = vld [vmem:[%s4867 + $0x128] sm:$0xff]
      %v4894 = vld [vmem:[%s4867 + $0x138] sm:$0xff]
      %v4895 = vld [vmem:[%s4867 + $0x140] sm:$0xff]
      %v4896 = vld [vmem:[%s4867 + $0x150] sm:$0xff]
      %v4897 = vld [vmem:[%s4867 + $0x158] sm:$0xff]
      %v4898 = vld [vmem:[%s4867 + $0x168] sm:$0xff]
      %v4899 = vld [vmem:[%s4867 + $0x170] sm:$0xff]
      %s4900 = scalar_lea.vmem %s5, 12
      %v4901 = vld [vmem:[%s4900] sm:$0x3]
      %v4902 = vpack.c.bf16 %v4869, %v4868
      %v4903 = vpack.c.bf16 %v4871, %v4870
      %v4904 = vpack.c.bf16 %v4873, %v4872
      %v4905 = vpack.c.bf16 %v4875, %v4874
      %v4906 = vpack.c.bf16 %v4877, %v4876
      %v4907 = vpack.c.bf16 %v4879, %v4878
      %v4908 = vpack.c.bf16 %v4881, %v4880
      %v4909 = vpack.c.bf16 %v4883, %v4882
      %v4910 = vpack.c.bf16 %v4885, %v4884
      %v4911 = vpack.c.bf16 %v4887, %v4886
      %v4912 = vpack.c.bf16 %v4889, %v4888
      %v4913 = vpack.c.bf16 %v4891, %v4890
      %v4914 = vpack.c.bf16 %v4893, %v4892
      %v4915 = vpack.c.bf16 %v4895, %v4894
      %v4916 = vpack.c.bf16 %v4897, %v4896
      %v4917 = vpack.c.bf16 %v4899, %v4898
      %v4919 = vsel %vm831, %v4901, 0
      %v4922 = vsel %vm831, %v4902, 0
      %v4925 = vsel %vm831, %v4903, 0
      %v4928 = vsel %vm831, %v4904, 0
      %v4931 = vsel %vm831, %v4905, 0
      %v4934 = vsel %vm831, %v4906, 0
      %v4937 = vsel %vm831, %v4907, 0
      %v4940 = vsel %vm831, %v4908, 0
      %v4943 = vsel %vm831, %v4909, 0
      %v4946 = vsel %vm831, %v4910, 0
      %v4949 = vsel %vm831, %v4911, 0
      %v4952 = vsel %vm831, %v4912, 0
      %v4955 = vsel %vm831, %v4913, 0
      %v4958 = vsel %vm831, %v4914, 0
      %v4961 = vsel %vm831, %v4915, 0
      %v4964 = vsel %vm831, %v4916, 0
      %v4967 = vsel %vm831, %v4917, 0
      %4969 = vmatprep.subr.bf16.mxu0 0
      %4970 = vmatpush1.bf16.xpose.msra.mxu0 %v4943
      %4971 = vmatprep.subr.bf16.mxu0 0
      %4972 = vmatpush1.bf16.xpose.msra.mxu0 %v4940
      %4973 = vmatprep.subr.bf16.mxu0 0
      %4974 = vmatpush1.bf16.xpose.msra.mxu0 %v4937
      %4975 = vmatprep.subr.bf16.mxu0 0
      %4976 = vmatpush1.bf16.xpose.msra.mxu0 %v4934
      %4977 = vmatprep.subr.bf16.mxu0 0
      %4978 = vmatpush1.bf16.xpose.msra.mxu0 %v4931
      %4979 = vmatprep.subr.bf16.mxu0 0
      %4980 = vmatpush1.bf16.xpose.msra.mxu0 %v4928
      %4981 = vmatprep.subr.bf16.mxu0 0
      %4982 = vmatpush1.bf16.xpose.msra.mxu0 %v4925
      %4983 = vmatprep.subr.bf16.mxu0 0
      %4984 = vmatpush1.bf16.xpose.msra.mxu0 %v4922
      %4985 = vmatprep.subr.bf16.mxu0 0
      %4986 = vmatpush2.bf16.xpose.msra.mxu0 %v4967
      %4987 = vmatprep.subr.bf16.mxu0 0
      %4988 = vmatpush2.bf16.xpose.msra.mxu0 %v4964
      %4989 = vmatprep.subr.bf16.mxu0 0
      %4990 = vmatpush2.bf16.xpose.msra.mxu0 %v4961
      %4991 = vmatprep.subr.bf16.mxu0 0
      %4992 = vmatpush2.bf16.xpose.msra.mxu0 %v4958
      %4993 = vmatprep.subr.bf16.mxu0 0
      %4994 = vmatpush2.bf16.xpose.msra.mxu0 %v4955
      %4995 = vmatprep.subr.bf16.mxu0 0
      %4996 = vmatpush2.bf16.xpose.msra.mxu0 %v4952
      %4997 = vmatprep.subr.bf16.mxu0 0
      %4998 = vmatpush2.bf16.xpose.msra.mxu0 %v4949
      %4999 = vmatprep.subr.bf16.mxu0 0
      %5000 = vmatpush2.bf16.xpose.msra.mxu0 %v4946
      %5001 = vmatprep.mubr.bf16.mxu0 0
      %5002 = vmatmul.mubr.bf16.gmra.mxu0 %v4919
      %v5003 = vpop.f32.mrf.mxu0
      %v5004 = vadd.f32 0.0, %v5003
      %v5005 = vpop.f32.mrf.mxu0
      %v5006 = vadd.f32 0.0, %v5005
      %v5007 = vpop.f32.mrf.mxu0
      %v5008 = vpop.f32.mrf.mxu0
      %5009 = vdwg.mxu0
      %v5010 = vadd.f32 %v4865, %v5004
      %v5011 = vadd.f32 %v4866, %v5006
      %v5012 = vld [vmem:[%s4867 + $0x1] sm:$0xff]
      %v5013 = vld [vmem:[%s4867 + $0x9] sm:$0xff]
      %v5014 = vld [vmem:[%s4867 + $0x19] sm:$0xff]
      %v5015 = vld [vmem:[%s4867 + $0x21] sm:$0xff]
      %v5016 = vld [vmem:[%s4867 + $0x31] sm:$0xff]
      %v5017 = vld [vmem:[%s4867 + $0x39] sm:$0xff]
      %v5018 = vld [vmem:[%s4867 + $0x49] sm:$0xff]
      %v5019 = vld [vmem:[%s4867 + $0x51] sm:$0xff]
      %v5020 = vld [vmem:[%s4867 + $0x61] sm:$0xff]
      %v5021 = vld [vmem:[%s4867 + $0x69] sm:$0xff]
      %v5022 = vld [vmem:[%s4867 + $0x79] sm:$0xff]
      %v5023 = vld [vmem:[%s4867 + $0x81] sm:$0xff]
      %v5024 = vld [vmem:[%s4867 + $0x91] sm:$0xff]
      %v5025 = vld [vmem:[%s4867 + $0x99] sm:$0xff]
      %v5026 = vld [vmem:[%s4867 + $0xa9] sm:$0xff]
      %v5027 = vld [vmem:[%s4867 + $0xb1] sm:$0xff]
      %v5028 = vld [vmem:[%s4867 + $0xc1] sm:$0xff]
      %v5029 = vld [vmem:[%s4867 + $0xc9] sm:$0xff]
      %v5030 = vld [vmem:[%s4867 + $0xd9] sm:$0xff]
      %v5031 = vld [vmem:[%s4867 + $0xe1] sm:$0xff]
      %v5032 = vld [vmem:[%s4867 + $0xf1] sm:$0xff]
      %v5033 = vld [vmem:[%s4867 + $0xf9] sm:$0xff]
      %v5034 = vld [vmem:[%s4867 + $0x109] sm:$0xff]
      %v5035 = vld [vmem:[%s4867 + $0x111] sm:$0xff]
      %v5036 = vld [vmem:[%s4867 + $0x121] sm:$0xff]
      %v5037 = vld [vmem:[%s4867 + $0x129] sm:$0xff]
      %v5038 = vld [vmem:[%s4867 + $0x139] sm:$0xff]
      %v5039 = vld [vmem:[%s4867 + $0x141] sm:$0xff]
      %v5040 = vld [vmem:[%s4867 + $0x151] sm:$0xff]
      %v5041 = vld [vmem:[%s4867 + $0x159] sm:$0xff]
      %v5042 = vld [vmem:[%s4867 + $0x169] sm:$0xff]
      %v5043 = vld [vmem:[%s4867 + $0x171] sm:$0xff]
      %s5044 = scalar_lea.vmem %s5, 14
      %v5045 = vld [vmem:[%s5044] sm:$0x3]
      %v5046 = vpack.c.bf16 %v5013, %v5012
      %v5047 = vpack.c.bf16 %v5015, %v5014
      %v5048 = vpack.c.bf16 %v5017, %v5016
      %v5049 = vpack.c.bf16 %v5019, %v5018
      %v5050 = vpack.c.bf16 %v5021, %v5020
      %v5051 = vpack.c.bf16 %v5023, %v5022
      %v5052 = vpack.c.bf16 %v5025, %v5024
      %v5053 = vpack.c.bf16 %v5027, %v5026
      %v5054 = vpack.c.bf16 %v5029, %v5028
      %v5055 = vpack.c.bf16 %v5031, %v5030
      %v5056 = vpack.c.bf16 %v5033, %v5032
      %v5057 = vpack.c.bf16 %v5035, %v5034
      %v5058 = vpack.c.bf16 %v5037, %v5036
      %v5059 = vpack.c.bf16 %v5039, %v5038
      %v5060 = vpack.c.bf16 %v5041, %v5040
      %v5061 = vpack.c.bf16 %v5043, %v5042
      %v5063 = vsel %vm831, %v5045, 0
      %v5066 = vsel %vm831, %v5046, 0
      %v5069 = vsel %vm831, %v5047, 0
      %v5072 = vsel %vm831, %v5048, 0
      %v5075 = vsel %vm831, %v5049, 0
      %v5078 = vsel %vm831, %v5050, 0
      %v5081 = vsel %vm831, %v5051, 0
      %v5084 = vsel %vm831, %v5052, 0
      %v5087 = vsel %vm831, %v5053, 0
      %v5090 = vsel %vm831, %v5054, 0
      %v5093 = vsel %vm831, %v5055, 0
      %v5096 = vsel %vm831, %v5056, 0
      %v5099 = vsel %vm831, %v5057, 0
      %v5102 = vsel %vm831, %v5058, 0
      %v5105 = vsel %vm831, %v5059, 0
      %v5108 = vsel %vm831, %v5060, 0
      %v5111 = vsel %vm831, %v5061, 0
      %5113 = vmatprep.subr.bf16.mxu0 0
      %5114 = vmatpush1.bf16.xpose.msra.mxu0 %v5087
      %5115 = vmatprep.subr.bf16.mxu0 0
      %5116 = vmatpush1.bf16.xpose.msra.mxu0 %v5084
      %5117 = vmatprep.subr.bf16.mxu0 0
      %5118 = vmatpush1.bf16.xpose.msra.mxu0 %v5081
      %5119 = vmatprep.subr.bf16.mxu0 0
      %5120 = vmatpush1.bf16.xpose.msra.mxu0 %v5078
      %5121 = vmatprep.subr.bf16.mxu0 0
      %5122 = vmatpush1.bf16.xpose.msra.mxu0 %v5075
      %5123 = vmatprep.subr.bf16.mxu0 0
      %5124 = vmatpush1.bf16.xpose.msra.mxu0 %v5072
      %5125 = vmatprep.subr.bf16.mxu0 0
      %5126 = vmatpush1.bf16.xpose.msra.mxu0 %v5069
      %5127 = vmatprep.subr.bf16.mxu0 0
      %5128 = vmatpush1.bf16.xpose.msra.mxu0 %v5066
      %5129 = vmatprep.subr.bf16.mxu0 0
      %5130 = vmatpush2.bf16.xpose.msra.mxu0 %v5111
      %5131 = vmatprep.subr.bf16.mxu0 0
      %5132 = vmatpush2.bf16.xpose.msra.mxu0 %v5108
      %5133 = vmatprep.subr.bf16.mxu0 0
      %5134 = vmatpush2.bf16.xpose.msra.mxu0 %v5105
      %5135 = vmatprep.subr.bf16.mxu0 0
      %5136 = vmatpush2.bf16.xpose.msra.mxu0 %v5102
      %5137 = vmatprep.subr.bf16.mxu0 0
      %5138 = vmatpush2.bf16.xpose.msra.mxu0 %v5099
      %5139 = vmatprep.subr.bf16.mxu0 0
      %5140 = vmatpush2.bf16.xpose.msra.mxu0 %v5096
      %5141 = vmatprep.subr.bf16.mxu0 0
      %5142 = vmatpush2.bf16.xpose.msra.mxu0 %v5093
      %5143 = vmatprep.subr.bf16.mxu0 0
      %5144 = vmatpush2.bf16.xpose.msra.mxu0 %v5090
      %5145 = vmatprep.mubr.bf16.mxu0 0
      %5146 = vmatmul.mubr.bf16.gmra.mxu0 %v5063
      %v5147 = vpop.f32.mrf.mxu0
      %v5148 = vadd.f32 0.0, %v5147
      %v5149 = vpop.f32.mrf.mxu0
      %v5150 = vadd.f32 0.0, %v5149
      %v5151 = vpop.f32.mrf.mxu0
      %v5152 = vpop.f32.mrf.mxu0
      %5153 = vdwg.mxu0
      %v5154 = vadd.f32 %v5010, %v5148
      %v5155 = vadd.f32 %v5011, %v5150
      %v5156 = vld [vmem:[%s4867 + $0x2] sm:$0xff]
      %v5157 = vld [vmem:[%s4867 + $0xa] sm:$0xff]
      %v5158 = vld [vmem:[%s4867 + $0x1a] sm:$0xff]
      %v5159 = vld [vmem:[%s4867 + $0x22] sm:$0xff]
      %v5160 = vld [vmem:[%s4867 + $0x32] sm:$0xff]
      %v5161 = vld [vmem:[%s4867 + $0x3a] sm:$0xff]
      %v5162 = vld [vmem:[%s4867 + $0x4a] sm:$0xff]
      %v5163 = vld [vmem:[%s4867 + $0x52] sm:$0xff]
      %v5164 = vld [vmem:[%s4867 + $0x62] sm:$0xff]
      %v5165 = vld [vmem:[%s4867 + $0x6a] sm:$0xff]
      %v5166 = vld [vmem:[%s4867 + $0x7a] sm:$0xff]
      %v5167 = vld [vmem:[%s4867 + $0x82] sm:$0xff]
      %v5168 = vld [vmem:[%s4867 + $0x92] sm:$0xff]
      %v5169 = vld [vmem:[%s4867 + $0x9a] sm:$0xff]
      %v5170 = vld [vmem:[%s4867 + $0xaa] sm:$0xff]
      %v5171 = vld [vmem:[%s4867 + $0xb2] sm:$0xff]
      %v5172 = vld [vmem:[%s4867 + $0xc2] sm:$0xff]
      %v5173 = vld [vmem:[%s4867 + $0xca] sm:$0xff]
      %v5174 = vld [vmem:[%s4867 + $0xda] sm:$0xff]
      %v5175 = vld [vmem:[%s4867 + $0xe2] sm:$0xff]
      %v5176 = vld [vmem:[%s4867 + $0xf2] sm:$0xff]
      %v5177 = vld [vmem:[%s4867 + $0xfa] sm:$0xff]
      %v5178 = vld [vmem:[%s4867 + $0x10a] sm:$0xff]
      %v5179 = vld [vmem:[%s4867 + $0x112] sm:$0xff]
      %v5180 = vld [vmem:[%s4867 + $0x122] sm:$0xff]
      %v5181 = vld [vmem:[%s4867 + $0x12a] sm:$0xff]
      %v5182 = vld [vmem:[%s4867 + $0x13a] sm:$0xff]
      %v5183 = vld [vmem:[%s4867 + $0x142] sm:$0xff]
      %v5184 = vld [vmem:[%s4867 + $0x152] sm:$0xff]
      %v5185 = vld [vmem:[%s4867 + $0x15a] sm:$0xff]
      %v5186 = vld [vmem:[%s4867 + $0x16a] sm:$0xff]
      %v5187 = vld [vmem:[%s4867 + $0x172] sm:$0xff]
      %s5188 = scalar_lea.vmem %s5, 16
      %v5189 = vld [vmem:[%s5188] sm:$0x3]
      %v5190 = vpack.c.bf16 %v5157, %v5156
      %v5191 = vpack.c.bf16 %v5159, %v5158
      %v5192 = vpack.c.bf16 %v5161, %v5160
      %v5193 = vpack.c.bf16 %v5163, %v5162
      %v5194 = vpack.c.bf16 %v5165, %v5164
      %v5195 = vpack.c.bf16 %v5167, %v5166
      %v5196 = vpack.c.bf16 %v5169, %v5168
      %v5197 = vpack.c.bf16 %v5171, %v5170
      %v5198 = vpack.c.bf16 %v5173, %v5172
      %v5199 = vpack.c.bf16 %v5175, %v5174
      %v5200 = vpack.c.bf16 %v5177, %v5176
      %v5201 = vpack.c.bf16 %v5179, %v5178
      %v5202 = vpack.c.bf16 %v5181, %v5180
      %v5203 = vpack.c.bf16 %v5183, %v5182
      %v5204 = vpack.c.bf16 %v5185, %v5184
      %v5205 = vpack.c.bf16 %v5187, %v5186
      %v5207 = vsel %vm831, %v5189, 0
      %v5210 = vsel %vm831, %v5190, 0
      %v5213 = vsel %vm831, %v5191, 0
      %v5216 = vsel %vm831, %v5192, 0
      %v5219 = vsel %vm831, %v5193, 0
      %v5222 = vsel %vm831, %v5194, 0
      %v5225 = vsel %vm831, %v5195, 0
      %v5228 = vsel %vm831, %v5196, 0
      %v5231 = vsel %vm831, %v5197, 0
      %v5234 = vsel %vm831, %v5198, 0
      %v5237 = vsel %vm831, %v5199, 0
      %v5240 = vsel %vm831, %v5200, 0
      %v5243 = vsel %vm831, %v5201, 0
      %v5246 = vsel %vm831, %v5202, 0
      %v5249 = vsel %vm831, %v5203, 0
      %v5252 = vsel %vm831, %v5204, 0
      %v5255 = vsel %vm831, %v5205, 0
      %5257 = vmatprep.subr.bf16.mxu0 0
      %5258 = vmatpush1.bf16.xpose.msra.mxu0 %v5231
      %5259 = vmatprep.subr.bf16.mxu0 0
      %5260 = vmatpush1.bf16.xpose.msra.mxu0 %v5228
      %5261 = vmatprep.subr.bf16.mxu0 0
      %5262 = vmatpush1.bf16.xpose.msra.mxu0 %v5225
      %5263 = vmatprep.subr.bf16.mxu0 0
      %5264 = vmatpush1.bf16.xpose.msra.mxu0 %v5222
      %5265 = vmatprep.subr.bf16.mxu0 0
      %5266 = vmatpush1.bf16.xpose.msra.mxu0 %v5219
      %5267 = vmatprep.subr.bf16.mxu0 0
      %5268 = vmatpush1.bf16.xpose.msra.mxu0 %v5216
      %5269 = vmatprep.subr.bf16.mxu0 0
      %5270 = vmatpush1.bf16.xpose.msra.mxu0 %v5213
      %5271 = vmatprep.subr.bf16.mxu0 0
      %5272 = vmatpush1.bf16.xpose.msra.mxu0 %v5210
      %5273 = vmatprep.subr.bf16.mxu0 0
      %5274 = vmatpush2.bf16.xpose.msra.mxu0 %v5255
      %5275 = vmatprep.subr.bf16.mxu0 0
      %5276 = vmatpush2.bf16.xpose.msra.mxu0 %v5252
      %5277 = vmatprep.subr.bf16.mxu0 0
      %5278 = vmatpush2.bf16.xpose.msra.mxu0 %v5249
      %5279 = vmatprep.subr.bf16.mxu0 0
      %5280 = vmatpush2.bf16.xpose.msra.mxu0 %v5246
      %5281 = vmatprep.subr.bf16.mxu0 0
      %5282 = vmatpush2.bf16.xpose.msra.mxu0 %v5243
      %5283 = vmatprep.subr.bf16.mxu0 0
      %5284 = vmatpush2.bf16.xpose.msra.mxu0 %v5240
      %5285 = vmatprep.subr.bf16.mxu0 0
      %5286 = vmatpush2.bf16.xpose.msra.mxu0 %v5237
      %5287 = vmatprep.subr.bf16.mxu0 0
      %5288 = vmatpush2.bf16.xpose.msra.mxu0 %v5234
      %5289 = vmatprep.mubr.bf16.mxu0 0
      %5290 = vmatmul.mubr.bf16.gmra.mxu0 %v5207
      %v5291 = vpop.f32.mrf.mxu0
      %v5292 = vadd.f32 0.0, %v5291
      %v5293 = vpop.f32.mrf.mxu0
      %v5294 = vadd.f32 0.0, %v5293
      %v5295 = vpop.f32.mrf.mxu0
      %v5296 = vpop.f32.mrf.mxu0
      %5297 = vdwg.mxu0
      %v5298 = vadd.f32 %v5154, %v5292
      %v5299 = vadd.f32 %v5155, %v5294
      %v5300 = vld [vmem:[%s6] sm:$0x7]
      %5302 = vset.pattern.permute.xlu0 0
      %5303 = vperm.xlu0 %5302, %v5300
      %v5304 = vpop.permute.xlu0 %5303
      %v5306 = vadd.f32 %v5298, %v5304
      %v5307 = vadd.f32 %v5299, %v5304
      %v5310 = vcombine.low %v5306, %v5307
      %5312 = vst [vmem:[%s278] sm:$0x77] %v5310
      %p5313 = scmp.lt.s32.totalorder %s18, 1
      %s5314 = scalar_select %p5313, %s18, 1
      %s5315 = smul.addr %s5314, 2
      %s5316 = smul.addr %s5315, 4
      %s5317 = scalar_lea.vmem %s7, %s5316
      // Predicated region
      $region49: #{video_enhancement_forward.1} parent=47 // pred_check
        %p5318 = pneg %p188
      $region50: #{video_enhancement_forward.1} parent=47 // pred_check_branch
        %5320 = sbr.rel (%p5318) target = $region52
      $region51: #{video_enhancement_forward.1} parent=47 // pred_region
        _
      $region52: #{video_enhancement_forward.1} parent=47 // pred_fallthru
        _
    $region48: #{video_enhancement_forward.1} parent=5 // pred_fallthru
      _
    %p5321 = scmp.le.s32.totalorder 2, %s13
    // Predicated region
    $region53: #{video_enhancement_forward.1} parent=5 // pred_check
      %p5322 = pneg %p5321
    $region54: #{video_enhancement_forward.1} parent=5 // pred_check_branch
      %5324 = sbr.rel (%p5322) target = $region56
    $region55: #{video_enhancement_forward.1} parent=5 // pred_region
      %s5325 = ssub.s32 %s13, 2
      // Predicated region
      $region57: #{video_enhancement_forward.1} parent=55 // pred_check
        %p5326 = pneg %p194
      $region58: #{video_enhancement_forward.1} parent=55 // pred_check_branch
        %5328 = sbr.rel (%p5326) target = $region60
      $region59: #{video_enhancement_forward.1} parent=55 // pred_region
        %p5329 = scmp.lt.s32.totalorder %s19, 1
        %s5330 = scalar_select %p5329, %s19, 1
        %s5331 = smul.addr %s5330, 2
        %s5332 = smul.addr %s5331, 4
        %s5333 = scalar_lea.vmem %s7, %s5332
      $region60: #{video_enhancement_forward.1} parent=55 // pred_fallthru
        _
    $region56: #{video_enhancement_forward.1} parent=5 // pred_fallthru
      _
  $region6: #{video_enhancement_forward.1} parent=0 // loop_footer
    %s17 = sadd.s32 1, %s13
  $region7: #{video_enhancement_forward.1} parent=0 // loop_footer_branch
    %12 = sbr.rel target = $region3
  $region8: #{video_enhancement_forward.1} parent=0 // loop_exit
    _

</llo_original>
